<compile_context>
chip_gen: v7x
topology: tpu7x:2x2x1
jax: 0.10.0
libtpu: 0.0.40
codegen_flags: <defaults>
</compile_context>

<pallas_src>
import functools
import math

import jax
import jax.numpy as jnp
from jax.experimental import pallas as pl
from jax.experimental.pallas import tpu as pltpu


# ------------------------------- helpers ------------------------------------

def _round_up(n, m):
    return (n + m - 1) // m * m


def _gelu(x, approximate):
    if approximate:
        # tanh approximation: the transcendental goes to the EUP slot, freeing
        # the VALU on v6e/v7x where the exact-erf polynomial can saturate it.
        c = math.sqrt(2.0 / math.pi)
        return 0.5 * x * (1.0 + jnp.tanh(c * (x + 0.044715 * x * x * x)))
    # Exact erf formulation == nn.GELU(approximate='none') (PyTorch default).
    return 0.5 * x * (1.0 + jax.lax.erf(x * (1.0 / math.sqrt(2.0))))


# ------------------------------- kernel -------------------------------------

def resadd_kernel(x_ref, w1_ref, b1_ref, w2_ref, b2_ref, o_ref, acc_ref,
                  *, h_chunk, n_chunks, approximate):
    f32 = jnp.float32
    # Cast the input tile to bf16 in-kernel (no extra host-side HBM pass).
    x = x_ref[...].astype(jnp.bfloat16)                      # (TM, E)
    acc_ref[...] = jnp.zeros_like(acc_ref)

    # Unrolled loop over hidden-dim chunks so the GELU of chunk c can overlap
    # with the MXU matmuls of chunk c+1, and the live f32 intermediate stays at
    # (TM, h_chunk) instead of (TM, H).
    for c in range(n_chunks):
        lo = c * h_chunk
        hi = lo + h_chunk
        h = jnp.dot(x, w1_ref[:, lo:hi], preferred_element_type=f32)
        h = h + b1_ref[:, lo:hi]
        # Dropout: eval-mode identity.
        # TODO(synk): training-mode dropout (pltpu.prng_seed + stateful_bernoulli)
        # is not implemented; this matches PyTorch .eval()/inference semantics.
        h = _gelu(h, approximate)
        acc_ref[...] += jnp.dot(h.astype(jnp.bfloat16), w2_ref[lo:hi, :],
                                preferred_element_type=f32)

    o_ref[...] = (acc_ref[...] + b2_ref[...]).astype(o_ref.dtype)


def _make_resadd_call(M, E_p, H_p, TM, h_chunk, *, x_dtype, out_dtype,
                      single_buffer_weights, approximate):
    """pallas_call: x (M, E_p) -> out (M, E_p). Weights resident in VMEM."""
    n_chunks = H_p // h_chunk

    def const_spec(shape):
        idx = lambda i: (0,) * len(shape)
        if single_buffer_weights:
            # Constant-index blocks never change -> no need to double-buffer.
            return pl.BlockSpec(shape, idx, pipeline_mode=pl.Buffered(1))
        return pl.BlockSpec(shape, idx)

    grid = (pl.cdiv(M, TM),)

    x_bytes = jnp.dtype(x_dtype).itemsize
    out_bytes = jnp.dtype(out_dtype).itemsize

    cost = pl.CostEstimate(
        flops=4 * M * E_p * H_p,                  # two (M,E)x(E,H)-class matmuls
        transcendentals=M * H_p,                  # one erf/tanh per hidden value
        bytes_accessed=(M * E_p * (x_bytes + out_bytes)
                        + 2 * E_p * H_p * 2      # bf16 weights (fetched once)
                        + (E_p + H_p) * 4),      # f32 biases
    )

    # VMEM budget: resident weights (counted once when single-buffered),
    # double-buffered x/out row tiles, f32 accumulator, ~3 chunk-sized temps.
    w_bytes = 2 * E_p * H_p * 2 + (E_p + H_p) * 4
    if not single_buffer_weights:
        w_bytes *= 2
    need = (w_bytes
            + 2 * TM * E_p * (x_bytes + out_bytes)
            + TM * E_p * 4
            + 3 * TM * h_chunk * 4
            + (4 << 20))                          # compiler-temp headroom
    try:
        cap = int(0.85 * pltpu.get_tpu_info().vmem_capacity_bytes)
    except Exception:
        cap = 48 << 20                            # safe on every generation
    vmem_limit = int(min(cap, max(need, 32 << 20)))

    kernel = functools.partial(resadd_kernel, h_chunk=h_chunk,
                               n_chunks=n_chunks, approximate=approximate)

    return pl.pallas_call(
        kernel,
        out_shape=jax.ShapeDtypeStruct((M, E_p), out_dtype),
        grid=grid,
        in_specs=[
            pl.BlockSpec((TM, E_p), lambda i: (i, 0)),   # x row tile (orig dtype)
            const_spec((E_p, H_p)),                      # W1^T (bf16), resident
            const_spec((1, H_p)),                        # b1   (f32)
            const_spec((H_p, E_p)),                      # W2^T (bf16), resident
            const_spec((1, E_p)),                        # b2   (f32)
        ],
        out_specs=pl.BlockSpec((TM, E_p), lambda i: (i, 0)),
        scratch_shapes=[pltpu.VMEM((TM, E_p), jnp.float32)],
        compiler_params=pltpu.CompilerParams(
            dimension_semantics=("parallel",),
            vmem_limit_bytes=vmem_limit,
        ),
        cost_estimate=cost,
    )
    # TODO(synk): for very large embed dims on v7x (2*E*H bf16 weights > ~40 MiB)
    # add a weight-streaming grid axis over H ("arbitrary") with pl.when
    # init/finalize on the accumulator instead of keeping weights resident.


# --------------------------- parameters & wrapper ----------------------------

def init_resadd_params(key, embed_dim, forward_expansion):
    """PyTorch nn.Linear defaults: U(-1/sqrt(fan_in), 1/sqrt(fan_in))."""
    hidden = embed_dim * forward_expansion
    k1, k2, k3, k4 = jax.random.split(key, 4)
    b1bound = 1.0 / math.sqrt(embed_dim)
    b2bound = 1.0 / math.sqrt(hidden)
    w1 = jax.random.uniform(k1, (hidden, embed_dim), jnp.float32, -b1bound, b1bound)
    b1 = jax.random.uniform(k2, (hidden,), jnp.float32, -b1bound, b1bound)
    w2 = jax.random.uniform(k3, (embed_dim, hidden), jnp.float32, -b2bound, b2bound)
    b2 = jax.random.uniform(k4, (embed_dim,), jnp.float32, -b2bound, b2bound)
    return dict(w1=w1, b1=b1, w2=w2, b2=b2)


def prepare_kernel_params(params):
    """Transpose to x@W^T layout, zero-pad feature dims to multiples of 128
    (lane-dense), cast weights to bf16 for the MXU (biases stay f32)."""
    w1, b1, w2, b2 = params["w1"], params["b1"], params["w2"], params["b2"]
    H, E = w1.shape
    E_p, H_p = _round_up(E, 128), _round_up(H, 128)
    w1t = jnp.zeros((E_p, H_p), jnp.float32).at[:E, :H].set(w1.T)
    w2t = jnp.zeros((H_p, E_p), jnp.float32).at[:H, :E].set(w2.T)
    b1p = jnp.zeros((1, H_p), jnp.float32).at[0, :H].set(b1)
    b2p = jnp.zeros((1, E_p), jnp.float32).at[0, :E].set(b2)
    return dict(w1t=w1t.astype(jnp.bfloat16), b1=b1p,
                w2t=w2t.astype(jnp.bfloat16), b2=b2p,
                E=E, H=H, E_p=E_p, H_p=H_p)


def resadd_forward(x, kparams, *, block_rows=512, out_dtype=jnp.float32,
                   gelu_approximate=False):
    """Runs ResAdd.forward(x) via the Pallas kernel.  x: (..., embed_dim)."""
    orig_shape = x.shape
    E, E_p, H_p = kparams["E"], kparams["E_p"], kparams["H_p"]

    x2 = x.reshape(-1, E)
    if E_p != E:
        # Zero-pad only the feature dim (padded W1^T rows are zero, so finite
        # padded lanes contribute nothing).  Row (M) padding is handled by
        # Pallas partial blocks -- no host-side M pad or output slice.
        x2 = jnp.pad(x2, ((0, 0), (0, E_p - E)))
    M = x2.shape[0]

    # Large, 256-aligned row tile (matches the 256x256 MXU on v6e/v7x).  The
    # grid axis is "parallel", so when M naturally yields >=2 steps the work
    # shards across v7x's two TensorCores; on single-TC chips a single big
    # tile avoids per-step overhead.
    TM = min(_round_up(block_rows, 256), _round_up(M, 8))
    # TODO(synk): make the split TensorCore-count aware (even 2-way split on
    # v7x for medium M) once a stable core-count query is available.

    h_chunk = 512 if H_p % 512 == 0 else (256 if H_p % 256 == 0 else 128)
    h_chunk = min(h_chunk, H_p)

    args = (x2, kparams["w1t"], kparams["b1"], kparams["w2t"], kparams["b2"])
    make = functools.partial(_make_resadd_call, M, E_p, H_p, TM, h_chunk,
                             x_dtype=x2.dtype, out_dtype=out_dtype,
                             approximate=gelu_approximate)

    call = make(single_buffer_weights=True)
    try:
        # Probe only the Pallas lowering of the pl.Buffered(1) weight specs.
        # Execution happens outside this try, so genuine compile/runtime
        # errors (e.g. VMEM OOM) are not silently masked by a fallback.
        jax.jit(call).lower(*args)
    except Exception:
        call = make(single_buffer_weights=False)

    out = call(*args)
    if E_p != E:
        out = out[:, :E]
    return out.reshape(orig_shape)


# ----------------------------- pure-JAX reference ----------------------------

def reference_resadd(x, params):
    h = x @ params["w1"].T + params["b1"]
    # dropout: eval-mode identity
    h = jax.nn.gelu(h, approximate=False)
    return h @ params["w2"].T + params["b2"]


# ---------------------------------- main -------------------------------------

if __name__ == "__main__":
    # Small but lane-dense config (feature dims are multiples of 128).
    B, S = 2, 128
    EMBED, EXPANSION = 256, 4

    key = jax.random.PRNGKey(0)
    kx, kp = jax.random.split(key)
    x = jax.random.normal(kx, (B, S, EMBED), jnp.float32)

    params = init_resadd_params(kp, EMBED, EXPANSION)
    kparams = prepare_kernel_params(params)

    out = resadd_forward(x, kparams)
    out = jax.block_until_ready(out)

    ref = reference_resadd(x, params)
    assert out.shape == x.shape
    max_err = float(jnp.max(jnp.abs(out - ref)))
    # bf16 MXU inputs with f32 accumulation vs pure-f32 reference.
    assert jnp.allclose(out, ref, atol=2e-2, rtol=2e-2), \
        f"mismatch vs reference (max abs err {max_err})"

    print("KERNEL_OK")
</pallas_src>

<mosaic_0001>
module attributes {stable_mosaic.version = 11 : i64} {
  func.func @resadd_kernel(%arg0: i32, %arg1: memref<256x256xf32, #tpu.memory_space<vmem>>, %arg2: memref<256x1024xbf16, #tpu.memory_space<vmem>>, %arg3: memref<1x1024xf32, #tpu.memory_space<vmem>>, %arg4: memref<1024x256xbf16, #tpu.memory_space<vmem>>, %arg5: memref<1x256xf32, #tpu.memory_space<vmem>>, %arg6: memref<256x256xf32, #tpu.memory_space<vmem>>, %arg7: memref<256x256xf32, #tpu.memory_space<vmem>>) attributes {dimension_semantics = [#tpu.dimension_semantics<parallel>], iteration_bounds = array<i64: 1>, scalar_prefetch = 0 : i64, scratch_operands = 1 : i64, tpu.core_type = #tpu.core_type<tc>, window_params = [{transform_indices = @transform_0, window_bounds = array<i64: 256, 256>}, {pipeline_mode = #tpu.pipeline_mode<synchronous>, transform_indices = @transform_1, window_bounds = array<i64: 256, 1024>}, {pipeline_mode = #tpu.pipeline_mode<synchronous>, transform_indices = @transform_2, window_bounds = array<i64: 1, 1024>}, {pipeline_mode = #tpu.pipeline_mode<synchronous>, transform_indices = @transform_3, window_bounds = array<i64: 1024, 256>}, {pipeline_mode = #tpu.pipeline_mode<synchronous>, transform_indices = @transform_4, window_bounds = array<i64: 1, 256>}, {transform_indices = @transform_5, window_bounds = array<i64: 256, 256>}]} {
    %c0 = arith.constant 0 : index
    %c0_0 = arith.constant 0 : index
    %0 = vector.load %arg1[%c0, %c0_0] : memref<256x256xf32, #tpu.memory_space<vmem>>, vector<256x256xf32>
    %1 = arith.truncf %0 : vector<256x256xf32> to vector<256x256xbf16>
    %cst = arith.constant 0.000000e+00 : f32
    %2 = vector.broadcast %cst : f32 to vector<256x256xf32>
    %c0_1 = arith.constant 0 : index
    %c0_2 = arith.constant 0 : index
    %3 = vector.load %arg7[%c0_1, %c0_2] : memref<256x256xf32, #tpu.memory_space<vmem>>, vector<256x256xf32>
    tpu.vector_store %arg7[%c0_1, %c0_2], %2 {strides = array<i32>} : memref<256x256xf32, #tpu.memory_space<vmem>>, vector<256x256xf32>,
    %c0_3 = arith.constant 0 : index
    %c0_4 = arith.constant 0 : index
    %4 = vector.load %arg2[%c0_3, %c0_4] : memref<256x1024xbf16, #tpu.memory_space<vmem>>, vector<256x512xbf16>
    %cst_5 = arith.constant dense<0.000000e+00> : vector<256x512xf32>
    %5 = tpu.matmul %1, %4, %cst_5 {dimension_numbers = #tpu.dot_dimension_numbers<[1], [0], [0], [1], [0, 0, 1, 1], [], []>} : vector<256x256xbf16>, vector<256x512xbf16>, vector<256x512xf32> -> vector<256x512xf32>
    %c0_6 = arith.constant 0 : index
    %c0_7 = arith.constant 0 : index
    %6 = vector.load %arg3[%c0_6, %c0_7] : memref<1x1024xf32, #tpu.memory_space<vmem>>, vector<1x512xf32>
    %7 = vector.broadcast %6 : vector<1x512xf32> to vector<256x512xf32>
    %8 = arith.addf %5, %7 : vector<256x512xf32>
    %cst_8 = arith.constant 5.000000e-01 : f32
    %9 = vector.broadcast %cst_8 : f32 to vector<256x512xf32>
    %10 = arith.mulf %9, %8 : vector<256x512xf32>
    %cst_9 = arith.constant 0.707106769 : f32
    %11 = vector.broadcast %cst_9 : f32 to vector<256x512xf32>
    %12 = arith.mulf %8, %11 : vector<256x512xf32>
    %13 = math.erf %12 : vector<256x512xf32>
    %cst_10 = arith.constant 1.000000e+00 : f32
    %14 = vector.broadcast %cst_10 : f32 to vector<256x512xf32>
    %15 = arith.addf %14, %13 : vector<256x512xf32>
    %16 = arith.mulf %10, %15 : vector<256x512xf32>
    %c0_11 = arith.constant 0 : index
    %c0_12 = arith.constant 0 : index
    %17 = vector.load %arg7[%c0_11, %c0_12] : memref<256x256xf32, #tpu.memory_space<vmem>>, vector<256x256xf32>
    %18 = arith.truncf %16 : vector<256x512xf32> to vector<256x512xbf16>
    %c0_13 = arith.constant 0 : index
    %c0_14 = arith.constant 0 : index
    %19 = vector.load %arg4[%c0_13, %c0_14] : memref<1024x256xbf16, #tpu.memory_space<vmem>>, vector<512x256xbf16>
    %cst_15 = arith.constant dense<0.000000e+00> : vector<256x256xf32>
    %20 = tpu.matmul %18, %19, %cst_15 {dimension_numbers = #tpu.dot_dimension_numbers<[1], [0], [0], [1], [0, 0, 1, 1], [], []>} : vector<256x512xbf16>, vector<512x256xbf16>, vector<256x256xf32> -> vector<256x256xf32>
    %21 = arith.addf %17, %20 : vector<256x256xf32>
    %c0_16 = arith.constant 0 : index
    %c0_17 = arith.constant 0 : index
    %22 = vector.load %arg7[%c0_16, %c0_17] : memref<256x256xf32, #tpu.memory_space<vmem>>, vector<256x256xf32>
    tpu.vector_store %arg7[%c0_16, %c0_17], %21 {strides = array<i32>} : memref<256x256xf32, #tpu.memory_space<vmem>>, vector<256x256xf32>,
    %c0_18 = arith.constant 0 : index
    %c512 = arith.constant 512 : index
    %23 = vector.load %arg2[%c0_18, %c512] : memref<256x1024xbf16, #tpu.memory_space<vmem>>, vector<256x512xbf16>
    %cst_19 = arith.constant dense<0.000000e+00> : vector<256x512xf32>
    %24 = tpu.matmul %1, %23, %cst_19 {dimension_numbers = #tpu.dot_dimension_numbers<[1], [0], [0], [1], [0, 0, 1, 1], [], []>} : vector<256x256xbf16>, vector<256x512xbf16>, vector<256x512xf32> -> vector<256x512xf32>
    %c0_20 = arith.constant 0 : index
    %c512_21 = arith.constant 512 : index
    %25 = vector.load %arg3[%c0_20, %c512_21] : memref<1x1024xf32, #tpu.memory_space<vmem>>, vector<1x512xf32>
    %26 = vector.broadcast %25 : vector<1x512xf32> to vector<256x512xf32>
    %27 = arith.addf %24, %26 : vector<256x512xf32>
    %cst_22 = arith.constant 5.000000e-01 : f32
    %28 = vector.broadcast %cst_22 : f32 to vector<256x512xf32>
    %29 = arith.mulf %28, %27 : vector<256x512xf32>
    %cst_23 = arith.constant 0.707106769 : f32
    %30 = vector.broadcast %cst_23 : f32 to vector<256x512xf32>
    %31 = arith.mulf %27, %30 : vector<256x512xf32>
    %32 = math.erf %31 : vector<256x512xf32>
    %cst_24 = arith.constant 1.000000e+00 : f32
    %33 = vector.broadcast %cst_24 : f32 to vector<256x512xf32>
    %34 = arith.addf %33, %32 : vector<256x512xf32>
    %35 = arith.mulf %29, %34 : vector<256x512xf32>
    %c0_25 = arith.constant 0 : index
    %c0_26 = arith.constant 0 : index
    %36 = vector.load %arg7[%c0_25, %c0_26] : memref<256x256xf32, #tpu.memory_space<vmem>>, vector<256x256xf32>
    %37 = arith.truncf %35 : vector<256x512xf32> to vector<256x512xbf16>
    %c512_27 = arith.constant 512 : index
    %c0_28 = arith.constant 0 : index
    %38 = vector.load %arg4[%c512_27, %c0_28] : memref<1024x256xbf16, #tpu.memory_space<vmem>>, vector<512x256xbf16>
    %cst_29 = arith.constant dense<0.000000e+00> : vector<256x256xf32>
    %39 = tpu.matmul %37, %38, %cst_29 {dimension_numbers = #tpu.dot_dimension_numbers<[1], [0], [0], [1], [0, 0, 1, 1], [], []>} : vector<256x512xbf16>, vector<512x256xbf16>, vector<256x256xf32> -> vector<256x256xf32>
    %40 = arith.addf %36, %39 : vector<256x256xf32>
    %c0_30 = arith.constant 0 : index
    %c0_31 = arith.constant 0 : index
    %41 = vector.load %arg7[%c0_30, %c0_31] : memref<256x256xf32, #tpu.memory_space<vmem>>, vector<256x256xf32>
    tpu.vector_store %arg7[%c0_30, %c0_31], %40 {strides = array<i32>} : memref<256x256xf32, #tpu.memory_space<vmem>>, vector<256x256xf32>,
    %c0_32 = arith.constant 0 : index
    %c0_33 = arith.constant 0 : index
    %42 = vector.load %arg7[%c0_32, %c0_33] : memref<256x256xf32, #tpu.memory_space<vmem>>, vector<256x256xf32>
    %c0_34 = arith.constant 0 : index
    %c0_35 = arith.constant 0 : index
    %43 = vector.load %arg5[%c0_34, %c0_35] : memref<1x256xf32, #tpu.memory_space<vmem>>, vector<1x256xf32>
    %44 = vector.broadcast %43 : vector<1x256xf32> to vector<256x256xf32>
    %45 = arith.addf %42, %44 : vector<256x256xf32>
    %c0_36 = arith.constant 0 : index
    %c0_37 = arith.constant 0 : index
    %46 = vector.load %arg6[%c0_36, %c0_37] : memref<256x256xf32, #tpu.memory_space<vmem>>, vector<256x256xf32>
    tpu.vector_store %arg6[%c0_36, %c0_37], %45 {strides = array<i32>} : memref<256x256xf32, #tpu.memory_space<vmem>>, vector<256x256xf32>,
    return
  }
  func.func @transform_0(%arg0: i32) -> (i32, i32) {
    %c0_i32 = arith.constant 0 : i32
    %c0_i32_0 = arith.constant 0 : i32
    return %arg0, %c0_i32 : i32, i32
  }
  func.func @transform_1(%arg0: i32) -> (i32, i32) {
    %c0_i32 = arith.constant 0 : i32
    %c0_i32_0 = arith.constant 0 : i32
    %c0_i32_1 = arith.constant 0 : i32
    return %c0_i32, %c0_i32_0 : i32, i32
  }
  func.func @transform_2(%arg0: i32) -> (i32, i32) {
    %c0_i32 = arith.constant 0 : i32
    %c0_i32_0 = arith.constant 0 : i32
    %c0_i32_1 = arith.constant 0 : i32
    return %c0_i32, %c0_i32_0 : i32, i32
  }
  func.func @transform_3(%arg0: i32) -> (i32, i32) {
    %c0_i32 = arith.constant 0 : i32
    %c0_i32_0 = arith.constant 0 : i32
    %c0_i32_1 = arith.constant 0 : i32
    return %c0_i32, %c0_i32_0 : i32, i32
  }
  func.func @transform_4(%arg0: i32) -> (i32, i32) {
    %c0_i32 = arith.constant 0 : i32
    %c0_i32_0 = arith.constant 0 : i32
    %c0_i32_1 = arith.constant 0 : i32
    return %c0_i32, %c0_i32_0 : i32, i32
  }
  func.func @transform_5(%arg0: i32) -> (i32, i32) {
    %c0_i32 = arith.constant 0 : i32
    %c0_i32_0 = arith.constant 0 : i32
    return %arg0, %c0_i32 : i32, i32
  }
}

</mosaic_0001>

<llo_original>
// kernel: tpu_custom_call.1
$region0: #{tpu_custom_call.1}
  #allocation0 [shape = 'u32[]', space=smem, size = 0x4, offset = 0x4, fixed_abs, tag = 'smem constant byte address 0x4 - core index']
  #allocation1 [shape = 'u32[144,128]{1,0:T(1,128)}', space=vmem, size = 0x12000, scoped, tag = 'internal scratch']
  #allocation2 [shape = 'f32[256,256]{1,0:T(8,128)}', space=vmem, size = 0x40000, scoped, tag = 'scratch operand']
  %s0 = inlined_call_operand.hbm [shape: f32[256,256], index: 0, kind: input, shape index: {}]
  %s1 = inlined_call_operand.hbm [shape: bf16[256,1024], index: 1, kind: input, shape index: {}]
  %s2 = inlined_call_operand.hbm [shape: f32[1,1024], index: 2, kind: input, shape index: {}]
  %s3 = inlined_call_operand.hbm [shape: bf16[1024,256], index: 3, kind: input, shape index: {}]
  %s4 = inlined_call_operand.vmem [shape: f32[1,256], index: 4, kind: input, shape index: {}]
  %s5 = inlined_call_operand.hbm [shape: f32[256,256], index: 5, kind: output, shape index: {}]
  %s6 = sld [smem:[#allocation0]]
  $region46: #{tpu_custom_call.1} parent=0
    _
  %s8 = ssub.s32 1, %s6
  %s9 = scalar_select 0, %s8, %s6
  $region1: #{tpu_custom_call.1} parent=0
    #allocation3 [shape = 'u8[262144]{0}', space=vmem, size = 0x40000, scoped, tag = 'input window, operand 0, single buffered']
    #allocation4 [shape = 's32[1]{0}', space=sflag, size = 0x4, scoped, tag = 'scoped memory for tpu_custom_call.1']
    #allocation5 [shape = 's32[1]{0}', space=sflag, size = 0x4, scoped, tag = 'scoped memory for tpu_custom_call.1']
    #allocation6 [shape = 'u8[524288]{0}', space=vmem, size = 0x80000, scoped, tag = 'input window, operand 1, single buffered']
    #allocation7 [shape = 's32[1]{0}', space=sflag, size = 0x4, scoped, tag = 'scoped memory for tpu_custom_call.1']
    #allocation8 [shape = 'u8[4096]{0}', space=vmem, size = 0x1000, scoped, tag = 'input window, operand 2, single buffered']
    #allocation9 [shape = 'u8[524288]{0}', space=vmem, size = 0x80000, scoped, tag = 'input window, operand 3, single buffered']
    #allocation10 [shape = 's32[1]{0}', space=sflag, size = 0x4, scoped, tag = 'scoped memory for tpu_custom_call.1']
    #allocation11 [shape = 'u8[262144]{0}', space=vmem, size = 0x40000, scoped, tag = 'output window, operand 0, single buffered']
    %10 = vsyncpa [#allocation4], 0
    %11 = vsyncpa [#allocation7], 0
    %12 = vsyncpa [#allocation10], 0
    %13 = vsyncpa [#allocation5], 0
    // Predicated region
    $region2: #{tpu_custom_call.1} parent=1 // pred_check
      _
    $region3: #{tpu_custom_call.1} parent=1 // pred_check_branch
      %15 = sbr.rel (0) target = $region5
    $region4: #{tpu_custom_call.1} parent=1 // pred_region
      %s17 = ssub.s32 8192, 8192
      %18 = vsyncadd [#allocation4], %s17
      %s19 = sshll.u32 [#allocation3], 4
      %s20 = int_to_ptr.vmem [resolvable:$true] %s19
      %25 = dma.hbm_to_vmem [thread:$0]  %s0, 8192, %s20, [#allocation4], 256, 256, 16
    $region5: #{tpu_custom_call.1} parent=1 // pred_fallthru
      _
    // Predicated region
    $region6: #{tpu_custom_call.1} parent=1 // pred_check
      _
    $region7: #{tpu_custom_call.1} parent=1 // pred_check_branch
      %27 = sbr.rel (0) target = $region9
    $region8: #{tpu_custom_call.1} parent=1 // pred_region
      %s29 = ssub.s32 16384, 16384
      %30 = vsyncadd [#allocation7], %s29
      %s31 = sshll.u32 [#allocation6], 4
      %s32 = int_to_ptr.vmem [resolvable:$true] %s31
      %37 = dma.hbm_to_vmem [thread:$0]  %s1, 16384, %s32, [#allocation7], 512, 512, 32
    $region9: #{tpu_custom_call.1} parent=1 // pred_fallthru
      _
    // Predicated region
    $region10: #{tpu_custom_call.1} parent=1 // pred_check
      _
    $region11: #{tpu_custom_call.1} parent=1 // pred_check_branch
      %39 = sbr.rel (0) target = $region13
    $region12: #{tpu_custom_call.1} parent=1 // pred_region
      %s41 = ssub.s32 128, 128
      %42 = vsyncadd [#allocation7], %s41
      %s44 = sshll.u32 [#allocation8], 4
      %s45 = int_to_ptr.vmem [resolvable:$true] %s44
      %47 = dma.hbm_to_vmem [thread:$0]  %s2, 128, %s45, [#allocation7]
    $region13: #{tpu_custom_call.1} parent=1 // pred_fallthru
      _
    // Predicated region
    $region14: #{tpu_custom_call.1} parent=1 // pred_check
      _
    $region15: #{tpu_custom_call.1} parent=1 // pred_check_branch
      %49 = sbr.rel (0) target = $region17
    $region16: #{tpu_custom_call.1} parent=1 // pred_region
      %s51 = ssub.s32 16384, 16384
      %52 = vsyncadd [#allocation10], %s51
      %s53 = sshll.u32 [#allocation9], 4
      %s54 = int_to_ptr.vmem [resolvable:$true] %s53
      %59 = dma.hbm_to_vmem [thread:$0]  %s3, 16384, %s54, [#allocation10], 128, 128, 8
    $region17: #{tpu_custom_call.1} parent=1 // pred_fallthru
      _
    // Predicated region
    $region18: #{tpu_custom_call.1} parent=1 // pred_check
      _
    $region19: #{tpu_custom_call.1} parent=1 // pred_check_branch
      %61 = sbr.rel (0) target = $region21
    $region20: #{tpu_custom_call.1} parent=1 // pred_region
      _
    $region21: #{tpu_custom_call.1} parent=1 // pred_fallthru
      _
    // Predicated region
    $region22: #{tpu_custom_call.1} parent=1 // pred_check
      _
    $region23: #{tpu_custom_call.1} parent=1 // pred_check_branch
      %63 = sbr.rel (0) target = $region25
    $region24: #{tpu_custom_call.1} parent=1 // pred_region
      %64 = dma.done [#allocation4], 8192
    $region25: #{tpu_custom_call.1} parent=1 // pred_fallthru
      _
    // Predicated region
    $region26: #{tpu_custom_call.1} parent=1 // pred_check
      _
    $region27: #{tpu_custom_call.1} parent=1 // pred_check_branch
      %66 = sbr.rel (0) target = $region29
    $region28: #{tpu_custom_call.1} parent=1 // pred_region
      %67 = dma.done [#allocation7], 16384
    $region29: #{tpu_custom_call.1} parent=1 // pred_fallthru
      _
    // Predicated region
    $region30: #{tpu_custom_call.1} parent=1 // pred_check
      _
    $region31: #{tpu_custom_call.1} parent=1 // pred_check_branch
      %69 = sbr.rel (0) target = $region33
    $region32: #{tpu_custom_call.1} parent=1 // pred_region
      %70 = dma.done [#allocation7], 128
    $region33: #{tpu_custom_call.1} parent=1 // pred_fallthru
      _
    // Predicated region
    $region34: #{tpu_custom_call.1} parent=1 // pred_check
      _
    $region35: #{tpu_custom_call.1} parent=1 // pred_check_branch
      %72 = sbr.rel (0) target = $region37
    $region36: #{tpu_custom_call.1} parent=1 // pred_region
      %73 = dma.done [#allocation10], 16384
    $region37: #{tpu_custom_call.1} parent=1 // pred_fallthru
      _
    %v74 = vld [vmem:[#allocation3] sm:$0xff]
    %v75 = vld [vmem:[#allocation3 + $0x8] sm:$0xff]
    %v76 = vld [vmem:[#allocation3 + $0x10] sm:$0xff]
    %v77 = vld [vmem:[#allocation3 + $0x18] sm:$0xff]
    %v78 = vld [vmem:[#allocation3 + $0x20] sm:$0xff]
    %v79 = vld [vmem:[#allocation3 + $0x28] sm:$0xff]
    %v80 = vld [vmem:[#allocation3 + $0x30] sm:$0xff]
    %v81 = vld [vmem:[#allocation3 + $0x38] sm:$0xff]
    %v82 = vld [vmem:[#allocation3 + $0x40] sm:$0xff]
    %v83 = vld [vmem:[#allocation3 + $0x48] sm:$0xff]
    %v84 = vld [vmem:[#allocation3 + $0x50] sm:$0xff]
    %v85 = vld [vmem:[#allocation3 + $0x58] sm:$0xff]
    %v86 = vld [vmem:[#allocation3 + $0x60] sm:$0xff]
    %v87 = vld [vmem:[#allocation3 + $0x68] sm:$0xff]
    %v88 = vld [vmem:[#allocation3 + $0x70] sm:$0xff]
    %v89 = vld [vmem:[#allocation3 + $0x78] sm:$0xff]
    %v90 = vld [vmem:[#allocation3 + $0x80] sm:$0xff]
    %v91 = vld [vmem:[#allocation3 + $0x88] sm:$0xff]
    %v92 = vld [vmem:[#allocation3 + $0x90] sm:$0xff]
    %v93 = vld [vmem:[#allocation3 + $0x98] sm:$0xff]
    %v94 = vld [vmem:[#allocation3 + $0xa0] sm:$0xff]
    %v95 = vld [vmem:[#allocation3 + $0xa8] sm:$0xff]
    %v96 = vld [vmem:[#allocation3 + $0xb0] sm:$0xff]
    %v97 = vld [vmem:[#allocation3 + $0xb8] sm:$0xff]
    %v98 = vld [vmem:[#allocation3 + $0xc0] sm:$0xff]
    %v99 = vld [vmem:[#allocation3 + $0xc8] sm:$0xff]
    %v100 = vld [vmem:[#allocation3 + $0xd0] sm:$0xff]
    %v101 = vld [vmem:[#allocation3 + $0xd8] sm:$0xff]
    %v102 = vld [vmem:[#allocation3 + $0xe0] sm:$0xff]
    %v103 = vld [vmem:[#allocation3 + $0xe8] sm:$0xff]
    %v104 = vld [vmem:[#allocation3 + $0xf0] sm:$0xff]
    %v105 = vld [vmem:[#allocation3 + $0xf8] sm:$0xff]
    %v106 = vld [vmem:[#allocation3 + $0x100] sm:$0xff]
    %v107 = vld [vmem:[#allocation3 + $0x108] sm:$0xff]
    %v108 = vld [vmem:[#allocation3 + $0x110] sm:$0xff]
    %v109 = vld [vmem:[#allocation3 + $0x118] sm:$0xff]
    %v110 = vld [vmem:[#allocation3 + $0x120] sm:$0xff]
    %v111 = vld [vmem:[#allocation3 + $0x128] sm:$0xff]
    %v112 = vld [vmem:[#allocation3 + $0x130] sm:$0xff]
    %v113 = vld [vmem:[#allocation3 + $0x138] sm:$0xff]
    %v114 = vld [vmem:[#allocation3 + $0x140] sm:$0xff]
    %v115 = vld [vmem:[#allocation3 + $0x148] sm:$0xff]
    %v116 = vld [vmem:[#allocation3 + $0x150] sm:$0xff]
    %v117 = vld [vmem:[#allocation3 + $0x158] sm:$0xff]
    %v118 = vld [vmem:[#allocation3 + $0x160] sm:$0xff]
    %v119 = vld [vmem:[#allocation3 + $0x168] sm:$0xff]
    %v120 = vld [vmem:[#allocation3 + $0x170] sm:$0xff]
    %v121 = vld [vmem:[#allocation3 + $0x178] sm:$0xff]
    %v122 = vld [vmem:[#allocation3 + $0x180] sm:$0xff]
    %v123 = vld [vmem:[#allocation3 + $0x188] sm:$0xff]
    %v124 = vld [vmem:[#allocation3 + $0x190] sm:$0xff]
    %v125 = vld [vmem:[#allocation3 + $0x198] sm:$0xff]
    %v126 = vld [vmem:[#allocation3 + $0x1a0] sm:$0xff]
    %v127 = vld [vmem:[#allocation3 + $0x1a8] sm:$0xff]
    %v128 = vld [vmem:[#allocation3 + $0x1b0] sm:$0xff]
    %v129 = vld [vmem:[#allocation3 + $0x1b8] sm:$0xff]
    %v130 = vld [vmem:[#allocation3 + $0x1c0] sm:$0xff]
    %v131 = vld [vmem:[#allocation3 + $0x1c8] sm:$0xff]
    %v132 = vld [vmem:[#allocation3 + $0x1d0] sm:$0xff]
    %v133 = vld [vmem:[#allocation3 + $0x1d8] sm:$0xff]
    %v134 = vld [vmem:[#allocation3 + $0x1e0] sm:$0xff]
    %v135 = vld [vmem:[#allocation3 + $0x1e8] sm:$0xff]
    %v136 = vld [vmem:[#allocation3 + $0x1f0] sm:$0xff]
    %v137 = vld [vmem:[#allocation3 + $0x1f8] sm:$0xff]
    %v138 = vpack.c.bf16 %v76, %v74
    %v139 = vpack.c.bf16 %v77, %v75
    %v140 = vpack.c.bf16 %v80, %v78
    %v141 = vpack.c.bf16 %v81, %v79
    %v142 = vpack.c.bf16 %v84, %v82
    %v143 = vpack.c.bf16 %v85, %v83
    %v144 = vpack.c.bf16 %v88, %v86
    %v145 = vpack.c.bf16 %v89, %v87
    %v146 = vpack.c.bf16 %v92, %v90
    %v147 = vpack.c.bf16 %v93, %v91
    %v148 = vpack.c.bf16 %v96, %v94
    %v149 = vpack.c.bf16 %v97, %v95
    %v150 = vpack.c.bf16 %v100, %v98
    %v151 = vpack.c.bf16 %v101, %v99
    %v152 = vpack.c.bf16 %v104, %v102
    %v153 = vpack.c.bf16 %v105, %v103
    %v154 = vpack.c.bf16 %v108, %v106
    %v155 = vpack.c.bf16 %v109, %v107
    %v156 = vpack.c.bf16 %v112, %v110
    %v157 = vpack.c.bf16 %v113, %v111
    %v158 = vpack.c.bf16 %v116, %v114
    %v159 = vpack.c.bf16 %v117, %v115
    %v160 = vpack.c.bf16 %v120, %v118
    %v161 = vpack.c.bf16 %v121, %v119
    %v162 = vpack.c.bf16 %v124, %v122
    %v163 = vpack.c.bf16 %v125, %v123
    %v164 = vpack.c.bf16 %v128, %v126
    %v165 = vpack.c.bf16 %v129, %v127
    %v166 = vpack.c.bf16 %v132, %v130
    %v167 = vpack.c.bf16 %v133, %v131
    %v168 = vpack.c.bf16 %v136, %v134
    %v169 = vpack.c.bf16 %v137, %v135
    %170 = vst [vmem:[#allocation2] sm:$0xff] 0.0
    %171 = vst [vmem:[#allocation2 + $0x8] sm:$0xff] 0.0
    %172 = vst [vmem:[#allocation2 + $0x10] sm:$0xff] 0.0
    %173 = vst [vmem:[#allocation2 + $0x18] sm:$0xff] 0.0
    %174 = vst [vmem:[#allocation2 + $0x20] sm:$0xff] 0.0
    %175 = vst [vmem:[#allocation2 + $0x28] sm:$0xff] 0.0
    %176 = vst [vmem:[#allocation2 + $0x30] sm:$0xff] 0.0
    %177 = vst [vmem:[#allocation2 + $0x38] sm:$0xff] 0.0
    %178 = vst [vmem:[#allocation2 + $0x40] sm:$0xff] 0.0
    %179 = vst [vmem:[#allocation2 + $0x48] sm:$0xff] 0.0
    %180 = vst [vmem:[#allocation2 + $0x50] sm:$0xff] 0.0
    %181 = vst [vmem:[#allocation2 + $0x58] sm:$0xff] 0.0
    %182 = vst [vmem:[#allocation2 + $0x60] sm:$0xff] 0.0
    %183 = vst [vmem:[#allocation2 + $0x68] sm:$0xff] 0.0
    %184 = vst [vmem:[#allocation2 + $0x70] sm:$0xff] 0.0
    %185 = vst [vmem:[#allocation2 + $0x78] sm:$0xff] 0.0
    %186 = vst [vmem:[#allocation2 + $0x80] sm:$0xff] 0.0
    %187 = vst [vmem:[#allocation2 + $0x88] sm:$0xff] 0.0
    %188 = vst [vmem:[#allocation2 + $0x90] sm:$0xff] 0.0
    %189 = vst [vmem:[#allocation2 + $0x98] sm:$0xff] 0.0
    %190 = vst [vmem:[#allocation2 + $0xa0] sm:$0xff] 0.0
    %191 = vst [vmem:[#allocation2 + $0xa8] sm:$0xff] 0.0
    %192 = vst [vmem:[#allocation2 + $0xb0] sm:$0xff] 0.0
    %193 = vst [vmem:[#allocation2 + $0xb8] sm:$0xff] 0.0
    %194 = vst [vmem:[#allocation2 + $0xc0] sm:$0xff] 0.0
    %195 = vst [vmem:[#allocation2 + $0xc8] sm:$0xff] 0.0
    %196 = vst [vmem:[#allocation2 + $0xd0] sm:$0xff] 0.0
    %197 = vst [vmem:[#allocation2 + $0xd8] sm:$0xff] 0.0
    %198 = vst [vmem:[#allocation2 + $0xe0] sm:$0xff] 0.0
    %199 = vst [vmem:[#allocation2 + $0xe8] sm:$0xff] 0.0
    %200 = vst [vmem:[#allocation2 + $0xf0] sm:$0xff] 0.0
    %201 = vst [vmem:[#allocation2 + $0xf8] sm:$0xff] 0.0
    %202 = vst [vmem:[#allocation2 + $0x100] sm:$0xff] 0.0
    %203 = vst [vmem:[#allocation2 + $0x108] sm:$0xff] 0.0
    %204 = vst [vmem:[#allocation2 + $0x110] sm:$0xff] 0.0
    %205 = vst [vmem:[#allocation2 + $0x118] sm:$0xff] 0.0
    %206 = vst [vmem:[#allocation2 + $0x120] sm:$0xff] 0.0
    %207 = vst [vmem:[#allocation2 + $0x128] sm:$0xff] 0.0
    %208 = vst [vmem:[#allocation2 + $0x130] sm:$0xff] 0.0
    %209 = vst [vmem:[#allocation2 + $0x138] sm:$0xff] 0.0
    %210 = vst [vmem:[#allocation2 + $0x140] sm:$0xff] 0.0
    %211 = vst [vmem:[#allocation2 + $0x148] sm:$0xff] 0.0
    %212 = vst [vmem:[#allocation2 + $0x150] sm:$0xff] 0.0
    %213 = vst [vmem:[#allocation2 + $0x158] sm:$0xff] 0.0
    %214 = vst [vmem:[#allocation2 + $0x160] sm:$0xff] 0.0
    %215 = vst [vmem:[#allocation2 + $0x168] sm:$0xff] 0.0
    %216 = vst [vmem:[#allocation2 + $0x170] sm:$0xff] 0.0
    %217 = vst [vmem:[#allocation2 + $0x178] sm:$0xff] 0.0
    %218 = vst [vmem:[#allocation2 + $0x180] sm:$0xff] 0.0
    %219 = vst [vmem:[#allocation2 + $0x188] sm:$0xff] 0.0
    %220 = vst [vmem:[#allocation2 + $0x190] sm:$0xff] 0.0
    %221 = vst [vmem:[#allocation2 + $0x198] sm:$0xff] 0.0
    %222 = vst [vmem:[#allocation2 + $0x1a0] sm:$0xff] 0.0
    %223 = vst [vmem:[#allocation2 + $0x1a8] sm:$0xff] 0.0
    %224 = vst [vmem:[#allocation2 + $0x1b0] sm:$0xff] 0.0
    %225 = vst [vmem:[#allocation2 + $0x1b8] sm:$0xff] 0.0
    %226 = vst [vmem:[#allocation2 + $0x1c0] sm:$0xff] 0.0
    %227 = vst [vmem:[#allocation2 + $0x1c8] sm:$0xff] 0.0
    %228 = vst [vmem:[#allocation2 + $0x1d0] sm:$0xff] 0.0
    %229 = vst [vmem:[#allocation2 + $0x1d8] sm:$0xff] 0.0
    %230 = vst [vmem:[#allocation2 + $0x1e0] sm:$0xff] 0.0
    %231 = vst [vmem:[#allocation2 + $0x1e8] sm:$0xff] 0.0
    %232 = vst [vmem:[#allocation2 + $0x1f0] sm:$0xff] 0.0
    %233 = vst [vmem:[#allocation2 + $0x1f8] sm:$0xff] 0.0
    %v234 = vld [vmem:[#allocation6] sm:$0xff]
    %v235 = vld [vmem:[#allocation6 + $0x8] sm:$0xff]
    %v236 = vld [vmem:[#allocation6 + $0x20] sm:$0xff]
    %v237 = vld [vmem:[#allocation6 + $0x28] sm:$0xff]
    %v238 = vld [vmem:[#allocation6 + $0x40] sm:$0xff]
    %v239 = vld [vmem:[#allocation6 + $0x48] sm:$0xff]
    %v240 = vld [vmem:[#allocation6 + $0x60] sm:$0xff]
    %v241 = vld [vmem:[#allocation6 + $0x68] sm:$0xff]
    %v242 = vld [vmem:[#allocation6 + $0x80] sm:$0xff]
    %v243 = vld [vmem:[#allocation6 + $0x88] sm:$0xff]
    %v244 = vld [vmem:[#allocation6 + $0xa0] sm:$0xff]
    %v245 = vld [vmem:[#allocation6 + $0xa8] sm:$0xff]
    %v246 = vld [vmem:[#allocation6 + $0xc0] sm:$0xff]
    %v247 = vld [vmem:[#allocation6 + $0xc8] sm:$0xff]
    %v248 = vld [vmem:[#allocation6 + $0xe0] sm:$0xff]
    %v249 = vld [vmem:[#allocation6 + $0xe8] sm:$0xff]
    %v250 = vld [vmem:[#allocation6 + $0x100] sm:$0xff]
    %v251 = vld [vmem:[#allocation6 + $0x108] sm:$0xff]
    %v252 = vld [vmem:[#allocation6 + $0x120] sm:$0xff]
    %v253 = vld [vmem:[#allocation6 + $0x128] sm:$0xff]
    %v254 = vld [vmem:[#allocation6 + $0x140] sm:$0xff]
    %v255 = vld [vmem:[#allocation6 + $0x148] sm:$0xff]
    %v256 = vld [vmem:[#allocation6 + $0x160] sm:$0xff]
    %v257 = vld [vmem:[#allocation6 + $0x168] sm:$0xff]
    %v258 = vld [vmem:[#allocation6 + $0x180] sm:$0xff]
    %v259 = vld [vmem:[#allocation6 + $0x188] sm:$0xff]
    %v260 = vld [vmem:[#allocation6 + $0x1a0] sm:$0xff]
    %v261 = vld [vmem:[#allocation6 + $0x1a8] sm:$0xff]
    %v262 = vld [vmem:[#allocation6 + $0x1c0] sm:$0xff]
    %v263 = vld [vmem:[#allocation6 + $0x1c8] sm:$0xff]
    %v264 = vld [vmem:[#allocation6 + $0x1e0] sm:$0xff]
    %v265 = vld [vmem:[#allocation6 + $0x1e8] sm:$0xff]
    %v266 = vld [vmem:[#allocation6 + $0x200] sm:$0xff]
    %v267 = vld [vmem:[#allocation6 + $0x208] sm:$0xff]
    %v268 = vld [vmem:[#allocation6 + $0x220] sm:$0xff]
    %v269 = vld [vmem:[#allocation6 + $0x228] sm:$0xff]
    %v270 = vld [vmem:[#allocation6 + $0x240] sm:$0xff]
    %v271 = vld [vmem:[#allocation6 + $0x248] sm:$0xff]
    %v272 = vld [vmem:[#allocation6 + $0x260] sm:$0xff]
    %v273 = vld [vmem:[#allocation6 + $0x268] sm:$0xff]
    %v274 = vld [vmem:[#allocation6 + $0x280] sm:$0xff]
    %v275 = vld [vmem:[#allocation6 + $0x288] sm:$0xff]
    %v276 = vld [vmem:[#allocation6 + $0x2a0] sm:$0xff]
    %v277 = vld [vmem:[#allocation6 + $0x2a8] sm:$0xff]
    %v278 = vld [vmem:[#allocation6 + $0x2c0] sm:$0xff]
    %v279 = vld [vmem:[#allocation6 + $0x2c8] sm:$0xff]
    %v280 = vld [vmem:[#allocation6 + $0x2e0] sm:$0xff]
    %v281 = vld [vmem:[#allocation6 + $0x2e8] sm:$0xff]
    %v282 = vld [vmem:[#allocation6 + $0x300] sm:$0xff]
    %v283 = vld [vmem:[#allocation6 + $0x308] sm:$0xff]
    %v284 = vld [vmem:[#allocation6 + $0x320] sm:$0xff]
    %v285 = vld [vmem:[#allocation6 + $0x328] sm:$0xff]
    %v286 = vld [vmem:[#allocation6 + $0x340] sm:$0xff]
    %v287 = vld [vmem:[#allocation6 + $0x348] sm:$0xff]
    %v288 = vld [vmem:[#allocation6 + $0x360] sm:$0xff]
    %v289 = vld [vmem:[#allocation6 + $0x368] sm:$0xff]
    %v290 = vld [vmem:[#allocation6 + $0x380] sm:$0xff]
    %v291 = vld [vmem:[#allocation6 + $0x388] sm:$0xff]
    %v292 = vld [vmem:[#allocation6 + $0x3a0] sm:$0xff]
    %v293 = vld [vmem:[#allocation6 + $0x3a8] sm:$0xff]
    %v294 = vld [vmem:[#allocation6 + $0x3c0] sm:$0xff]
    %v295 = vld [vmem:[#allocation6 + $0x3c8] sm:$0xff]
    %v296 = vld [vmem:[#allocation6 + $0x3e0] sm:$0xff]
    %v297 = vld [vmem:[#allocation6 + $0x3e8] sm:$0xff]
    %v298 = vld [vmem:[#allocation8] sm:$0xf]
    %v300 = vlaneseq
    %v301 = vshrl.u32 %v300, 7
    %v302 = vsub.s32 0, %v301
    %v303 = vrot.slane %v298, %v302
    %v304 = vlaneseq
    %v305 = vshrl.u32 %v304, 7
    %v306 = vsub.s32 1, %v305
    %v307 = vrot.slane %v298, %v306
    %v308 = vlaneseq
    %v309 = vshrl.u32 %v308, 7
    %v310 = vsub.s32 2, %v309
    %v311 = vrot.slane %v298, %v310
    %v312 = vlaneseq
    %v313 = vshrl.u32 %v312, 7
    %v314 = vsub.s32 3, %v313
    %v315 = vrot.slane %v298, %v314
    %v384 = vunpack.c.l.b16 %v234
    %v385 = vunpack.c.h.b16 %v234
    %v386 = vunpack.c.l.b16 %v235
    %v387 = vunpack.c.h.b16 %v235
    %v388 = vunpack.c.l.b16 %v236
    %v389 = vunpack.c.h.b16 %v236
    %v390 = vunpack.c.l.b16 %v237
    %v391 = vunpack.c.h.b16 %v237
    %v392 = vunpack.c.l.b16 %v238
    %v393 = vunpack.c.h.b16 %v238
    %v394 = vunpack.c.l.b16 %v239
    %v395 = vunpack.c.h.b16 %v239
    %v396 = vunpack.c.l.b16 %v240
    %v397 = vunpack.c.h.b16 %v240
    %v398 = vunpack.c.l.b16 %v241
    %v399 = vunpack.c.h.b16 %v241
    %v400 = vunpack.c.l.b16 %v242
    %v401 = vunpack.c.h.b16 %v242
    %v402 = vunpack.c.l.b16 %v243
    %v403 = vunpack.c.h.b16 %v243
    %v404 = vunpack.c.l.b16 %v244
    %v405 = vunpack.c.h.b16 %v244
    %v406 = vunpack.c.l.b16 %v245
    %v407 = vunpack.c.h.b16 %v245
    %v408 = vunpack.c.l.b16 %v246
    %v409 = vunpack.c.h.b16 %v246
    %v410 = vunpack.c.l.b16 %v247
    %v411 = vunpack.c.h.b16 %v247
    %v412 = vunpack.c.l.b16 %v248
    %v413 = vunpack.c.h.b16 %v248
    %v414 = vunpack.c.l.b16 %v249
    %v415 = vunpack.c.h.b16 %v249
    %v416 = vunpack.c.l.b16 %v250
    %v417 = vunpack.c.h.b16 %v250
    %v418 = vunpack.c.l.b16 %v251
    %v419 = vunpack.c.h.b16 %v251
    %v420 = vunpack.c.l.b16 %v252
    %v421 = vunpack.c.h.b16 %v252
    %v422 = vunpack.c.l.b16 %v253
    %v423 = vunpack.c.h.b16 %v253
    %v424 = vunpack.c.l.b16 %v254
    %v425 = vunpack.c.h.b16 %v254
    %v426 = vunpack.c.l.b16 %v255
    %v427 = vunpack.c.h.b16 %v255
    %v428 = vunpack.c.l.b16 %v256
    %v429 = vunpack.c.h.b16 %v256
    %v430 = vunpack.c.l.b16 %v257
    %v431 = vunpack.c.h.b16 %v257
    %v432 = vunpack.c.l.b16 %v258
    %v433 = vunpack.c.h.b16 %v258
    %v434 = vunpack.c.l.b16 %v259
    %v435 = vunpack.c.h.b16 %v259
    %v436 = vunpack.c.l.b16 %v260
    %v437 = vunpack.c.h.b16 %v260
    %v438 = vunpack.c.l.b16 %v261
    %v439 = vunpack.c.h.b16 %v261
    %v440 = vunpack.c.l.b16 %v262
    %v441 = vunpack.c.h.b16 %v262
    %v442 = vunpack.c.l.b16 %v263
    %v443 = vunpack.c.h.b16 %v263
    %v444 = vunpack.c.l.b16 %v264
    %v445 = vunpack.c.h.b16 %v264
    %v446 = vunpack.c.l.b16 %v265
    %v447 = vunpack.c.h.b16 %v265
    %v448 = vunpack.c.l.b16 %v266
    %v449 = vunpack.c.h.b16 %v266
    %v450 = vunpack.c.l.b16 %v267
    %v451 = vunpack.c.h.b16 %v267
    %v452 = vunpack.c.l.b16 %v268
    %v453 = vunpack.c.h.b16 %v268
    %v454 = vunpack.c.l.b16 %v269
    %v455 = vunpack.c.h.b16 %v269
    %v456 = vunpack.c.l.b16 %v270
    %v457 = vunpack.c.h.b16 %v270
    %v458 = vunpack.c.l.b16 %v271
    %v459 = vunpack.c.h.b16 %v271
    %v460 = vunpack.c.l.b16 %v272
    %v461 = vunpack.c.h.b16 %v272
    %v462 = vunpack.c.l.b16 %v273
    %v463 = vunpack.c.h.b16 %v273
    %v464 = vunpack.c.l.b16 %v274
    %v465 = vunpack.c.h.b16 %v274
    %v466 = vunpack.c.l.b16 %v275
    %v467 = vunpack.c.h.b16 %v275
    %v468 = vunpack.c.l.b16 %v276
    %v469 = vunpack.c.h.b16 %v276
    %v470 = vunpack.c.l.b16 %v277
    %v471 = vunpack.c.h.b16 %v277
    %v472 = vunpack.c.l.b16 %v278
    %v473 = vunpack.c.h.b16 %v278
    %v474 = vunpack.c.l.b16 %v279
    %v475 = vunpack.c.h.b16 %v279
    %v476 = vunpack.c.l.b16 %v280
    %v477 = vunpack.c.h.b16 %v280
    %v478 = vunpack.c.l.b16 %v281
    %v479 = vunpack.c.h.b16 %v281
    %v480 = vunpack.c.l.b16 %v282
    %v481 = vunpack.c.h.b16 %v282
    %v482 = vunpack.c.l.b16 %v283
    %v483 = vunpack.c.h.b16 %v283
    %v484 = vunpack.c.l.b16 %v284
    %v485 = vunpack.c.h.b16 %v284
    %v486 = vunpack.c.l.b16 %v285
    %v487 = vunpack.c.h.b16 %v285
    %v488 = vunpack.c.l.b16 %v286
    %v489 = vunpack.c.h.b16 %v286
    %v490 = vunpack.c.l.b16 %v287
    %v491 = vunpack.c.h.b16 %v287
    %v492 = vunpack.c.l.b16 %v288
    %v493 = vunpack.c.h.b16 %v288
    %v494 = vunpack.c.l.b16 %v289
    %v495 = vunpack.c.h.b16 %v289
    %v496 = vunpack.c.l.b16 %v290
    %v497 = vunpack.c.h.b16 %v290
    %v498 = vunpack.c.l.b16 %v291
    %v499 = vunpack.c.h.b16 %v291
    %v500 = vunpack.c.l.b16 %v292
    %v501 = vunpack.c.h.b16 %v292
    %v502 = vunpack.c.l.b16 %v293
    %v503 = vunpack.c.h.b16 %v293
    %v504 = vunpack.c.l.b16 %v294
    %v505 = vunpack.c.h.b16 %v294
    %v506 = vunpack.c.l.b16 %v295
    %v507 = vunpack.c.h.b16 %v295
    %v508 = vunpack.c.l.b16 %v296
    %v509 = vunpack.c.h.b16 %v296
    %v510 = vunpack.c.l.b16 %v297
    %v511 = vunpack.c.h.b16 %v297
    %v512 = vpack.c.b16 %v388, %v384
    %v513 = vpack.c.b16 %v389, %v385
    %v514 = vpack.c.b16 %v390, %v386
    %v515 = vpack.c.b16 %v391, %v387
    %v516 = vpack.c.b16 %v396, %v392
    %v517 = vpack.c.b16 %v397, %v393
    %v518 = vpack.c.b16 %v398, %v394
    %v519 = vpack.c.b16 %v399, %v395
    %v520 = vpack.c.b16 %v404, %v400
    %v521 = vpack.c.b16 %v405, %v401
    %v522 = vpack.c.b16 %v406, %v402
    %v523 = vpack.c.b16 %v407, %v403
    %v524 = vpack.c.b16 %v412, %v408
    %v525 = vpack.c.b16 %v413, %v409
    %v526 = vpack.c.b16 %v414, %v410
    %v527 = vpack.c.b16 %v415, %v411
    %v528 = vpack.c.b16 %v420, %v416
    %v529 = vpack.c.b16 %v421, %v417
    %v530 = vpack.c.b16 %v422, %v418
    %v531 = vpack.c.b16 %v423, %v419
    %v532 = vpack.c.b16 %v428, %v424
    %v533 = vpack.c.b16 %v429, %v425
    %v534 = vpack.c.b16 %v430, %v426
    %v535 = vpack.c.b16 %v431, %v427
    %v536 = vpack.c.b16 %v436, %v432
    %v537 = vpack.c.b16 %v437, %v433
    %v538 = vpack.c.b16 %v438, %v434
    %v539 = vpack.c.b16 %v439, %v435
    %v540 = vpack.c.b16 %v444, %v440
    %v541 = vpack.c.b16 %v445, %v441
    %v542 = vpack.c.b16 %v446, %v442
    %v543 = vpack.c.b16 %v447, %v443
    %v544 = vpack.c.b16 %v452, %v448
    %v545 = vpack.c.b16 %v453, %v449
    %v546 = vpack.c.b16 %v454, %v450
    %v547 = vpack.c.b16 %v455, %v451
    %v548 = vpack.c.b16 %v460, %v456
    %v549 = vpack.c.b16 %v461, %v457
    %v550 = vpack.c.b16 %v462, %v458
    %v551 = vpack.c.b16 %v463, %v459
    %v552 = vpack.c.b16 %v468, %v464
    %v553 = vpack.c.b16 %v469, %v465
    %v554 = vpack.c.b16 %v470, %v466
    %v555 = vpack.c.b16 %v471, %v467
    %v556 = vpack.c.b16 %v476, %v472
    %v557 = vpack.c.b16 %v477, %v473
    %v558 = vpack.c.b16 %v478, %v474
    %v559 = vpack.c.b16 %v479, %v475
    %v560 = vpack.c.b16 %v484, %v480
    %v561 = vpack.c.b16 %v485, %v481
    %v562 = vpack.c.b16 %v486, %v482
    %v563 = vpack.c.b16 %v487, %v483
    %v564 = vpack.c.b16 %v492, %v488
    %v565 = vpack.c.b16 %v493, %v489
    %v566 = vpack.c.b16 %v494, %v490
    %v567 = vpack.c.b16 %v495, %v491
    %v568 = vpack.c.b16 %v500, %v496
    %v569 = vpack.c.b16 %v501, %v497
    %v570 = vpack.c.b16 %v502, %v498
    %v571 = vpack.c.b16 %v503, %v499
    %v572 = vpack.c.b16 %v508, %v504
    %v573 = vpack.c.b16 %v509, %v505
    %v574 = vpack.c.b16 %v510, %v506
    %v575 = vpack.c.b16 %v511, %v507
    %640 = vmatprep.subr.bf16.mxu0 %v513
    %641 = vmatpush1.bf16.msra.mxu0 %v512
    %642 = vmatprep.subr.bf16.mxu0 %v517
    %643 = vmatpush1.bf16.msra.mxu0 %v516
    %644 = vmatprep.subr.bf16.mxu0 %v521
    %645 = vmatpush1.bf16.msra.mxu0 %v520
    %646 = vmatprep.subr.bf16.mxu0 %v525
    %647 = vmatpush1.bf16.msra.mxu0 %v524
    %648 = vmatprep.subr.bf16.mxu0 %v529
    %649 = vmatpush1.bf16.msra.mxu0 %v528
    %650 = vmatprep.subr.bf16.mxu0 %v533
    %651 = vmatpush1.bf16.msra.mxu0 %v532
    %652 = vmatprep.subr.bf16.mxu0 %v537
    %653 = vmatpush1.bf16.msra.mxu0 %v536
    %654 = vmatprep.subr.bf16.mxu0 %v541
    %655 = vmatpush1.bf16.msra.mxu0 %v540
    %656 = vmatprep.subr.bf16.mxu0 %v545
    %657 = vmatpush1.bf16.msra.mxu0 %v544
    %658 = vmatprep.subr.bf16.mxu0 %v549
    %659 = vmatpush1.bf16.msra.mxu0 %v548
    %660 = vmatprep.subr.bf16.mxu0 %v553
    %661 = vmatpush1.bf16.msra.mxu0 %v552
    %662 = vmatprep.subr.bf16.mxu0 %v557
    %663 = vmatpush1.bf16.msra.mxu0 %v556
    %664 = vmatprep.subr.bf16.mxu0 %v561
    %665 = vmatpush1.bf16.msra.mxu0 %v560
    %666 = vmatprep.subr.bf16.mxu0 %v565
    %667 = vmatpush1.bf16.msra.mxu0 %v564
    %668 = vmatprep.subr.bf16.mxu0 %v569
    %669 = vmatpush1.bf16.msra.mxu0 %v568
    %670 = vmatprep.subr.bf16.mxu0 %v573
    %671 = vmatpush1.bf16.msra.mxu0 %v572
    %672 = vmatprep.mubr.bf16.mxu0 %v139
    %673 = vmatmul.mubr.bf16.gmra.mrb[0].mxu0 %v138
    %v674 = vpop.f32.mrb[0].mxu0
    %v675 = vadd.f32 %v303, %v674
    %v676 = vpop.f32.mrb[0].mxu0
    %v677 = vadd.f32 %v307, %v676
    %v678 = vpop.f32.mrb[0].mxu0
    %v679 = vadd.f32 %v303, %v678
    %v680 = vpop.f32.mrb[0].mxu0
    %v681 = vadd.f32 %v307, %v680
    %682 = vmatprep.mubr.bf16.mxu0 %v141
    %683 = vmatmul.mubr.bf16.gmra.mrb[0].mxu0 %v140
    %v684 = vpop.f32.mrb[0].mxu0
    %v685 = vadd.f32 %v303, %v684
    %v686 = vpop.f32.mrb[0].mxu0
    %v687 = vadd.f32 %v307, %v686
    %v688 = vpop.f32.mrb[0].mxu0
    %v689 = vadd.f32 %v303, %v688
    %v690 = vpop.f32.mrb[0].mxu0
    %v691 = vadd.f32 %v307, %v690
    %692 = vmatprep.mubr.bf16.mxu0 %v143
    %693 = vmatmul.mubr.bf16.gmra.mrb[0].mxu0 %v142
    %v694 = vpop.f32.mrb[0].mxu0
    %v695 = vadd.f32 %v303, %v694
    %v696 = vpop.f32.mrb[0].mxu0
    %v697 = vadd.f32 %v307, %v696
    %v698 = vpop.f32.mrb[0].mxu0
    %v699 = vadd.f32 %v303, %v698
    %v700 = vpop.f32.mrb[0].mxu0
    %v701 = vadd.f32 %v307, %v700
    %702 = vmatprep.mubr.bf16.mxu0 %v145
    %703 = vmatmul.mubr.bf16.gmra.mrb[0].mxu0 %v144
    %v704 = vpop.f32.mrb[0].mxu0
    %v705 = vadd.f32 %v303, %v704
    %v706 = vpop.f32.mrb[0].mxu0
    %v707 = vadd.f32 %v307, %v706
    %v708 = vpop.f32.mrb[0].mxu0
    %v709 = vadd.f32 %v303, %v708
    %v710 = vpop.f32.mrb[0].mxu0
    %v711 = vadd.f32 %v307, %v710
    %712 = vmatprep.mubr.bf16.mxu0 %v147
    %713 = vmatmul.mubr.bf16.gmra.mrb[0].mxu0 %v146
    %v714 = vpop.f32.mrb[0].mxu0
    %v715 = vadd.f32 %v303, %v714
    %v716 = vpop.f32.mrb[0].mxu0
    %v717 = vadd.f32 %v307, %v716
    %v718 = vpop.f32.mrb[0].mxu0
    %v719 = vadd.f32 %v303, %v718
    %v720 = vpop.f32.mrb[0].mxu0
    %v721 = vadd.f32 %v307, %v720
    %722 = vmatprep.mubr.bf16.mxu0 %v149
    %723 = vmatmul.mubr.bf16.gmra.mrb[0].mxu0 %v148
    %v724 = vpop.f32.mrb[0].mxu0
    %v725 = vadd.f32 %v303, %v724
    %v726 = vpop.f32.mrb[0].mxu0
    %v727 = vadd.f32 %v307, %v726
    %v728 = vpop.f32.mrb[0].mxu0
    %v729 = vadd.f32 %v303, %v728
    %v730 = vpop.f32.mrb[0].mxu0
    %v731 = vadd.f32 %v307, %v730
    %732 = vmatprep.mubr.bf16.mxu0 %v151
    %733 = vmatmul.mubr.bf16.gmra.mrb[0].mxu0 %v150
    %v734 = vpop.f32.mrb[0].mxu0
    %v735 = vadd.f32 %v303, %v734
    %v736 = vpop.f32.mrb[0].mxu0
    %v737 = vadd.f32 %v307, %v736
    %v738 = vpop.f32.mrb[0].mxu0
    %v739 = vadd.f32 %v303, %v738
    %v740 = vpop.f32.mrb[0].mxu0
    %v741 = vadd.f32 %v307, %v740
    %742 = vmatprep.mubr.bf16.mxu0 %v153
    %743 = vmatmul.mubr.bf16.gmra.mrb[0].mxu0 %v152
    %v744 = vpop.f32.mrb[0].mxu0
    %v745 = vadd.f32 %v303, %v744
    %v746 = vpop.f32.mrb[0].mxu0
    %v747 = vadd.f32 %v307, %v746
    %v748 = vpop.f32.mrb[0].mxu0
    %v749 = vadd.f32 %v303, %v748
    %v750 = vpop.f32.mrb[0].mxu0
    %v751 = vadd.f32 %v307, %v750
    %752 = vmatprep.mubr.bf16.mxu0 %v155
    %753 = vmatmul.mubr.bf16.gmra.mrb[0].mxu0 %v154
    %v754 = vpop.f32.mrb[0].mxu0
    %v755 = vadd.f32 %v303, %v754
    %v756 = vpop.f32.mrb[0].mxu0
    %v757 = vadd.f32 %v307, %v756
    %v758 = vpop.f32.mrb[0].mxu0
    %v759 = vadd.f32 %v303, %v758
    %v760 = vpop.f32.mrb[0].mxu0
    %v761 = vadd.f32 %v307, %v760
    %762 = vmatprep.mubr.bf16.mxu0 %v157
    %763 = vmatmul.mubr.bf16.gmra.mrb[0].mxu0 %v156
    %v764 = vpop.f32.mrb[0].mxu0
    %v765 = vadd.f32 %v303, %v764
    %v766 = vpop.f32.mrb[0].mxu0
    %v767 = vadd.f32 %v307, %v766
    %v768 = vpop.f32.mrb[0].mxu0
    %v769 = vadd.f32 %v303, %v768
    %v770 = vpop.f32.mrb[0].mxu0
    %v771 = vadd.f32 %v307, %v770
    %772 = vmatprep.mubr.bf16.mxu0 %v159
    %773 = vmatmul.mubr.bf16.gmra.mrb[0].mxu0 %v158
    %v774 = vpop.f32.mrb[0].mxu0
    %v775 = vadd.f32 %v303, %v774
    %v776 = vpop.f32.mrb[0].mxu0
    %v777 = vadd.f32 %v307, %v776
    %v778 = vpop.f32.mrb[0].mxu0
    %v779 = vadd.f32 %v303, %v778
    %v780 = vpop.f32.mrb[0].mxu0
    %v781 = vadd.f32 %v307, %v780
    %782 = vmatprep.mubr.bf16.mxu0 %v161
    %783 = vmatmul.mubr.bf16.gmra.mrb[0].mxu0 %v160
    %v784 = vpop.f32.mrb[0].mxu0
    %v785 = vadd.f32 %v303, %v784
    %v786 = vpop.f32.mrb[0].mxu0
    %v787 = vadd.f32 %v307, %v786
    %v788 = vpop.f32.mrb[0].mxu0
    %v789 = vadd.f32 %v303, %v788
    %v790 = vpop.f32.mrb[0].mxu0
    %v791 = vadd.f32 %v307, %v790
    %792 = vmatprep.mubr.bf16.mxu0 %v163
    %793 = vmatmul.mubr.bf16.gmra.mrb[0].mxu0 %v162
    %v794 = vpop.f32.mrb[0].mxu0
    %v795 = vadd.f32 %v303, %v794
    %v796 = vpop.f32.mrb[0].mxu0
    %v797 = vadd.f32 %v307, %v796
    %v798 = vpop.f32.mrb[0].mxu0
    %v799 = vadd.f32 %v303, %v798
    %v800 = vpop.f32.mrb[0].mxu0
    %v801 = vadd.f32 %v307, %v800
    %802 = vmatprep.mubr.bf16.mxu0 %v165
    %803 = vmatmul.mubr.bf16.gmra.mrb[0].mxu0 %v164
    %v804 = vpop.f32.mrb[0].mxu0
    %v805 = vadd.f32 %v303, %v804
    %v806 = vpop.f32.mrb[0].mxu0
    %v807 = vadd.f32 %v307, %v806
    %v808 = vpop.f32.mrb[0].mxu0
    %v809 = vadd.f32 %v303, %v808
    %v810 = vpop.f32.mrb[0].mxu0
    %v811 = vadd.f32 %v307, %v810
    %812 = vmatprep.mubr.bf16.mxu0 %v167
    %813 = vmatmul.mubr.bf16.gmra.mrb[0].mxu0 %v166
    %v814 = vpop.f32.mrb[0].mxu0
    %v815 = vadd.f32 %v303, %v814
    %v816 = vpop.f32.mrb[0].mxu0
    %v817 = vadd.f32 %v307, %v816
    %v818 = vpop.f32.mrb[0].mxu0
    %v819 = vadd.f32 %v303, %v818
    %v820 = vpop.f32.mrb[0].mxu0
    %v821 = vadd.f32 %v307, %v820
    %822 = vmatprep.mubr.bf16.mxu0 %v169
    %823 = vmatmul.mubr.bf16.gmra.mrb[0].mxu0 %v168
    %v824 = vpop.f32.mrb[0].mxu0
    %v825 = vadd.f32 %v303, %v824
    %v826 = vpop.f32.mrb[0].mxu0
    %v827 = vadd.f32 %v307, %v826
    %v828 = vpop.f32.mrb[0].mxu0
    %v829 = vadd.f32 %v303, %v828
    %v830 = vpop.f32.mrb[0].mxu0
    %v831 = vadd.f32 %v307, %v830
    %832 = vdwg.mxu0
    %833 = vmatprep.subr.bf16.mxu0 %v515
    %834 = vmatpush1.bf16.msra.mxu0 %v514
    %835 = vmatprep.subr.bf16.mxu0 %v519
    %836 = vmatpush1.bf16.msra.mxu0 %v518
    %837 = vmatprep.subr.bf16.mxu0 %v523
    %838 = vmatpush1.bf16.msra.mxu0 %v522
    %839 = vmatprep.subr.bf16.mxu0 %v527
    %840 = vmatpush1.bf16.msra.mxu0 %v526
    %841 = vmatprep.subr.bf16.mxu0 %v531
    %842 = vmatpush1.bf16.msra.mxu0 %v530
    %843 = vmatprep.subr.bf16.mxu0 %v535
    %844 = vmatpush1.bf16.msra.mxu0 %v534
    %845 = vmatprep.subr.bf16.mxu0 %v539
    %846 = vmatpush1.bf16.msra.mxu0 %v538
    %847 = vmatprep.subr.bf16.mxu0 %v543
    %848 = vmatpush1.bf16.msra.mxu0 %v542
    %849 = vmatprep.subr.bf16.mxu0 %v547
    %850 = vmatpush1.bf16.msra.mxu0 %v546
    %851 = vmatprep.subr.bf16.mxu0 %v551
    %852 = vmatpush1.bf16.msra.mxu0 %v550
    %853 = vmatprep.subr.bf16.mxu0 %v555
    %854 = vmatpush1.bf16.msra.mxu0 %v554
    %855 = vmatprep.subr.bf16.mxu0 %v559
    %856 = vmatpush1.bf16.msra.mxu0 %v558
    %857 = vmatprep.subr.bf16.mxu0 %v563
    %858 = vmatpush1.bf16.msra.mxu0 %v562
    %859 = vmatprep.subr.bf16.mxu0 %v567
    %860 = vmatpush1.bf16.msra.mxu0 %v566
    %861 = vmatprep.subr.bf16.mxu0 %v571
    %862 = vmatpush1.bf16.msra.mxu0 %v570
    %863 = vmatprep.subr.bf16.mxu0 %v575
    %864 = vmatpush1.bf16.msra.mxu0 %v574
    %865 = vmatprep.mubr.bf16.mxu0 %v139
    %866 = vmatmul.mubr.bf16.gmra.mrb[0].mxu0 %v138
    %v867 = vpop.f32.mrb[0].mxu0
    %v868 = vadd.f32 %v311, %v867
    %v869 = vpop.f32.mrb[0].mxu0
    %v870 = vadd.f32 %v315, %v869
    %v871 = vpop.f32.mrb[0].mxu0
    %v872 = vadd.f32 %v311, %v871
    %v873 = vpop.f32.mrb[0].mxu0
    %v874 = vadd.f32 %v315, %v873
    %875 = vmatprep.mubr.bf16.mxu0 %v141
    %876 = vmatmul.mubr.bf16.gmra.mrb[0].mxu0 %v140
    %v877 = vpop.f32.mrb[0].mxu0
    %v878 = vadd.f32 %v311, %v877
    %v879 = vpop.f32.mrb[0].mxu0
    %v880 = vadd.f32 %v315, %v879
    %v881 = vpop.f32.mrb[0].mxu0
    %v882 = vadd.f32 %v311, %v881
    %v883 = vpop.f32.mrb[0].mxu0
    %v884 = vadd.f32 %v315, %v883
    %885 = vmatprep.mubr.bf16.mxu0 %v143
    %886 = vmatmul.mubr.bf16.gmra.mrb[0].mxu0 %v142
    %v887 = vpop.f32.mrb[0].mxu0
    %v888 = vadd.f32 %v311, %v887
    %v889 = vpop.f32.mrb[0].mxu0
    %v890 = vadd.f32 %v315, %v889
    %v891 = vpop.f32.mrb[0].mxu0
    %v892 = vadd.f32 %v311, %v891
    %v893 = vpop.f32.mrb[0].mxu0
    %v894 = vadd.f32 %v315, %v893
    %895 = vmatprep.mubr.bf16.mxu0 %v145
    %896 = vmatmul.mubr.bf16.gmra.mrb[0].mxu0 %v144
    %v897 = vpop.f32.mrb[0].mxu0
    %v898 = vadd.f32 %v311, %v897
    %v899 = vpop.f32.mrb[0].mxu0
    %v900 = vadd.f32 %v315, %v899
    %v901 = vpop.f32.mrb[0].mxu0
    %v902 = vadd.f32 %v311, %v901
    %v903 = vpop.f32.mrb[0].mxu0
    %v904 = vadd.f32 %v315, %v903
    %905 = vmatprep.mubr.bf16.mxu0 %v147
    %906 = vmatmul.mubr.bf16.gmra.mrb[0].mxu0 %v146
    %v907 = vpop.f32.mrb[0].mxu0
    %v908 = vadd.f32 %v311, %v907
    %v909 = vpop.f32.mrb[0].mxu0
    %v910 = vadd.f32 %v315, %v909
    %v911 = vpop.f32.mrb[0].mxu0
    %v912 = vadd.f32 %v311, %v911
    %v913 = vpop.f32.mrb[0].mxu0
    %v914 = vadd.f32 %v315, %v913
    %915 = vmatprep.mubr.bf16.mxu0 %v149
    %916 = vmatmul.mubr.bf16.gmra.mrb[0].mxu0 %v148
    %v917 = vpop.f32.mrb[0].mxu0
    %v918 = vadd.f32 %v311, %v917
    %v919 = vpop.f32.mrb[0].mxu0
    %v920 = vadd.f32 %v315, %v919
    %v921 = vpop.f32.mrb[0].mxu0
    %v922 = vadd.f32 %v311, %v921
    %v923 = vpop.f32.mrb[0].mxu0
    %v924 = vadd.f32 %v315, %v923
    %925 = vmatprep.mubr.bf16.mxu0 %v151
    %926 = vmatmul.mubr.bf16.gmra.mrb[0].mxu0 %v150
    %v927 = vpop.f32.mrb[0].mxu0
    %v928 = vadd.f32 %v311, %v927
    %v929 = vpop.f32.mrb[0].mxu0
    %v930 = vadd.f32 %v315, %v929
    %v931 = vpop.f32.mrb[0].mxu0
    %v932 = vadd.f32 %v311, %v931
    %v933 = vpop.f32.mrb[0].mxu0
    %v934 = vadd.f32 %v315, %v933
    %935 = vmatprep.mubr.bf16.mxu0 %v153
    %936 = vmatmul.mubr.bf16.gmra.mrb[0].mxu0 %v152
    %v937 = vpop.f32.mrb[0].mxu0
    %v938 = vadd.f32 %v311, %v937
    %v939 = vpop.f32.mrb[0].mxu0
    %v940 = vadd.f32 %v315, %v939
    %v941 = vpop.f32.mrb[0].mxu0
    %v942 = vadd.f32 %v311, %v941
    %v943 = vpop.f32.mrb[0].mxu0
    %v944 = vadd.f32 %v315, %v943
    %945 = vmatprep.mubr.bf16.mxu0 %v155
    %946 = vmatmul.mubr.bf16.gmra.mrb[0].mxu0 %v154
    %v947 = vpop.f32.mrb[0].mxu0
    %v948 = vadd.f32 %v311, %v947
    %v949 = vpop.f32.mrb[0].mxu0
    %v950 = vadd.f32 %v315, %v949
    %v951 = vpop.f32.mrb[0].mxu0
    %v952 = vadd.f32 %v311, %v951
    %v953 = vpop.f32.mrb[0].mxu0
    %v954 = vadd.f32 %v315, %v953
    %955 = vmatprep.mubr.bf16.mxu0 %v157
    %956 = vmatmul.mubr.bf16.gmra.mrb[0].mxu0 %v156
    %v957 = vpop.f32.mrb[0].mxu0
    %v958 = vadd.f32 %v311, %v957
    %v959 = vpop.f32.mrb[0].mxu0
    %v960 = vadd.f32 %v315, %v959
    %v961 = vpop.f32.mrb[0].mxu0
    %v962 = vadd.f32 %v311, %v961
    %v963 = vpop.f32.mrb[0].mxu0
    %v964 = vadd.f32 %v315, %v963
    %965 = vmatprep.mubr.bf16.mxu0 %v159
    %966 = vmatmul.mubr.bf16.gmra.mrb[0].mxu0 %v158
    %v967 = vpop.f32.mrb[0].mxu0
    %v968 = vadd.f32 %v311, %v967
    %v969 = vpop.f32.mrb[0].mxu0
    %v970 = vadd.f32 %v315, %v969
    %v971 = vpop.f32.mrb[0].mxu0
    %v972 = vadd.f32 %v311, %v971
    %v973 = vpop.f32.mrb[0].mxu0
    %v974 = vadd.f32 %v315, %v973
    %975 = vmatprep.mubr.bf16.mxu0 %v161
    %976 = vmatmul.mubr.bf16.gmra.mrb[0].mxu0 %v160
    %v977 = vpop.f32.mrb[0].mxu0
    %v978 = vadd.f32 %v311, %v977
    %v979 = vpop.f32.mrb[0].mxu0
    %v980 = vadd.f32 %v315, %v979
    %v981 = vpop.f32.mrb[0].mxu0
    %v982 = vadd.f32 %v311, %v981
    %v983 = vpop.f32.mrb[0].mxu0
    %v984 = vadd.f32 %v315, %v983
    %985 = vmatprep.mubr.bf16.mxu0 %v163
    %986 = vmatmul.mubr.bf16.gmra.mrb[0].mxu0 %v162
    %v987 = vpop.f32.mrb[0].mxu0
    %v988 = vadd.f32 %v311, %v987
    %v989 = vpop.f32.mrb[0].mxu0
    %v990 = vadd.f32 %v315, %v989
    %v991 = vpop.f32.mrb[0].mxu0
    %v992 = vadd.f32 %v311, %v991
    %v993 = vpop.f32.mrb[0].mxu0
    %v994 = vadd.f32 %v315, %v993
    %995 = vmatprep.mubr.bf16.mxu0 %v165
    %996 = vmatmul.mubr.bf16.gmra.mrb[0].mxu0 %v164
    %v997 = vpop.f32.mrb[0].mxu0
    %v998 = vadd.f32 %v311, %v997
    %v999 = vpop.f32.mrb[0].mxu0
    %v1000 = vadd.f32 %v315, %v999
    %v1001 = vpop.f32.mrb[0].mxu0
    %v1002 = vadd.f32 %v311, %v1001
    %v1003 = vpop.f32.mrb[0].mxu0
    %v1004 = vadd.f32 %v315, %v1003
    %1005 = vmatprep.mubr.bf16.mxu0 %v167
    %1006 = vmatmul.mubr.bf16.gmra.mrb[0].mxu0 %v166
    %v1007 = vpop.f32.mrb[0].mxu0
    %v1008 = vadd.f32 %v311, %v1007
    %v1009 = vpop.f32.mrb[0].mxu0
    %v1010 = vadd.f32 %v315, %v1009
    %v1011 = vpop.f32.mrb[0].mxu0
    %v1012 = vadd.f32 %v311, %v1011
    %v1013 = vpop.f32.mrb[0].mxu0
    %v1014 = vadd.f32 %v315, %v1013
    %1015 = vmatprep.mubr.bf16.mxu0 %v169
    %1016 = vmatmul.mubr.bf16.gmra.mrb[0].mxu0 %v168
    %v1017 = vpop.f32.mrb[0].mxu0
    %v1018 = vadd.f32 %v311, %v1017
    %v1019 = vpop.f32.mrb[0].mxu0
    %v1020 = vadd.f32 %v315, %v1019
    %v1021 = vpop.f32.mrb[0].mxu0
    %v1022 = vadd.f32 %v311, %v1021
    %v1023 = vpop.f32.mrb[0].mxu0
    %v1024 = vadd.f32 %v315, %v1023
    %1025 = vdwg.mxu0
    %v1026 = vmul.f32 %v675, 0.5
    %v1027 = vmul.f32 %v677, 0.5
    %v1028 = vmul.f32 %v868, 0.5
    %v1029 = vmul.f32 %v870, 0.5
    %v1030 = vmul.f32 %v679, 0.5
    %v1031 = vmul.f32 %v681, 0.5
    %v1032 = vmul.f32 %v872, 0.5
    %v1033 = vmul.f32 %v874, 0.5
    %v1034 = vmul.f32 %v685, 0.5
    %v1035 = vmul.f32 %v687, 0.5
    %v1036 = vmul.f32 %v878, 0.5
    %v1037 = vmul.f32 %v880, 0.5
    %v1038 = vmul.f32 %v689, 0.5
    %v1039 = vmul.f32 %v691, 0.5
    %v1040 = vmul.f32 %v882, 0.5
    %v1041 = vmul.f32 %v884, 0.5
    %v1042 = vmul.f32 %v695, 0.5
    %v1043 = vmul.f32 %v697, 0.5
    %v1044 = vmul.f32 %v888, 0.5
    %v1045 = vmul.f32 %v890, 0.5
    %v1046 = vmul.f32 %v699, 0.5
    %v1047 = vmul.f32 %v701, 0.5
    %v1048 = vmul.f32 %v892, 0.5
    %v1049 = vmul.f32 %v894, 0.5
    %v1050 = vmul.f32 %v705, 0.5
    %v1051 = vmul.f32 %v707, 0.5
    %v1052 = vmul.f32 %v898, 0.5
    %v1053 = vmul.f32 %v900, 0.5
    %v1054 = vmul.f32 %v709, 0.5
    %v1055 = vmul.f32 %v711, 0.5
    %v1056 = vmul.f32 %v902, 0.5
    %v1057 = vmul.f32 %v904, 0.5
    %v1058 = vmul.f32 %v715, 0.5
    %v1059 = vmul.f32 %v717, 0.5
    %v1060 = vmul.f32 %v908, 0.5
    %v1061 = vmul.f32 %v910, 0.5
    %v1062 = vmul.f32 %v719, 0.5
    %v1063 = vmul.f32 %v721, 0.5
    %v1064 = vmul.f32 %v912, 0.5
    %v1065 = vmul.f32 %v914, 0.5
    %v1066 = vmul.f32 %v725, 0.5
    %v1067 = vmul.f32 %v727, 0.5
    %v1068 = vmul.f32 %v918, 0.5
    %v1069 = vmul.f32 %v920, 0.5
    %v1070 = vmul.f32 %v729, 0.5
    %v1071 = vmul.f32 %v731, 0.5
    %v1072 = vmul.f32 %v922, 0.5
    %v1073 = vmul.f32 %v924, 0.5
    %v1074 = vmul.f32 %v735, 0.5
    %v1075 = vmul.f32 %v737, 0.5
    %v1076 = vmul.f32 %v928, 0.5
    %v1077 = vmul.f32 %v930, 0.5
    %v1078 = vmul.f32 %v739, 0.5
    %v1079 = vmul.f32 %v741, 0.5
    %v1080 = vmul.f32 %v932, 0.5
    %v1081 = vmul.f32 %v934, 0.5
    %v1082 = vmul.f32 %v745, 0.5
    %v1083 = vmul.f32 %v747, 0.5
    %v1084 = vmul.f32 %v938, 0.5
    %v1085 = vmul.f32 %v940, 0.5
    %v1086 = vmul.f32 %v749, 0.5
    %v1087 = vmul.f32 %v751, 0.5
    %v1088 = vmul.f32 %v942, 0.5
    %v1089 = vmul.f32 %v944, 0.5
    %v1090 = vmul.f32 %v755, 0.5
    %v1091 = vmul.f32 %v757, 0.5
    %v1092 = vmul.f32 %v948, 0.5
    %v1093 = vmul.f32 %v950, 0.5
    %v1094 = vmul.f32 %v759, 0.5
    %v1095 = vmul.f32 %v761, 0.5
    %v1096 = vmul.f32 %v952, 0.5
    %v1097 = vmul.f32 %v954, 0.5
    %v1098 = vmul.f32 %v765, 0.5
    %v1099 = vmul.f32 %v767, 0.5
    %v1100 = vmul.f32 %v958, 0.5
    %v1101 = vmul.f32 %v960, 0.5
    %v1102 = vmul.f32 %v769, 0.5
    %v1103 = vmul.f32 %v771, 0.5
    %v1104 = vmul.f32 %v962, 0.5
    %v1105 = vmul.f32 %v964, 0.5
    %v1106 = vmul.f32 %v775, 0.5
    %v1107 = vmul.f32 %v777, 0.5
    %v1108 = vmul.f32 %v968, 0.5
    %v1109 = vmul.f32 %v970, 0.5
    %v1110 = vmul.f32 %v779, 0.5
    %v1111 = vmul.f32 %v781, 0.5
    %v1112 = vmul.f32 %v972, 0.5
    %v1113 = vmul.f32 %v974, 0.5
    %v1114 = vmul.f32 %v785, 0.5
    %v1115 = vmul.f32 %v787, 0.5
    %v1116 = vmul.f32 %v978, 0.5
    %v1117 = vmul.f32 %v980, 0.5
    %v1118 = vmul.f32 %v789, 0.5
    %v1119 = vmul.f32 %v791, 0.5
    %v1120 = vmul.f32 %v982, 0.5
    %v1121 = vmul.f32 %v984, 0.5
    %v1122 = vmul.f32 %v795, 0.5
    %v1123 = vmul.f32 %v797, 0.5
    %v1124 = vmul.f32 %v988, 0.5
    %v1125 = vmul.f32 %v990, 0.5
    %v1126 = vmul.f32 %v799, 0.5
    %v1127 = vmul.f32 %v801, 0.5
    %v1128 = vmul.f32 %v992, 0.5
    %v1129 = vmul.f32 %v994, 0.5
    %v1130 = vmul.f32 %v805, 0.5
    %v1131 = vmul.f32 %v807, 0.5
    %v1132 = vmul.f32 %v998, 0.5
    %v1133 = vmul.f32 %v1000, 0.5
    %v1134 = vmul.f32 %v809, 0.5
    %v1135 = vmul.f32 %v811, 0.5
    %v1136 = vmul.f32 %v1002, 0.5
    %v1137 = vmul.f32 %v1004, 0.5
    %v1138 = vmul.f32 %v815, 0.5
    %v1139 = vmul.f32 %v817, 0.5
    %v1140 = vmul.f32 %v1008, 0.5
    %v1141 = vmul.f32 %v1010, 0.5
    %v1142 = vmul.f32 %v819, 0.5
    %v1143 = vmul.f32 %v821, 0.5
    %v1144 = vmul.f32 %v1012, 0.5
    %v1145 = vmul.f32 %v1014, 0.5
    %v1146 = vmul.f32 %v825, 0.5
    %v1147 = vmul.f32 %v827, 0.5
    %v1148 = vmul.f32 %v1018, 0.5
    %v1149 = vmul.f32 %v1020, 0.5
    %v1150 = vmul.f32 %v829, 0.5
    %v1151 = vmul.f32 %v831, 0.5
    %v1152 = vmul.f32 %v1022, 0.5
    %v1153 = vmul.f32 %v1024, 0.5
    %v1154 = vmul.f32 %v675, 0.70710677
    %v1155 = vmul.f32 %v677, 0.70710677
    %v1156 = vmul.f32 %v868, 0.70710677
    %v1157 = vmul.f32 %v870, 0.70710677
    %v1158 = vmul.f32 %v679, 0.70710677
    %v1159 = vmul.f32 %v681, 0.70710677
    %v1160 = vmul.f32 %v872, 0.70710677
    %v1161 = vmul.f32 %v874, 0.70710677
    %v1162 = vmul.f32 %v685, 0.70710677
    %v1163 = vmul.f32 %v687, 0.70710677
    %v1164 = vmul.f32 %v878, 0.70710677
    %v1165 = vmul.f32 %v880, 0.70710677
    %v1166 = vmul.f32 %v689, 0.70710677
    %v1167 = vmul.f32 %v691, 0.70710677
    %v1168 = vmul.f32 %v882, 0.70710677
    %v1169 = vmul.f32 %v884, 0.70710677
    %v1170 = vmul.f32 %v695, 0.70710677
    %v1171 = vmul.f32 %v697, 0.70710677
    %v1172 = vmul.f32 %v888, 0.70710677
    %v1173 = vmul.f32 %v890, 0.70710677
    %v1174 = vmul.f32 %v699, 0.70710677
    %v1175 = vmul.f32 %v701, 0.70710677
    %v1176 = vmul.f32 %v892, 0.70710677
    %v1177 = vmul.f32 %v894, 0.70710677
    %v1178 = vmul.f32 %v705, 0.70710677
    %v1179 = vmul.f32 %v707, 0.70710677
    %v1180 = vmul.f32 %v898, 0.70710677
    %v1181 = vmul.f32 %v900, 0.70710677
    %v1182 = vmul.f32 %v709, 0.70710677
    %v1183 = vmul.f32 %v711, 0.70710677
    %v1184 = vmul.f32 %v902, 0.70710677
    %v1185 = vmul.f32 %v904, 0.70710677
    %v1186 = vmul.f32 %v715, 0.70710677
    %v1187 = vmul.f32 %v717, 0.70710677
    %v1188 = vmul.f32 %v908, 0.70710677
    %v1189 = vmul.f32 %v910, 0.70710677
    %v1190 = vmul.f32 %v719, 0.70710677
    %v1191 = vmul.f32 %v721, 0.70710677
    %v1192 = vmul.f32 %v912, 0.70710677
    %v1193 = vmul.f32 %v914, 0.70710677
    %v1194 = vmul.f32 %v725, 0.70710677
    %v1195 = vmul.f32 %v727, 0.70710677
    %v1196 = vmul.f32 %v918, 0.70710677
    %v1197 = vmul.f32 %v920, 0.70710677
    %v1198 = vmul.f32 %v729, 0.70710677
    %v1199 = vmul.f32 %v731, 0.70710677
    %v1200 = vmul.f32 %v922, 0.70710677
    %v1201 = vmul.f32 %v924, 0.70710677
    %v1202 = vmul.f32 %v735, 0.70710677
    %v1203 = vmul.f32 %v737, 0.70710677
    %v1204 = vmul.f32 %v928, 0.70710677
    %v1205 = vmul.f32 %v930, 0.70710677
    %v1206 = vmul.f32 %v739, 0.70710677
    %v1207 = vmul.f32 %v741, 0.70710677
    %v1208 = vmul.f32 %v932, 0.70710677
    %v1209 = vmul.f32 %v934, 0.70710677
    %v1210 = vmul.f32 %v745, 0.70710677
    %v1211 = vmul.f32 %v747, 0.70710677
    %v1212 = vmul.f32 %v938, 0.70710677
    %v1213 = vmul.f32 %v940, 0.70710677
    %v1214 = vmul.f32 %v749, 0.70710677
    %v1215 = vmul.f32 %v751, 0.70710677
    %v1216 = vmul.f32 %v942, 0.70710677
    %v1217 = vmul.f32 %v944, 0.70710677
    %v1218 = vmul.f32 %v755, 0.70710677
    %v1219 = vmul.f32 %v757, 0.70710677
    %v1220 = vmul.f32 %v948, 0.70710677
    %v1221 = vmul.f32 %v950, 0.70710677
    %v1222 = vmul.f32 %v759, 0.70710677
    %v1223 = vmul.f32 %v761, 0.70710677
    %v1224 = vmul.f32 %v952, 0.70710677
    %v1225 = vmul.f32 %v954, 0.70710677
    %v1226 = vmul.f32 %v765, 0.70710677
    %v1227 = vmul.f32 %v767, 0.70710677
    %v1228 = vmul.f32 %v958, 0.70710677
    %v1229 = vmul.f32 %v960, 0.70710677
    %v1230 = vmul.f32 %v769, 0.70710677
    %v1231 = vmul.f32 %v771, 0.70710677
    %v1232 = vmul.f32 %v962, 0.70710677
    %v1233 = vmul.f32 %v964, 0.70710677
    %v1234 = vmul.f32 %v775, 0.70710677
    %v1235 = vmul.f32 %v777, 0.70710677
    %v1236 = vmul.f32 %v968, 0.70710677
    %v1237 = vmul.f32 %v970, 0.70710677
    %v1238 = vmul.f32 %v779, 0.70710677
    %v1239 = vmul.f32 %v781, 0.70710677
    %v1240 = vmul.f32 %v972, 0.70710677
    %v1241 = vmul.f32 %v974, 0.70710677
    %v1242 = vmul.f32 %v785, 0.70710677
    %v1243 = vmul.f32 %v787, 0.70710677
    %v1244 = vmul.f32 %v978, 0.70710677
    %v1245 = vmul.f32 %v980, 0.70710677
    %v1246 = vmul.f32 %v789, 0.70710677
    %v1247 = vmul.f32 %v791, 0.70710677
    %v1248 = vmul.f32 %v982, 0.70710677
    %v1249 = vmul.f32 %v984, 0.70710677
    %v1250 = vmul.f32 %v795, 0.70710677
    %v1251 = vmul.f32 %v797, 0.70710677
    %v1252 = vmul.f32 %v988, 0.70710677
    %v1253 = vmul.f32 %v990, 0.70710677
    %v1254 = vmul.f32 %v799, 0.70710677
    %v1255 = vmul.f32 %v801, 0.70710677
    %v1256 = vmul.f32 %v992, 0.70710677
    %v1257 = vmul.f32 %v994, 0.70710677
    %v1258 = vmul.f32 %v805, 0.70710677
    %v1259 = vmul.f32 %v807, 0.70710677
    %v1260 = vmul.f32 %v998, 0.70710677
    %v1261 = vmul.f32 %v1000, 0.70710677
    %v1262 = vmul.f32 %v809, 0.70710677
    %v1263 = vmul.f32 %v811, 0.70710677
    %v1264 = vmul.f32 %v1002, 0.70710677
    %v1265 = vmul.f32 %v1004, 0.70710677
    %v1266 = vmul.f32 %v815, 0.70710677
    %v1267 = vmul.f32 %v817, 0.70710677
    %v1268 = vmul.f32 %v1008, 0.70710677
    %v1269 = vmul.f32 %v1010, 0.70710677
    %v1270 = vmul.f32 %v819, 0.70710677
    %v1271 = vmul.f32 %v821, 0.70710677
    %v1272 = vmul.f32 %v1012, 0.70710677
    %v1273 = vmul.f32 %v1014, 0.70710677
    %v1274 = vmul.f32 %v825, 0.70710677
    %v1275 = vmul.f32 %v827, 0.70710677
    %v1276 = vmul.f32 %v1018, 0.70710677
    %v1277 = vmul.f32 %v1020, 0.70710677
    %v1278 = vmul.f32 %v829, 0.70710677
    %v1279 = vmul.f32 %v831, 0.70710677
    %v1280 = vmul.f32 %v1022, 0.70710677
    %v1281 = vmul.f32 %v1024, 0.70710677
    %v1282 = verf.f32.pop %v1154
    %v1283 = verf.f32.pop %v1155
    %v1284 = verf.f32.pop %v1156
    %v1285 = verf.f32.pop %v1157
    %v1286 = verf.f32.pop %v1158
    %v1287 = verf.f32.pop %v1159
    %v1288 = verf.f32.pop %v1160
    %v1289 = verf.f32.pop %v1161
    %v1290 = verf.f32.pop %v1162
    %v1291 = verf.f32.pop %v1163
    %v1292 = verf.f32.pop %v1164
    %v1293 = verf.f32.pop %v1165
    %v1294 = verf.f32.pop %v1166
    %v1295 = verf.f32.pop %v1167
    %v1296 = verf.f32.pop %v1168
    %v1297 = verf.f32.pop %v1169
    %v1298 = verf.f32.pop %v1170
    %v1299 = verf.f32.pop %v1171
    %v1300 = verf.f32.pop %v1172
    %v1301 = verf.f32.pop %v1173
    %v1302 = verf.f32.pop %v1174
    %v1303 = verf.f32.pop %v1175
    %v1304 = verf.f32.pop %v1176
    %v1305 = verf.f32.pop %v1177
    %v1306 = verf.f32.pop %v1178
    %v1307 = verf.f32.pop %v1179
    %v1308 = verf.f32.pop %v1180
    %v1309 = verf.f32.pop %v1181
    %v1310 = verf.f32.pop %v1182
    %v1311 = verf.f32.pop %v1183
    %v1312 = verf.f32.pop %v1184
    %v1313 = verf.f32.pop %v1185
    %v1314 = verf.f32.pop %v1186
    %v1315 = verf.f32.pop %v1187
    %v1316 = verf.f32.pop %v1188
    %v1317 = verf.f32.pop %v1189
    %v1318 = verf.f32.pop %v1190
    %v1319 = verf.f32.pop %v1191
    %v1320 = verf.f32.pop %v1192
    %v1321 = verf.f32.pop %v1193
    %v1322 = verf.f32.pop %v1194
    %v1323 = verf.f32.pop %v1195
    %v1324 = verf.f32.pop %v1196
    %v1325 = verf.f32.pop %v1197
    %v1326 = verf.f32.pop %v1198
    %v1327 = verf.f32.pop %v1199
    %v1328 = verf.f32.pop %v1200
    %v1329 = verf.f32.pop %v1201
    %v1330 = verf.f32.pop %v1202
    %v1331 = verf.f32.pop %v1203
    %v1332 = verf.f32.pop %v1204
    %v1333 = verf.f32.pop %v1205
    %v1334 = verf.f32.pop %v1206
    %v1335 = verf.f32.pop %v1207
    %v1336 = verf.f32.pop %v1208
    %v1337 = verf.f32.pop %v1209
    %v1338 = verf.f32.pop %v1210
    %v1339 = verf.f32.pop %v1211
    %v1340 = verf.f32.pop %v1212
    %v1341 = verf.f32.pop %v1213
    %v1342 = verf.f32.pop %v1214
    %v1343 = verf.f32.pop %v1215
    %v1344 = verf.f32.pop %v1216
    %v1345 = verf.f32.pop %v1217
    %v1346 = verf.f32.pop %v1218
    %v1347 = verf.f32.pop %v1219
    %v1348 = verf.f32.pop %v1220
    %v1349 = verf.f32.pop %v1221
    %v1350 = verf.f32.pop %v1222
    %v1351 = verf.f32.pop %v1223
    %v1352 = verf.f32.pop %v1224
    %v1353 = verf.f32.pop %v1225
    %v1354 = verf.f32.pop %v1226
    %v1355 = verf.f32.pop %v1227
    %v1356 = verf.f32.pop %v1228
    %v1357 = verf.f32.pop %v1229
    %v1358 = verf.f32.pop %v1230
    %v1359 = verf.f32.pop %v1231
    %v1360 = verf.f32.pop %v1232
    %v1361 = verf.f32.pop %v1233
    %v1362 = verf.f32.pop %v1234
    %v1363 = verf.f32.pop %v1235
    %v1364 = verf.f32.pop %v1236
    %v1365 = verf.f32.pop %v1237
    %v1366 = verf.f32.pop %v1238
    %v1367 = verf.f32.pop %v1239
    %v1368 = verf.f32.pop %v1240
    %v1369 = verf.f32.pop %v1241
    %v1370 = verf.f32.pop %v1242
    %v1371 = verf.f32.pop %v1243
    %v1372 = verf.f32.pop %v1244
    %v1373 = verf.f32.pop %v1245
    %v1374 = verf.f32.pop %v1246
    %v1375 = verf.f32.pop %v1247
    %v1376 = verf.f32.pop %v1248
    %v1377 = verf.f32.pop %v1249
    %v1378 = verf.f32.pop %v1250
    %v1379 = verf.f32.pop %v1251
    %v1380 = verf.f32.pop %v1252
    %v1381 = verf.f32.pop %v1253
    %v1382 = verf.f32.pop %v1254
    %v1383 = verf.f32.pop %v1255
    %v1384 = verf.f32.pop %v1256
    %v1385 = verf.f32.pop %v1257
    %v1386 = verf.f32.pop %v1258
    %v1387 = verf.f32.pop %v1259
    %v1388 = verf.f32.pop %v1260
    %v1389 = verf.f32.pop %v1261
    %v1390 = verf.f32.pop %v1262
    %v1391 = verf.f32.pop %v1263
    %v1392 = verf.f32.pop %v1264
    %v1393 = verf.f32.pop %v1265
    %v1394 = verf.f32.pop %v1266
    %v1395 = verf.f32.pop %v1267
    %v1396 = verf.f32.pop %v1268
    %v1397 = verf.f32.pop %v1269
    %v1398 = verf.f32.pop %v1270
    %v1399 = verf.f32.pop %v1271
    %v1400 = verf.f32.pop %v1272
    %v1401 = verf.f32.pop %v1273
    %v1402 = verf.f32.pop %v1274
    %v1403 = verf.f32.pop %v1275
    %v1404 = verf.f32.pop %v1276
    %v1405 = verf.f32.pop %v1277
    %v1406 = verf.f32.pop %v1278
    %v1407 = verf.f32.pop %v1279
    %v1408 = verf.f32.pop %v1280
    %v1409 = verf.f32.pop %v1281
    %v1410 = vadd.f32 %v1282, 1.0
    %v1411 = vadd.f32 %v1283, 1.0
    %v1412 = vadd.f32 %v1284, 1.0
    %v1413 = vadd.f32 %v1285, 1.0
    %v1414 = vadd.f32 %v1286, 1.0
    %v1415 = vadd.f32 %v1287, 1.0
    %v1416 = vadd.f32 %v1288, 1.0
    %v1417 = vadd.f32 %v1289, 1.0
    %v1418 = vadd.f32 %v1290, 1.0
    %v1419 = vadd.f32 %v1291, 1.0
    %v1420 = vadd.f32 %v1292, 1.0
    %v1421 = vadd.f32 %v1293, 1.0
    %v1422 = vadd.f32 %v1294, 1.0
    %v1423 = vadd.f32 %v1295, 1.0
    %v1424 = vadd.f32 %v1296, 1.0
    %v1425 = vadd.f32 %v1297, 1.0
    %v1426 = vadd.f32 %v1298, 1.0
    %v1427 = vadd.f32 %v1299, 1.0
    %v1428 = vadd.f32 %v1300, 1.0
    %v1429 = vadd.f32 %v1301, 1.0
    %v1430 = vadd.f32 %v1302, 1.0
    %v1431 = vadd.f32 %v1303, 1.0
    %v1432 = vadd.f32 %v1304, 1.0
    %v1433 = vadd.f32 %v1305, 1.0
    %v1434 = vadd.f32 %v1306, 1.0
    %v1435 = vadd.f32 %v1307, 1.0
    %v1436 = vadd.f32 %v1308, 1.0
    %v1437 = vadd.f32 %v1309, 1.0
    %v1438 = vadd.f32 %v1310, 1.0
    %v1439 = vadd.f32 %v1311, 1.0
    %v1440 = vadd.f32 %v1312, 1.0
    %v1441 = vadd.f32 %v1313, 1.0
    %v1442 = vadd.f32 %v1314, 1.0
    %v1443 = vadd.f32 %v1315, 1.0
    %v1444 = vadd.f32 %v1316, 1.0
    %v1445 = vadd.f32 %v1317, 1.0
    %v1446 = vadd.f32 %v1318, 1.0
    %v1447 = vadd.f32 %v1319, 1.0
    %v1448 = vadd.f32 %v1320, 1.0
    %v1449 = vadd.f32 %v1321, 1.0
    %v1450 = vadd.f32 %v1322, 1.0
    %v1451 = vadd.f32 %v1323, 1.0
    %v1452 = vadd.f32 %v1324, 1.0
    %v1453 = vadd.f32 %v1325, 1.0
    %v1454 = vadd.f32 %v1326, 1.0
    %v1455 = vadd.f32 %v1327, 1.0
    %v1456 = vadd.f32 %v1328, 1.0
    %v1457 = vadd.f32 %v1329, 1.0
    %v1458 = vadd.f32 %v1330, 1.0
    %v1459 = vadd.f32 %v1331, 1.0
    %v1460 = vadd.f32 %v1332, 1.0
    %v1461 = vadd.f32 %v1333, 1.0
    %v1462 = vadd.f32 %v1334, 1.0
    %v1463 = vadd.f32 %v1335, 1.0
    %v1464 = vadd.f32 %v1336, 1.0
    %v1465 = vadd.f32 %v1337, 1.0
    %v1466 = vadd.f32 %v1338, 1.0
    %v1467 = vadd.f32 %v1339, 1.0
    %v1468 = vadd.f32 %v1340, 1.0
    %v1469 = vadd.f32 %v1341, 1.0
    %v1470 = vadd.f32 %v1342, 1.0
    %v1471 = vadd.f32 %v1343, 1.0
    %v1472 = vadd.f32 %v1344, 1.0
    %v1473 = vadd.f32 %v1345, 1.0
    %v1474 = vadd.f32 %v1346, 1.0
    %v1475 = vadd.f32 %v1347, 1.0
    %v1476 = vadd.f32 %v1348, 1.0
    %v1477 = vadd.f32 %v1349, 1.0
    %v1478 = vadd.f32 %v1350, 1.0
    %v1479 = vadd.f32 %v1351, 1.0
    %v1480 = vadd.f32 %v1352, 1.0
    %v1481 = vadd.f32 %v1353, 1.0
    %v1482 = vadd.f32 %v1354, 1.0
    %v1483 = vadd.f32 %v1355, 1.0
    %v1484 = vadd.f32 %v1356, 1.0
    %v1485 = vadd.f32 %v1357, 1.0
    %v1486 = vadd.f32 %v1358, 1.0
    %v1487 = vadd.f32 %v1359, 1.0
    %v1488 = vadd.f32 %v1360, 1.0
    %v1489 = vadd.f32 %v1361, 1.0
    %v1490 = vadd.f32 %v1362, 1.0
    %v1491 = vadd.f32 %v1363, 1.0
    %v1492 = vadd.f32 %v1364, 1.0
    %v1493 = vadd.f32 %v1365, 1.0
    %v1494 = vadd.f32 %v1366, 1.0
    %v1495 = vadd.f32 %v1367, 1.0
    %v1496 = vadd.f32 %v1368, 1.0
    %v1497 = vadd.f32 %v1369, 1.0
    %v1498 = vadd.f32 %v1370, 1.0
    %v1499 = vadd.f32 %v1371, 1.0
    %v1500 = vadd.f32 %v1372, 1.0
    %v1501 = vadd.f32 %v1373, 1.0
    %v1502 = vadd.f32 %v1374, 1.0
    %v1503 = vadd.f32 %v1375, 1.0
    %v1504 = vadd.f32 %v1376, 1.0
    %v1505 = vadd.f32 %v1377, 1.0
    %v1506 = vadd.f32 %v1378, 1.0
    %v1507 = vadd.f32 %v1379, 1.0
    %v1508 = vadd.f32 %v1380, 1.0
    %v1509 = vadd.f32 %v1381, 1.0
    %v1510 = vadd.f32 %v1382, 1.0
    %v1511 = vadd.f32 %v1383, 1.0
    %v1512 = vadd.f32 %v1384, 1.0
    %v1513 = vadd.f32 %v1385, 1.0
    %v1514 = vadd.f32 %v1386, 1.0
    %v1515 = vadd.f32 %v1387, 1.0
    %v1516 = vadd.f32 %v1388, 1.0
    %v1517 = vadd.f32 %v1389, 1.0
    %v1518 = vadd.f32 %v1390, 1.0
    %v1519 = vadd.f32 %v1391, 1.0
    %v1520 = vadd.f32 %v1392, 1.0
    %v1521 = vadd.f32 %v1393, 1.0
    %v1522 = vadd.f32 %v1394, 1.0
    %v1523 = vadd.f32 %v1395, 1.0
    %v1524 = vadd.f32 %v1396, 1.0
    %v1525 = vadd.f32 %v1397, 1.0
    %v1526 = vadd.f32 %v1398, 1.0
    %v1527 = vadd.f32 %v1399, 1.0
    %v1528 = vadd.f32 %v1400, 1.0
    %v1529 = vadd.f32 %v1401, 1.0
    %v1530 = vadd.f32 %v1402, 1.0
    %v1531 = vadd.f32 %v1403, 1.0
    %v1532 = vadd.f32 %v1404, 1.0
    %v1533 = vadd.f32 %v1405, 1.0
    %v1534 = vadd.f32 %v1406, 1.0
    %v1535 = vadd.f32 %v1407, 1.0
    %v1536 = vadd.f32 %v1408, 1.0
    %v1537 = vadd.f32 %v1409, 1.0
    %v1538 = vmul.f32 %v1026, %v1410
    %v1539 = vmul.f32 %v1027, %v1411
    %v1540 = vmul.f32 %v1028, %v1412
    %v1541 = vmul.f32 %v1029, %v1413
    %v1542 = vmul.f32 %v1030, %v1414
    %v1543 = vmul.f32 %v1031, %v1415
    %v1544 = vmul.f32 %v1032, %v1416
    %v1545 = vmul.f32 %v1033, %v1417
    %v1546 = vmul.f32 %v1034, %v1418
    %v1547 = vmul.f32 %v1035, %v1419
    %v1548 = vmul.f32 %v1036, %v1420
    %v1549 = vmul.f32 %v1037, %v1421
    %v1550 = vmul.f32 %v1038, %v1422
    %v1551 = vmul.f32 %v1039, %v1423
    %v1552 = vmul.f32 %v1040, %v1424
    %v1553 = vmul.f32 %v1041, %v1425
    %v1554 = vmul.f32 %v1042, %v1426
    %v1555 = vmul.f32 %v1043, %v1427
    %v1556 = vmul.f32 %v1044, %v1428
    %v1557 = vmul.f32 %v1045, %v1429
    %v1558 = vmul.f32 %v1046, %v1430
    %v1559 = vmul.f32 %v1047, %v1431
    %v1560 = vmul.f32 %v1048, %v1432
    %v1561 = vmul.f32 %v1049, %v1433
    %v1562 = vmul.f32 %v1050, %v1434
    %v1563 = vmul.f32 %v1051, %v1435
    %v1564 = vmul.f32 %v1052, %v1436
    %v1565 = vmul.f32 %v1053, %v1437
    %v1566 = vmul.f32 %v1054, %v1438
    %v1567 = vmul.f32 %v1055, %v1439
    %v1568 = vmul.f32 %v1056, %v1440
    %v1569 = vmul.f32 %v1057, %v1441
    %v1570 = vmul.f32 %v1058, %v1442
    %v1571 = vmul.f32 %v1059, %v1443
    %v1572 = vmul.f32 %v1060, %v1444
    %v1573 = vmul.f32 %v1061, %v1445
    %v1574 = vmul.f32 %v1062, %v1446
    %v1575 = vmul.f32 %v1063, %v1447
    %v1576 = vmul.f32 %v1064, %v1448
    %v1577 = vmul.f32 %v1065, %v1449
    %v1578 = vmul.f32 %v1066, %v1450
    %v1579 = vmul.f32 %v1067, %v1451
    %v1580 = vmul.f32 %v1068, %v1452
    %v1581 = vmul.f32 %v1069, %v1453
    %v1582 = vmul.f32 %v1070, %v1454
    %v1583 = vmul.f32 %v1071, %v1455
    %v1584 = vmul.f32 %v1072, %v1456
    %v1585 = vmul.f32 %v1073, %v1457
    %v1586 = vmul.f32 %v1074, %v1458
    %v1587 = vmul.f32 %v1075, %v1459
    %v1588 = vmul.f32 %v1076, %v1460
    %v1589 = vmul.f32 %v1077, %v1461
    %v1590 = vmul.f32 %v1078, %v1462
    %v1591 = vmul.f32 %v1079, %v1463
    %v1592 = vmul.f32 %v1080, %v1464
    %v1593 = vmul.f32 %v1081, %v1465
    %v1594 = vmul.f32 %v1082, %v1466
    %v1595 = vmul.f32 %v1083, %v1467
    %v1596 = vmul.f32 %v1084, %v1468
    %v1597 = vmul.f32 %v1085, %v1469
    %v1598 = vmul.f32 %v1086, %v1470
    %v1599 = vmul.f32 %v1087, %v1471
    %v1600 = vmul.f32 %v1088, %v1472
    %v1601 = vmul.f32 %v1089, %v1473
    %v1602 = vmul.f32 %v1090, %v1474
    %v1603 = vmul.f32 %v1091, %v1475
    %v1604 = vmul.f32 %v1092, %v1476
    %v1605 = vmul.f32 %v1093, %v1477
    %v1606 = vmul.f32 %v1094, %v1478
    %v1607 = vmul.f32 %v1095, %v1479
    %v1608 = vmul.f32 %v1096, %v1480
    %v1609 = vmul.f32 %v1097, %v1481
    %v1610 = vmul.f32 %v1098, %v1482
    %v1611 = vmul.f32 %v1099, %v1483
    %v1612 = vmul.f32 %v1100, %v1484
    %v1613 = vmul.f32 %v1101, %v1485
    %v1614 = vmul.f32 %v1102, %v1486
    %v1615 = vmul.f32 %v1103, %v1487
    %v1616 = vmul.f32 %v1104, %v1488
    %v1617 = vmul.f32 %v1105, %v1489
    %v1618 = vmul.f32 %v1106, %v1490
    %v1619 = vmul.f32 %v1107, %v1491
    %v1620 = vmul.f32 %v1108, %v1492
    %v1621 = vmul.f32 %v1109, %v1493
    %v1622 = vmul.f32 %v1110, %v1494
    %v1623 = vmul.f32 %v1111, %v1495
    %v1624 = vmul.f32 %v1112, %v1496
    %v1625 = vmul.f32 %v1113, %v1497
    %v1626 = vmul.f32 %v1114, %v1498
    %v1627 = vmul.f32 %v1115, %v1499
    %v1628 = vmul.f32 %v1116, %v1500
    %v1629 = vmul.f32 %v1117, %v1501
    %v1630 = vmul.f32 %v1118, %v1502
    %v1631 = vmul.f32 %v1119, %v1503
    %v1632 = vmul.f32 %v1120, %v1504
    %v1633 = vmul.f32 %v1121, %v1505
    %v1634 = vmul.f32 %v1122, %v1506
    %v1635 = vmul.f32 %v1123, %v1507
    %v1636 = vmul.f32 %v1124, %v1508
    %v1637 = vmul.f32 %v1125, %v1509
    %v1638 = vmul.f32 %v1126, %v1510
    %v1639 = vmul.f32 %v1127, %v1511
    %v1640 = vmul.f32 %v1128, %v1512
    %v1641 = vmul.f32 %v1129, %v1513
    %v1642 = vmul.f32 %v1130, %v1514
    %v1643 = vmul.f32 %v1131, %v1515
    %v1644 = vmul.f32 %v1132, %v1516
    %v1645 = vmul.f32 %v1133, %v1517
    %v1646 = vmul.f32 %v1134, %v1518
    %v1647 = vmul.f32 %v1135, %v1519
    %v1648 = vmul.f32 %v1136, %v1520
    %v1649 = vmul.f32 %v1137, %v1521
    %v1650 = vmul.f32 %v1138, %v1522
    %v1651 = vmul.f32 %v1139, %v1523
    %v1652 = vmul.f32 %v1140, %v1524
    %v1653 = vmul.f32 %v1141, %v1525
    %v1654 = vmul.f32 %v1142, %v1526
    %v1655 = vmul.f32 %v1143, %v1527
    %v1656 = vmul.f32 %v1144, %v1528
    %v1657 = vmul.f32 %v1145, %v1529
    %v1658 = vmul.f32 %v1146, %v1530
    %v1659 = vmul.f32 %v1147, %v1531
    %v1660 = vmul.f32 %v1148, %v1532
    %v1661 = vmul.f32 %v1149, %v1533
    %v1662 = vmul.f32 %v1150, %v1534
    %v1663 = vmul.f32 %v1151, %v1535
    %v1664 = vmul.f32 %v1152, %v1536
    %v1665 = vmul.f32 %v1153, %v1537
    %v1666 = vld [vmem:[#allocation2] sm:$0xff]
    %v1667 = vld [vmem:[#allocation2 + $0x8] sm:$0xff]
    %v1668 = vld [vmem:[#allocation2 + $0x10] sm:$0xff]
    %v1669 = vld [vmem:[#allocation2 + $0x18] sm:$0xff]
    %v1670 = vld [vmem:[#allocation2 + $0x20] sm:$0xff]
    %v1671 = vld [vmem:[#allocation2 + $0x28] sm:$0xff]
    %v1672 = vld [vmem:[#allocation2 + $0x30] sm:$0xff]
    %v1673 = vld [vmem:[#allocation2 + $0x38] sm:$0xff]
    %v1674 = vld [vmem:[#allocation2 + $0x40] sm:$0xff]
    %v1675 = vld [vmem:[#allocation2 + $0x48] sm:$0xff]
    %v1676 = vld [vmem:[#allocation2 + $0x50] sm:$0xff]
    %v1677 = vld [vmem:[#allocation2 + $0x58] sm:$0xff]
    %v1678 = vld [vmem:[#allocation2 + $0x60] sm:$0xff]
    %v1679 = vld [vmem:[#allocation2 + $0x68] sm:$0xff]
    %v1680 = vld [vmem:[#allocation2 + $0x70] sm:$0xff]
    %v1681 = vld [vmem:[#allocation2 + $0x78] sm:$0xff]
    %v1682 = vld [vmem:[#allocation2 + $0x80] sm:$0xff]
    %v1683 = vld [vmem:[#allocation2 + $0x88] sm:$0xff]
    %v1684 = vld [vmem:[#allocation2 + $0x90] sm:$0xff]
    %v1685 = vld [vmem:[#allocation2 + $0x98] sm:$0xff]
    %v1686 = vld [vmem:[#allocation2 + $0xa0] sm:$0xff]
    %v1687 = vld [vmem:[#allocation2 + $0xa8] sm:$0xff]
    %v1688 = vld [vmem:[#allocation2 + $0xb0] sm:$0xff]
    %v1689 = vld [vmem:[#allocation2 + $0xb8] sm:$0xff]
    %v1690 = vld [vmem:[#allocation2 + $0xc0] sm:$0xff]
    %v1691 = vld [vmem:[#allocation2 + $0xc8] sm:$0xff]
    %v1692 = vld [vmem:[#allocation2 + $0xd0] sm:$0xff]
    %v1693 = vld [vmem:[#allocation2 + $0xd8] sm:$0xff]
    %v1694 = vld [vmem:[#allocation2 + $0xe0] sm:$0xff]
    %v1695 = vld [vmem:[#allocation2 + $0xe8] sm:$0xff]
    %v1696 = vld [vmem:[#allocation2 + $0xf0] sm:$0xff]
    %v1697 = vld [vmem:[#allocation2 + $0xf8] sm:$0xff]
    %v1698 = vld [vmem:[#allocation2 + $0x100] sm:$0xff]
    %v1699 = vld [vmem:[#allocation2 + $0x108] sm:$0xff]
    %v1700 = vld [vmem:[#allocation2 + $0x110] sm:$0xff]
    %v1701 = vld [vmem:[#allocation2 + $0x118] sm:$0xff]
    %v1702 = vld [vmem:[#allocation2 + $0x120] sm:$0xff]
    %v1703 = vld [vmem:[#allocation2 + $0x128] sm:$0xff]
    %v1704 = vld [vmem:[#allocation2 + $0x130] sm:$0xff]
    %v1705 = vld [vmem:[#allocation2 + $0x138] sm:$0xff]
    %v1706 = vld [vmem:[#allocation2 + $0x140] sm:$0xff]
    %v1707 = vld [vmem:[#allocation2 + $0x148] sm:$0xff]
    %v1708 = vld [vmem:[#allocation2 + $0x150] sm:$0xff]
    %v1709 = vld [vmem:[#allocation2 + $0x158] sm:$0xff]
    %v1710 = vld [vmem:[#allocation2 + $0x160] sm:$0xff]
    %v1711 = vld [vmem:[#allocation2 + $0x168] sm:$0xff]
    %v1712 = vld [vmem:[#allocation2 + $0x170] sm:$0xff]
    %v1713 = vld [vmem:[#allocation2 + $0x178] sm:$0xff]
    %v1714 = vld [vmem:[#allocation2 + $0x180] sm:$0xff]
    %v1715 = vld [vmem:[#allocation2 + $0x188] sm:$0xff]
    %v1716 = vld [vmem:[#allocation2 + $0x190] sm:$0xff]
    %v1717 = vld [vmem:[#allocation2 + $0x198] sm:$0xff]
    %v1718 = vld [vmem:[#allocation2 + $0x1a0] sm:$0xff]
    %v1719 = vld [vmem:[#allocation2 + $0x1a8] sm:$0xff]
    %v1720 = vld [vmem:[#allocation2 + $0x1b0] sm:$0xff]
    %v1721 = vld [vmem:[#allocation2 + $0x1b8] sm:$0xff]
    %v1722 = vld [vmem:[#allocation2 + $0x1c0] sm:$0xff]
    %v1723 = vld [vmem:[#allocation2 + $0x1c8] sm:$0xff]
    %v1724 = vld [vmem:[#allocation2 + $0x1d0] sm:$0xff]
    %v1725 = vld [vmem:[#allocation2 + $0x1d8] sm:$0xff]
    %v1726 = vld [vmem:[#allocation2 + $0x1e0] sm:$0xff]
    %v1727 = vld [vmem:[#allocation2 + $0x1e8] sm:$0xff]
    %v1728 = vld [vmem:[#allocation2 + $0x1f0] sm:$0xff]
    %v1729 = vld [vmem:[#allocation2 + $0x1f8] sm:$0xff]
    %v1730 = vpack.c.bf16 %v1542, %v1538
    %v1731 = vpack.c.bf16 %v1543, %v1539
    %v1732 = vpack.c.bf16 %v1544, %v1540
    %v1733 = vpack.c.bf16 %v1545, %v1541
    %v1734 = vpack.c.bf16 %v1550, %v1546
    %v1735 = vpack.c.bf16 %v1551, %v1547
    %v1736 = vpack.c.bf16 %v1552, %v1548
    %v1737 = vpack.c.bf16 %v1553, %v1549
    %v1738 = vpack.c.bf16 %v1558, %v1554
    %v1739 = vpack.c.bf16 %v1559, %v1555
    %v1740 = vpack.c.bf16 %v1560, %v1556
    %v1741 = vpack.c.bf16 %v1561, %v1557
    %v1742 = vpack.c.bf16 %v1566, %v1562
    %v1743 = vpack.c.bf16 %v1567, %v1563
    %v1744 = vpack.c.bf16 %v1568, %v1564
    %v1745 = vpack.c.bf16 %v1569, %v1565
    %v1746 = vpack.c.bf16 %v1574, %v1570
    %v1747 = vpack.c.bf16 %v1575, %v1571
    %v1748 = vpack.c.bf16 %v1576, %v1572
    %v1749 = vpack.c.bf16 %v1577, %v1573
    %v1750 = vpack.c.bf16 %v1582, %v1578
    %v1751 = vpack.c.bf16 %v1583, %v1579
    %v1752 = vpack.c.bf16 %v1584, %v1580
    %v1753 = vpack.c.bf16 %v1585, %v1581
    %v1754 = vpack.c.bf16 %v1590, %v1586
    %v1755 = vpack.c.bf16 %v1591, %v1587
    %v1756 = vpack.c.bf16 %v1592, %v1588
    %v1757 = vpack.c.bf16 %v1593, %v1589
    %v1758 = vpack.c.bf16 %v1598, %v1594
    %v1759 = vpack.c.bf16 %v1599, %v1595
    %v1760 = vpack.c.bf16 %v1600, %v1596
    %v1761 = vpack.c.bf16 %v1601, %v1597
    %v1762 = vpack.c.bf16 %v1606, %v1602
    %v1763 = vpack.c.bf16 %v1607, %v1603
    %v1764 = vpack.c.bf16 %v1608, %v1604
    %v1765 = vpack.c.bf16 %v1609, %v1605
    %v1766 = vpack.c.bf16 %v1614, %v1610
    %v1767 = vpack.c.bf16 %v1615, %v1611
    %v1768 = vpack.c.bf16 %v1616, %v1612
    %v1769 = vpack.c.bf16 %v1617, %v1613
    %v1770 = vpack.c.bf16 %v1622, %v1618
    %v1771 = vpack.c.bf16 %v1623, %v1619
    %v1772 = vpack.c.bf16 %v1624, %v1620
    %v1773 = vpack.c.bf16 %v1625, %v1621
    %v1774 = vpack.c.bf16 %v1630, %v1626
    %v1775 = vpack.c.bf16 %v1631, %v1627
    %v1776 = vpack.c.bf16 %v1632, %v1628
    %v1777 = vpack.c.bf16 %v1633, %v1629
    %v1778 = vpack.c.bf16 %v1638, %v1634
    %v1779 = vpack.c.bf16 %v1639, %v1635
    %v1780 = vpack.c.bf16 %v1640, %v1636
    %v1781 = vpack.c.bf16 %v1641, %v1637
    %v1782 = vpack.c.bf16 %v1646, %v1642
    %v1783 = vpack.c.bf16 %v1647, %v1643
    %v1784 = vpack.c.bf16 %v1648, %v1644
    %v1785 = vpack.c.bf16 %v1649, %v1645
    %v1786 = vpack.c.bf16 %v1654, %v1650
    %v1787 = vpack.c.bf16 %v1655, %v1651
    %v1788 = vpack.c.bf16 %v1656, %v1652
    %v1789 = vpack.c.bf16 %v1657, %v1653
    %v1790 = vpack.c.bf16 %v1662, %v1658
    %v1791 = vpack.c.bf16 %v1663, %v1659
    %v1792 = vpack.c.bf16 %v1664, %v1660
    %v1793 = vpack.c.bf16 %v1665, %v1661
    %v1794 = vld [vmem:[#allocation9] sm:$0xff]
    %v1795 = vld [vmem:[#allocation9 + $0x8] sm:$0xff]
    %v1796 = vld [vmem:[#allocation9 + $0x10] sm:$0xff]
    %v1797 = vld [vmem:[#allocation9 + $0x18] sm:$0xff]
    %v1798 = vld [vmem:[#allocation9 + $0x20] sm:$0xff]
    %v1799 = vld [vmem:[#allocation9 + $0x28] sm:$0xff]
    %v1800 = vld [vmem:[#allocation9 + $0x30] sm:$0xff]
    %v1801 = vld [vmem:[#allocation9 + $0x38] sm:$0xff]
    %v1802 = vld [vmem:[#allocation9 + $0x40] sm:$0xff]
    %v1803 = vld [vmem:[#allocation9 + $0x48] sm:$0xff]
    %v1804 = vld [vmem:[#allocation9 + $0x50] sm:$0xff]
    %v1805 = vld [vmem:[#allocation9 + $0x58] sm:$0xff]
    %v1806 = vld [vmem:[#allocation9 + $0x60] sm:$0xff]
    %v1807 = vld [vmem:[#allocation9 + $0x68] sm:$0xff]
    %v1808 = vld [vmem:[#allocation9 + $0x70] sm:$0xff]
    %v1809 = vld [vmem:[#allocation9 + $0x78] sm:$0xff]
    %v1810 = vld [vmem:[#allocation9 + $0x80] sm:$0xff]
    %v1811 = vld [vmem:[#allocation9 + $0x88] sm:$0xff]
    %v1812 = vld [vmem:[#allocation9 + $0x90] sm:$0xff]
    %v1813 = vld [vmem:[#allocation9 + $0x98] sm:$0xff]
    %v1814 = vld [vmem:[#allocation9 + $0xa0] sm:$0xff]
    %v1815 = vld [vmem:[#allocation9 + $0xa8] sm:$0xff]
    %v1816 = vld [vmem:[#allocation9 + $0xb0] sm:$0xff]
    %v1817 = vld [vmem:[#allocation9 + $0xb8] sm:$0xff]
    %v1818 = vld [vmem:[#allocation9 + $0xc0] sm:$0xff]
    %v1819 = vld [vmem:[#allocation9 + $0xc8] sm:$0xff]
    %v1820 = vld [vmem:[#allocation9 + $0xd0] sm:$0xff]
    %v1821 = vld [vmem:[#allocation9 + $0xd8] sm:$0xff]
    %v1822 = vld [vmem:[#allocation9 + $0xe0] sm:$0xff]
    %v1823 = vld [vmem:[#allocation9 + $0xe8] sm:$0xff]
    %v1824 = vld [vmem:[#allocation9 + $0xf0] sm:$0xff]
    %v1825 = vld [vmem:[#allocation9 + $0xf8] sm:$0xff]
    %v1826 = vld [vmem:[#allocation9 + $0x100] sm:$0xff]
    %v1827 = vld [vmem:[#allocation9 + $0x108] sm:$0xff]
    %v1828 = vld [vmem:[#allocation9 + $0x110] sm:$0xff]
    %v1829 = vld [vmem:[#allocation9 + $0x118] sm:$0xff]
    %v1830 = vld [vmem:[#allocation9 + $0x120] sm:$0xff]
    %v1831 = vld [vmem:[#allocation9 + $0x128] sm:$0xff]
    %v1832 = vld [vmem:[#allocation9 + $0x130] sm:$0xff]
    %v1833 = vld [vmem:[#allocation9 + $0x138] sm:$0xff]
    %v1834 = vld [vmem:[#allocation9 + $0x140] sm:$0xff]
    %v1835 = vld [vmem:[#allocation9 + $0x148] sm:$0xff]
    %v1836 = vld [vmem:[#allocation9 + $0x150] sm:$0xff]
    %v1837 = vld [vmem:[#allocation9 + $0x158] sm:$0xff]
    %v1838 = vld [vmem:[#allocation9 + $0x160] sm:$0xff]
    %v1839 = vld [vmem:[#allocation9 + $0x168] sm:$0xff]
    %v1840 = vld [vmem:[#allocation9 + $0x170] sm:$0xff]
    %v1841 = vld [vmem:[#allocation9 + $0x178] sm:$0xff]
    %v1842 = vld [vmem:[#allocation9 + $0x180] sm:$0xff]
    %v1843 = vld [vmem:[#allocation9 + $0x188] sm:$0xff]
    %v1844 = vld [vmem:[#allocation9 + $0x190] sm:$0xff]
    %v1845 = vld [vmem:[#allocation9 + $0x198] sm:$0xff]
    %v1846 = vld [vmem:[#allocation9 + $0x1a0] sm:$0xff]
    %v1847 = vld [vmem:[#allocation9 + $0x1a8] sm:$0xff]
    %v1848 = vld [vmem:[#allocation9 + $0x1b0] sm:$0xff]
    %v1849 = vld [vmem:[#allocation9 + $0x1b8] sm:$0xff]
    %v1850 = vld [vmem:[#allocation9 + $0x1c0] sm:$0xff]
    %v1851 = vld [vmem:[#allocation9 + $0x1c8] sm:$0xff]
    %v1852 = vld [vmem:[#allocation9 + $0x1d0] sm:$0xff]
    %v1853 = vld [vmem:[#allocation9 + $0x1d8] sm:$0xff]
    %v1854 = vld [vmem:[#allocation9 + $0x1e0] sm:$0xff]
    %v1855 = vld [vmem:[#allocation9 + $0x1e8] sm:$0xff]
    %v1856 = vld [vmem:[#allocation9 + $0x1f0] sm:$0xff]
    %v1857 = vld [vmem:[#allocation9 + $0x1f8] sm:$0xff]
    %v1922 = vunpack.c.l.b16 %v1794
    %v1923 = vunpack.c.h.b16 %v1794
    %v1924 = vunpack.c.l.b16 %v1795
    %v1925 = vunpack.c.h.b16 %v1795
    %v1926 = vunpack.c.l.b16 %v1796
    %v1927 = vunpack.c.h.b16 %v1796
    %v1928 = vunpack.c.l.b16 %v1797
    %v1929 = vunpack.c.h.b16 %v1797
    %v1930 = vunpack.c.l.b16 %v1798
    %v1931 = vunpack.c.h.b16 %v1798
    %v1932 = vunpack.c.l.b16 %v1799
    %v1933 = vunpack.c.h.b16 %v1799
    %v1934 = vunpack.c.l.b16 %v1800
    %v1935 = vunpack.c.h.b16 %v1800
    %v1936 = vunpack.c.l.b16 %v1801
    %v1937 = vunpack.c.h.b16 %v1801
    %v1938 = vunpack.c.l.b16 %v1802
    %v1939 = vunpack.c.h.b16 %v1802
    %v1940 = vunpack.c.l.b16 %v1803
    %v1941 = vunpack.c.h.b16 %v1803
    %v1942 = vunpack.c.l.b16 %v1804
    %v1943 = vunpack.c.h.b16 %v1804
    %v1944 = vunpack.c.l.b16 %v1805
    %v1945 = vunpack.c.h.b16 %v1805
    %v1946 = vunpack.c.l.b16 %v1806
    %v1947 = vunpack.c.h.b16 %v1806
    %v1948 = vunpack.c.l.b16 %v1807
    %v1949 = vunpack.c.h.b16 %v1807
    %v1950 = vunpack.c.l.b16 %v1808
    %v1951 = vunpack.c.h.b16 %v1808
    %v1952 = vunpack.c.l.b16 %v1809
    %v1953 = vunpack.c.h.b16 %v1809
    %v1954 = vunpack.c.l.b16 %v1810
    %v1955 = vunpack.c.h.b16 %v1810
    %v1956 = vunpack.c.l.b16 %v1811
    %v1957 = vunpack.c.h.b16 %v1811
    %v1958 = vunpack.c.l.b16 %v1812
    %v1959 = vunpack.c.h.b16 %v1812
    %v1960 = vunpack.c.l.b16 %v1813
    %v1961 = vunpack.c.h.b16 %v1813
    %v1962 = vunpack.c.l.b16 %v1814
    %v1963 = vunpack.c.h.b16 %v1814
    %v1964 = vunpack.c.l.b16 %v1815
    %v1965 = vunpack.c.h.b16 %v1815
    %v1966 = vunpack.c.l.b16 %v1816
    %v1967 = vunpack.c.h.b16 %v1816
    %v1968 = vunpack.c.l.b16 %v1817
    %v1969 = vunpack.c.h.b16 %v1817
    %v1970 = vunpack.c.l.b16 %v1818
    %v1971 = vunpack.c.h.b16 %v1818
    %v1972 = vunpack.c.l.b16 %v1819
    %v1973 = vunpack.c.h.b16 %v1819
    %v1974 = vunpack.c.l.b16 %v1820
    %v1975 = vunpack.c.h.b16 %v1820
    %v1976 = vunpack.c.l.b16 %v1821
    %v1977 = vunpack.c.h.b16 %v1821
    %v1978 = vunpack.c.l.b16 %v1822
    %v1979 = vunpack.c.h.b16 %v1822
    %v1980 = vunpack.c.l.b16 %v1823
    %v1981 = vunpack.c.h.b16 %v1823
    %v1982 = vunpack.c.l.b16 %v1824
    %v1983 = vunpack.c.h.b16 %v1824
    %v1984 = vunpack.c.l.b16 %v1825
    %v1985 = vunpack.c.h.b16 %v1825
    %v1986 = vunpack.c.l.b16 %v1826
    %v1987 = vunpack.c.h.b16 %v1826
    %v1988 = vunpack.c.l.b16 %v1827
    %v1989 = vunpack.c.h.b16 %v1827
    %v1990 = vunpack.c.l.b16 %v1828
    %v1991 = vunpack.c.h.b16 %v1828
    %v1992 = vunpack.c.l.b16 %v1829
    %v1993 = vunpack.c.h.b16 %v1829
    %v1994 = vunpack.c.l.b16 %v1830
    %v1995 = vunpack.c.h.b16 %v1830
    %v1996 = vunpack.c.l.b16 %v1831
    %v1997 = vunpack.c.h.b16 %v1831
    %v1998 = vunpack.c.l.b16 %v1832
    %v1999 = vunpack.c.h.b16 %v1832
    %v2000 = vunpack.c.l.b16 %v1833
    %v2001 = vunpack.c.h.b16 %v1833
    %v2002 = vunpack.c.l.b16 %v1834
    %v2003 = vunpack.c.h.b16 %v1834
    %v2004 = vunpack.c.l.b16 %v1835
    %v2005 = vunpack.c.h.b16 %v1835
    %v2006 = vunpack.c.l.b16 %v1836
    %v2007 = vunpack.c.h.b16 %v1836
    %v2008 = vunpack.c.l.b16 %v1837
    %v2009 = vunpack.c.h.b16 %v1837
    %v2010 = vunpack.c.l.b16 %v1838
    %v2011 = vunpack.c.h.b16 %v1838
    %v2012 = vunpack.c.l.b16 %v1839
    %v2013 = vunpack.c.h.b16 %v1839
    %v2014 = vunpack.c.l.b16 %v1840
    %v2015 = vunpack.c.h.b16 %v1840
    %v2016 = vunpack.c.l.b16 %v1841
    %v2017 = vunpack.c.h.b16 %v1841
    %v2018 = vunpack.c.l.b16 %v1842
    %v2019 = vunpack.c.h.b16 %v1842
    %v2020 = vunpack.c.l.b16 %v1843
    %v2021 = vunpack.c.h.b16 %v1843
    %v2022 = vunpack.c.l.b16 %v1844
    %v2023 = vunpack.c.h.b16 %v1844
    %v2024 = vunpack.c.l.b16 %v1845
    %v2025 = vunpack.c.h.b16 %v1845
    %v2026 = vunpack.c.l.b16 %v1846
    %v2027 = vunpack.c.h.b16 %v1846
    %v2028 = vunpack.c.l.b16 %v1847
    %v2029 = vunpack.c.h.b16 %v1847
    %v2030 = vunpack.c.l.b16 %v1848
    %v2031 = vunpack.c.h.b16 %v1848
    %v2032 = vunpack.c.l.b16 %v1849
    %v2033 = vunpack.c.h.b16 %v1849
    %v2034 = vunpack.c.l.b16 %v1850
    %v2035 = vunpack.c.h.b16 %v1850
    %v2036 = vunpack.c.l.b16 %v1851
    %v2037 = vunpack.c.h.b16 %v1851
    %v2038 = vunpack.c.l.b16 %v1852
    %v2039 = vunpack.c.h.b16 %v1852
    %v2040 = vunpack.c.l.b16 %v1853
    %v2041 = vunpack.c.h.b16 %v1853
    %v2042 = vunpack.c.l.b16 %v1854
    %v2043 = vunpack.c.h.b16 %v1854
    %v2044 = vunpack.c.l.b16 %v1855
    %v2045 = vunpack.c.h.b16 %v1855
    %v2046 = vunpack.c.l.b16 %v1856
    %v2047 = vunpack.c.h.b16 %v1856
    %v2048 = vunpack.c.l.b16 %v1857
    %v2049 = vunpack.c.h.b16 %v1857
    %v2050 = vpack.c.b16 %v1924, %v1922
    %v2051 = vpack.c.b16 %v1925, %v1923
    %v2052 = vpack.c.b16 %v1928, %v1926
    %v2053 = vpack.c.b16 %v1929, %v1927
    %v2054 = vpack.c.b16 %v1932, %v1930
    %v2055 = vpack.c.b16 %v1933, %v1931
    %v2056 = vpack.c.b16 %v1936, %v1934
    %v2057 = vpack.c.b16 %v1937, %v1935
    %v2058 = vpack.c.b16 %v1940, %v1938
    %v2059 = vpack.c.b16 %v1941, %v1939
    %v2060 = vpack.c.b16 %v1944, %v1942
    %v2061 = vpack.c.b16 %v1945, %v1943
    %v2062 = vpack.c.b16 %v1948, %v1946
    %v2063 = vpack.c.b16 %v1949, %v1947
    %v2064 = vpack.c.b16 %v1952, %v1950
    %v2065 = vpack.c.b16 %v1953, %v1951
    %v2066 = vpack.c.b16 %v1956, %v1954
    %v2067 = vpack.c.b16 %v1957, %v1955
    %v2068 = vpack.c.b16 %v1960, %v1958
    %v2069 = vpack.c.b16 %v1961, %v1959
    %v2070 = vpack.c.b16 %v1964, %v1962
    %v2071 = vpack.c.b16 %v1965, %v1963
    %v2072 = vpack.c.b16 %v1968, %v1966
    %v2073 = vpack.c.b16 %v1969, %v1967
    %v2074 = vpack.c.b16 %v1972, %v1970
    %v2075 = vpack.c.b16 %v1973, %v1971
    %v2076 = vpack.c.b16 %v1976, %v1974
    %v2077 = vpack.c.b16 %v1977, %v1975
    %v2078 = vpack.c.b16 %v1980, %v1978
    %v2079 = vpack.c.b16 %v1981, %v1979
    %v2080 = vpack.c.b16 %v1984, %v1982
    %v2081 = vpack.c.b16 %v1985, %v1983
    %v2082 = vpack.c.b16 %v1988, %v1986
    %v2083 = vpack.c.b16 %v1989, %v1987
    %v2084 = vpack.c.b16 %v1992, %v1990
    %v2085 = vpack.c.b16 %v1993, %v1991
    %v2086 = vpack.c.b16 %v1996, %v1994
    %v2087 = vpack.c.b16 %v1997, %v1995
    %v2088 = vpack.c.b16 %v2000, %v1998
    %v2089 = vpack.c.b16 %v2001, %v1999
    %v2090 = vpack.c.b16 %v2004, %v2002
    %v2091 = vpack.c.b16 %v2005, %v2003
    %v2092 = vpack.c.b16 %v2008, %v2006
    %v2093 = vpack.c.b16 %v2009, %v2007
    %v2094 = vpack.c.b16 %v2012, %v2010
    %v2095 = vpack.c.b16 %v2013, %v2011
    %v2096 = vpack.c.b16 %v2016, %v2014
    %v2097 = vpack.c.b16 %v2017, %v2015
    %v2098 = vpack.c.b16 %v2020, %v2018
    %v2099 = vpack.c.b16 %v2021, %v2019
    %v2100 = vpack.c.b16 %v2024, %v2022
    %v2101 = vpack.c.b16 %v2025, %v2023
    %v2102 = vpack.c.b16 %v2028, %v2026
    %v2103 = vpack.c.b16 %v2029, %v2027
    %v2104 = vpack.c.b16 %v2032, %v2030
    %v2105 = vpack.c.b16 %v2033, %v2031
    %v2106 = vpack.c.b16 %v2036, %v2034
    %v2107 = vpack.c.b16 %v2037, %v2035
    %v2108 = vpack.c.b16 %v2040, %v2038
    %v2109 = vpack.c.b16 %v2041, %v2039
    %v2110 = vpack.c.b16 %v2044, %v2042
    %v2111 = vpack.c.b16 %v2045, %v2043
    %v2112 = vpack.c.b16 %v2048, %v2046
    %v2113 = vpack.c.b16 %v2049, %v2047
    %2178 = vmatprep.subr.bf16.mxu0 %v2051
    %2179 = vmatpush1.bf16.msra.mxu0 %v2050
    %2180 = vmatprep.subr.bf16.mxu0 %v2053
    %2181 = vmatpush1.bf16.msra.mxu0 %v2052
    %2182 = vmatprep.subr.bf16.mxu0 %v2055
    %2183 = vmatpush1.bf16.msra.mxu0 %v2054
    %2184 = vmatprep.subr.bf16.mxu0 %v2057
    %2185 = vmatpush1.bf16.msra.mxu0 %v2056
    %2186 = vmatprep.subr.bf16.mxu0 %v2059
    %2187 = vmatpush1.bf16.msra.mxu0 %v2058
    %2188 = vmatprep.subr.bf16.mxu0 %v2061
    %2189 = vmatpush1.bf16.msra.mxu0 %v2060
    %2190 = vmatprep.subr.bf16.mxu0 %v2063
    %2191 = vmatpush1.bf16.msra.mxu0 %v2062
    %2192 = vmatprep.subr.bf16.mxu0 %v2065
    %2193 = vmatpush1.bf16.msra.mxu0 %v2064
    %2194 = vmatprep.subr.bf16.mxu0 %v2067
    %2195 = vmatpush1.bf16.msra.mxu0 %v2066
    %2196 = vmatprep.subr.bf16.mxu0 %v2069
    %2197 = vmatpush1.bf16.msra.mxu0 %v2068
    %2198 = vmatprep.subr.bf16.mxu0 %v2071
    %2199 = vmatpush1.bf16.msra.mxu0 %v2070
    %2200 = vmatprep.subr.bf16.mxu0 %v2073
    %2201 = vmatpush1.bf16.msra.mxu0 %v2072
    %2202 = vmatprep.subr.bf16.mxu0 %v2075
    %2203 = vmatpush1.bf16.msra.mxu0 %v2074
    %2204 = vmatprep.subr.bf16.mxu0 %v2077
    %2205 = vmatpush1.bf16.msra.mxu0 %v2076
    %2206 = vmatprep.subr.bf16.mxu0 %v2079
    %2207 = vmatpush1.bf16.msra.mxu0 %v2078
    %2208 = vmatprep.subr.bf16.mxu0 %v2081
    %2209 = vmatpush1.bf16.msra.mxu0 %v2080
    %2210 = vmatprep.mubr.bf16.mxu0 %v1731
    %2211 = vmatmul.mubr.bf16.gmra.mrb[0].mxu0 %v1730
    %v2212 = vpop.f32.mrb[0].mxu0
    %v2213 = vadd.f32 0.0, %v2212
    %v2214 = vpop.f32.mrb[0].mxu0
    %v2215 = vadd.f32 0.0, %v2214
    %v2216 = vpop.f32.mrb[0].mxu0
    %v2217 = vadd.f32 0.0, %v2216
    %v2218 = vpop.f32.mrb[0].mxu0
    %v2219 = vadd.f32 0.0, %v2218
    %2220 = vmatprep.mubr.bf16.mxu0 %v1735
    %2221 = vmatmul.mubr.bf16.gmra.mrb[0].mxu0 %v1734
    %v2222 = vpop.f32.mrb[0].mxu0
    %v2223 = vadd.f32 0.0, %v2222
    %v2224 = vpop.f32.mrb[0].mxu0
    %v2225 = vadd.f32 0.0, %v2224
    %v2226 = vpop.f32.mrb[0].mxu0
    %v2227 = vadd.f32 0.0, %v2226
    %v2228 = vpop.f32.mrb[0].mxu0
    %v2229 = vadd.f32 0.0, %v2228
    %2230 = vmatprep.mubr.bf16.mxu0 %v1739
    %2231 = vmatmul.mubr.bf16.gmra.mrb[0].mxu0 %v1738
    %v2232 = vpop.f32.mrb[0].mxu0
    %v2233 = vadd.f32 0.0, %v2232
    %v2234 = vpop.f32.mrb[0].mxu0
    %v2235 = vadd.f32 0.0, %v2234
    %v2236 = vpop.f32.mrb[0].mxu0
    %v2237 = vadd.f32 0.0, %v2236
    %v2238 = vpop.f32.mrb[0].mxu0
    %v2239 = vadd.f32 0.0, %v2238
    %2240 = vmatprep.mubr.bf16.mxu0 %v1743
    %2241 = vmatmul.mubr.bf16.gmra.mrb[0].mxu0 %v1742
    %v2242 = vpop.f32.mrb[0].mxu0
    %v2243 = vadd.f32 0.0, %v2242
    %v2244 = vpop.f32.mrb[0].mxu0
    %v2245 = vadd.f32 0.0, %v2244
    %v2246 = vpop.f32.mrb[0].mxu0
    %v2247 = vadd.f32 0.0, %v2246
    %v2248 = vpop.f32.mrb[0].mxu0
    %v2249 = vadd.f32 0.0, %v2248
    %2250 = vmatprep.mubr.bf16.mxu0 %v1747
    %2251 = vmatmul.mubr.bf16.gmra.mrb[0].mxu0 %v1746
    %v2252 = vpop.f32.mrb[0].mxu0
    %v2253 = vadd.f32 0.0, %v2252
    %v2254 = vpop.f32.mrb[0].mxu0
    %v2255 = vadd.f32 0.0, %v2254
    %v2256 = vpop.f32.mrb[0].mxu0
    %v2257 = vadd.f32 0.0, %v2256
    %v2258 = vpop.f32.mrb[0].mxu0
    %v2259 = vadd.f32 0.0, %v2258
    %2260 = vmatprep.mubr.bf16.mxu0 %v1751
    %2261 = vmatmul.mubr.bf16.gmra.mrb[0].mxu0 %v1750
    %v2262 = vpop.f32.mrb[0].mxu0
    %v2263 = vadd.f32 0.0, %v2262
    %v2264 = vpop.f32.mrb[0].mxu0
    %v2265 = vadd.f32 0.0, %v2264
    %v2266 = vpop.f32.mrb[0].mxu0
    %v2267 = vadd.f32 0.0, %v2266
    %v2268 = vpop.f32.mrb[0].mxu0
    %v2269 = vadd.f32 0.0, %v2268
    %2270 = vmatprep.mubr.bf16.mxu0 %v1755
    %2271 = vmatmul.mubr.bf16.gmra.mrb[0].mxu0 %v1754
    %v2272 = vpop.f32.mrb[0].mxu0
    %v2273 = vadd.f32 0.0, %v2272
    %v2274 = vpop.f32.mrb[0].mxu0
    %v2275 = vadd.f32 0.0, %v2274
    %v2276 = vpop.f32.mrb[0].mxu0
    %v2277 = vadd.f32 0.0, %v2276
    %v2278 = vpop.f32.mrb[0].mxu0
    %v2279 = vadd.f32 0.0, %v2278
    %2280 = vmatprep.mubr.bf16.mxu0 %v1759
    %2281 = vmatmul.mubr.bf16.gmra.mrb[0].mxu0 %v1758
    %v2282 = vpop.f32.mrb[0].mxu0
    %v2283 = vadd.f32 0.0, %v2282
    %v2284 = vpop.f32.mrb[0].mxu0
    %v2285 = vadd.f32 0.0, %v2284
    %v2286 = vpop.f32.mrb[0].mxu0
    %v2287 = vadd.f32 0.0, %v2286
    %v2288 = vpop.f32.mrb[0].mxu0
    %v2289 = vadd.f32 0.0, %v2288
    %2290 = vmatprep.mubr.bf16.mxu0 %v1763
    %2291 = vmatmul.mubr.bf16.gmra.mrb[0].mxu0 %v1762
    %v2292 = vpop.f32.mrb[0].mxu0
    %v2293 = vadd.f32 0.0, %v2292
    %v2294 = vpop.f32.mrb[0].mxu0
    %v2295 = vadd.f32 0.0, %v2294
    %v2296 = vpop.f32.mrb[0].mxu0
    %v2297 = vadd.f32 0.0, %v2296
    %v2298 = vpop.f32.mrb[0].mxu0
    %v2299 = vadd.f32 0.0, %v2298
    %2300 = vmatprep.mubr.bf16.mxu0 %v1767
    %2301 = vmatmul.mubr.bf16.gmra.mrb[0].mxu0 %v1766
    %v2302 = vpop.f32.mrb[0].mxu0
    %v2303 = vadd.f32 0.0, %v2302
    %v2304 = vpop.f32.mrb[0].mxu0
    %v2305 = vadd.f32 0.0, %v2304
    %v2306 = vpop.f32.mrb[0].mxu0
    %v2307 = vadd.f32 0.0, %v2306
    %v2308 = vpop.f32.mrb[0].mxu0
    %v2309 = vadd.f32 0.0, %v2308
    %2310 = vmatprep.mubr.bf16.mxu0 %v1771
    %2311 = vmatmul.mubr.bf16.gmra.mrb[0].mxu0 %v1770
    %v2312 = vpop.f32.mrb[0].mxu0
    %v2313 = vadd.f32 0.0, %v2312
    %v2314 = vpop.f32.mrb[0].mxu0
    %v2315 = vadd.f32 0.0, %v2314
    %v2316 = vpop.f32.mrb[0].mxu0
    %v2317 = vadd.f32 0.0, %v2316
    %v2318 = vpop.f32.mrb[0].mxu0
    %v2319 = vadd.f32 0.0, %v2318
    %2320 = vmatprep.mubr.bf16.mxu0 %v1775
    %2321 = vmatmul.mubr.bf16.gmra.mrb[0].mxu0 %v1774
    %v2322 = vpop.f32.mrb[0].mxu0
    %v2323 = vadd.f32 0.0, %v2322
    %v2324 = vpop.f32.mrb[0].mxu0
    %v2325 = vadd.f32 0.0, %v2324
    %v2326 = vpop.f32.mrb[0].mxu0
    %v2327 = vadd.f32 0.0, %v2326
    %v2328 = vpop.f32.mrb[0].mxu0
    %v2329 = vadd.f32 0.0, %v2328
    %2330 = vmatprep.mubr.bf16.mxu0 %v1779
    %2331 = vmatmul.mubr.bf16.gmra.mrb[0].mxu0 %v1778
    %v2332 = vpop.f32.mrb[0].mxu0
    %v2333 = vadd.f32 0.0, %v2332
    %v2334 = vpop.f32.mrb[0].mxu0
    %v2335 = vadd.f32 0.0, %v2334
    %v2336 = vpop.f32.mrb[0].mxu0
    %v2337 = vadd.f32 0.0, %v2336
    %v2338 = vpop.f32.mrb[0].mxu0
    %v2339 = vadd.f32 0.0, %v2338
    %2340 = vmatprep.mubr.bf16.mxu0 %v1783
    %2341 = vmatmul.mubr.bf16.gmra.mrb[0].mxu0 %v1782
    %v2342 = vpop.f32.mrb[0].mxu0
    %v2343 = vadd.f32 0.0, %v2342
    %v2344 = vpop.f32.mrb[0].mxu0
    %v2345 = vadd.f32 0.0, %v2344
    %v2346 = vpop.f32.mrb[0].mxu0
    %v2347 = vadd.f32 0.0, %v2346
    %v2348 = vpop.f32.mrb[0].mxu0
    %v2349 = vadd.f32 0.0, %v2348
    %2350 = vmatprep.mubr.bf16.mxu0 %v1787
    %2351 = vmatmul.mubr.bf16.gmra.mrb[0].mxu0 %v1786
    %v2352 = vpop.f32.mrb[0].mxu0
    %v2353 = vadd.f32 0.0, %v2352
    %v2354 = vpop.f32.mrb[0].mxu0
    %v2355 = vadd.f32 0.0, %v2354
    %v2356 = vpop.f32.mrb[0].mxu0
    %v2357 = vadd.f32 0.0, %v2356
    %v2358 = vpop.f32.mrb[0].mxu0
    %v2359 = vadd.f32 0.0, %v2358
    %2360 = vmatprep.mubr.bf16.mxu0 %v1791
    %2361 = vmatmul.mubr.bf16.gmra.mrb[0].mxu0 %v1790
    %v2362 = vpop.f32.mrb[0].mxu0
    %v2363 = vadd.f32 0.0, %v2362
    %v2364 = vpop.f32.mrb[0].mxu0
    %v2365 = vadd.f32 0.0, %v2364
    %v2366 = vpop.f32.mrb[0].mxu0
    %v2367 = vadd.f32 0.0, %v2366
    %v2368 = vpop.f32.mrb[0].mxu0
    %v2369 = vadd.f32 0.0, %v2368
    %2370 = vdwg.mxu0
    %2371 = vmatprep.subr.bf16.mxu0 %v2083
    %2372 = vmatpush1.bf16.msra.mxu0 %v2082
    %2373 = vmatprep.subr.bf16.mxu0 %v2085
    %2374 = vmatpush1.bf16.msra.mxu0 %v2084
    %2375 = vmatprep.subr.bf16.mxu0 %v2087
    %2376 = vmatpush1.bf16.msra.mxu0 %v2086
    %2377 = vmatprep.subr.bf16.mxu0 %v2089
    %2378 = vmatpush1.bf16.msra.mxu0 %v2088
    %2379 = vmatprep.subr.bf16.mxu0 %v2091
    %2380 = vmatpush1.bf16.msra.mxu0 %v2090
    %2381 = vmatprep.subr.bf16.mxu0 %v2093
    %2382 = vmatpush1.bf16.msra.mxu0 %v2092
    %2383 = vmatprep.subr.bf16.mxu0 %v2095
    %2384 = vmatpush1.bf16.msra.mxu0 %v2094
    %2385 = vmatprep.subr.bf16.mxu0 %v2097
    %2386 = vmatpush1.bf16.msra.mxu0 %v2096
    %2387 = vmatprep.subr.bf16.mxu0 %v2099
    %2388 = vmatpush1.bf16.msra.mxu0 %v2098
    %2389 = vmatprep.subr.bf16.mxu0 %v2101
    %2390 = vmatpush1.bf16.msra.mxu0 %v2100
    %2391 = vmatprep.subr.bf16.mxu0 %v2103
    %2392 = vmatpush1.bf16.msra.mxu0 %v2102
    %2393 = vmatprep.subr.bf16.mxu0 %v2105
    %2394 = vmatpush1.bf16.msra.mxu0 %v2104
    %2395 = vmatprep.subr.bf16.mxu0 %v2107
    %2396 = vmatpush1.bf16.msra.mxu0 %v2106
    %2397 = vmatprep.subr.bf16.mxu0 %v2109
    %2398 = vmatpush1.bf16.msra.mxu0 %v2108
    %2399 = vmatprep.subr.bf16.mxu0 %v2111
    %2400 = vmatpush1.bf16.msra.mxu0 %v2110
    %2401 = vmatprep.subr.bf16.mxu0 %v2113
    %2402 = vmatpush1.bf16.msra.mxu0 %v2112
    %2403 = vmatprep.mubr.bf16.mxu0 %v1733
    %2404 = vmatmul.mubr.bf16.gmra.mrb[0].mxu0 %v1732
    %v2405 = vpop.f32.mrb[0].mxu0
    %v2406 = vadd.f32 %v2213, %v2405
    %v2407 = vpop.f32.mrb[0].mxu0
    %v2408 = vadd.f32 %v2215, %v2407
    %v2409 = vpop.f32.mrb[0].mxu0
    %v2410 = vadd.f32 %v2217, %v2409
    %v2411 = vpop.f32.mrb[0].mxu0
    %v2412 = vadd.f32 %v2219, %v2411
    %2413 = vmatprep.mubr.bf16.mxu0 %v1737
    %2414 = vmatmul.mubr.bf16.gmra.mrb[0].mxu0 %v1736
    %v2415 = vpop.f32.mrb[0].mxu0
    %v2416 = vadd.f32 %v2223, %v2415
    %v2417 = vpop.f32.mrb[0].mxu0
    %v2418 = vadd.f32 %v2225, %v2417
    %v2419 = vpop.f32.mrb[0].mxu0
    %v2420 = vadd.f32 %v2227, %v2419
    %v2421 = vpop.f32.mrb[0].mxu0
    %v2422 = vadd.f32 %v2229, %v2421
    %2423 = vmatprep.mubr.bf16.mxu0 %v1741
    %2424 = vmatmul.mubr.bf16.gmra.mrb[0].mxu0 %v1740
    %v2425 = vpop.f32.mrb[0].mxu0
    %v2426 = vadd.f32 %v2233, %v2425
    %v2427 = vpop.f32.mrb[0].mxu0
    %v2428 = vadd.f32 %v2235, %v2427
    %v2429 = vpop.f32.mrb[0].mxu0
    %v2430 = vadd.f32 %v2237, %v2429
    %v2431 = vpop.f32.mrb[0].mxu0
    %v2432 = vadd.f32 %v2239, %v2431
    %2433 = vmatprep.mubr.bf16.mxu0 %v1745
    %2434 = vmatmul.mubr.bf16.gmra.mrb[0].mxu0 %v1744
    %v2435 = vpop.f32.mrb[0].mxu0
    %v2436 = vadd.f32 %v2243, %v2435
    %v2437 = vpop.f32.mrb[0].mxu0
    %v2438 = vadd.f32 %v2245, %v2437
    %v2439 = vpop.f32.mrb[0].mxu0
    %v2440 = vadd.f32 %v2247, %v2439
    %v2441 = vpop.f32.mrb[0].mxu0
    %v2442 = vadd.f32 %v2249, %v2441
    %2443 = vmatprep.mubr.bf16.mxu0 %v1749
    %2444 = vmatmul.mubr.bf16.gmra.mrb[0].mxu0 %v1748
    %v2445 = vpop.f32.mrb[0].mxu0
    %v2446 = vadd.f32 %v2253, %v2445
    %v2447 = vpop.f32.mrb[0].mxu0
    %v2448 = vadd.f32 %v2255, %v2447
    %v2449 = vpop.f32.mrb[0].mxu0
    %v2450 = vadd.f32 %v2257, %v2449
    %v2451 = vpop.f32.mrb[0].mxu0
    %v2452 = vadd.f32 %v2259, %v2451
    %2453 = vmatprep.mubr.bf16.mxu0 %v1753
    %2454 = vmatmul.mubr.bf16.gmra.mrb[0].mxu0 %v1752
    %v2455 = vpop.f32.mrb[0].mxu0
    %v2456 = vadd.f32 %v2263, %v2455
    %v2457 = vpop.f32.mrb[0].mxu0
    %v2458 = vadd.f32 %v2265, %v2457
    %v2459 = vpop.f32.mrb[0].mxu0
    %v2460 = vadd.f32 %v2267, %v2459
    %v2461 = vpop.f32.mrb[0].mxu0
    %v2462 = vadd.f32 %v2269, %v2461
    %2463 = vmatprep.mubr.bf16.mxu0 %v1757
    %2464 = vmatmul.mubr.bf16.gmra.mrb[0].mxu0 %v1756
    %v2465 = vpop.f32.mrb[0].mxu0
    %v2466 = vadd.f32 %v2273, %v2465
    %v2467 = vpop.f32.mrb[0].mxu0
    %v2468 = vadd.f32 %v2275, %v2467
    %v2469 = vpop.f32.mrb[0].mxu0
    %v2470 = vadd.f32 %v2277, %v2469
    %v2471 = vpop.f32.mrb[0].mxu0
    %v2472 = vadd.f32 %v2279, %v2471
    %2473 = vmatprep.mubr.bf16.mxu0 %v1761
    %2474 = vmatmul.mubr.bf16.gmra.mrb[0].mxu0 %v1760
    %v2475 = vpop.f32.mrb[0].mxu0
    %v2476 = vadd.f32 %v2283, %v2475
    %v2477 = vpop.f32.mrb[0].mxu0
    %v2478 = vadd.f32 %v2285, %v2477
    %v2479 = vpop.f32.mrb[0].mxu0
    %v2480 = vadd.f32 %v2287, %v2479
    %v2481 = vpop.f32.mrb[0].mxu0
    %v2482 = vadd.f32 %v2289, %v2481
    %2483 = vmatprep.mubr.bf16.mxu0 %v1765
    %2484 = vmatmul.mubr.bf16.gmra.mrb[0].mxu0 %v1764
    %v2485 = vpop.f32.mrb[0].mxu0
    %v2486 = vadd.f32 %v2293, %v2485
    %v2487 = vpop.f32.mrb[0].mxu0
    %v2488 = vadd.f32 %v2295, %v2487
    %v2489 = vpop.f32.mrb[0].mxu0
    %v2490 = vadd.f32 %v2297, %v2489
    %v2491 = vpop.f32.mrb[0].mxu0
    %v2492 = vadd.f32 %v2299, %v2491
    %2493 = vmatprep.mubr.bf16.mxu0 %v1769
    %2494 = vmatmul.mubr.bf16.gmra.mrb[0].mxu0 %v1768
    %v2495 = vpop.f32.mrb[0].mxu0
    %v2496 = vadd.f32 %v2303, %v2495
    %v2497 = vpop.f32.mrb[0].mxu0
    %v2498 = vadd.f32 %v2305, %v2497
    %v2499 = vpop.f32.mrb[0].mxu0
    %v2500 = vadd.f32 %v2307, %v2499
    %v2501 = vpop.f32.mrb[0].mxu0
    %v2502 = vadd.f32 %v2309, %v2501
    %2503 = vmatprep.mubr.bf16.mxu0 %v1773
    %2504 = vmatmul.mubr.bf16.gmra.mrb[0].mxu0 %v1772
    %v2505 = vpop.f32.mrb[0].mxu0
    %v2506 = vadd.f32 %v2313, %v2505
    %v2507 = vpop.f32.mrb[0].mxu0
    %v2508 = vadd.f32 %v2315, %v2507
    %v2509 = vpop.f32.mrb[0].mxu0
    %v2510 = vadd.f32 %v2317, %v2509
    %v2511 = vpop.f32.mrb[0].mxu0
    %v2512 = vadd.f32 %v2319, %v2511
    %2513 = vmatprep.mubr.bf16.mxu0 %v1777
    %2514 = vmatmul.mubr.bf16.gmra.mrb[0].mxu0 %v1776
    %v2515 = vpop.f32.mrb[0].mxu0
    %v2516 = vadd.f32 %v2323, %v2515
    %v2517 = vpop.f32.mrb[0].mxu0
    %v2518 = vadd.f32 %v2325, %v2517
    %v2519 = vpop.f32.mrb[0].mxu0
    %v2520 = vadd.f32 %v2327, %v2519
    %v2521 = vpop.f32.mrb[0].mxu0
    %v2522 = vadd.f32 %v2329, %v2521
    %2523 = vmatprep.mubr.bf16.mxu0 %v1781
    %2524 = vmatmul.mubr.bf16.gmra.mrb[0].mxu0 %v1780
    %v2525 = vpop.f32.mrb[0].mxu0
    %v2526 = vadd.f32 %v2333, %v2525
    %v2527 = vpop.f32.mrb[0].mxu0
    %v2528 = vadd.f32 %v2335, %v2527
    %v2529 = vpop.f32.mrb[0].mxu0
    %v2530 = vadd.f32 %v2337, %v2529
    %v2531 = vpop.f32.mrb[0].mxu0
    %v2532 = vadd.f32 %v2339, %v2531
    %2533 = vmatprep.mubr.bf16.mxu0 %v1785
    %2534 = vmatmul.mubr.bf16.gmra.mrb[0].mxu0 %v1784
    %v2535 = vpop.f32.mrb[0].mxu0
    %v2536 = vadd.f32 %v2343, %v2535
    %v2537 = vpop.f32.mrb[0].mxu0
    %v2538 = vadd.f32 %v2345, %v2537
    %v2539 = vpop.f32.mrb[0].mxu0
    %v2540 = vadd.f32 %v2347, %v2539
    %v2541 = vpop.f32.mrb[0].mxu0
    %v2542 = vadd.f32 %v2349, %v2541
    %2543 = vmatprep.mubr.bf16.mxu0 %v1789
    %2544 = vmatmul.mubr.bf16.gmra.mrb[0].mxu0 %v1788
    %v2545 = vpop.f32.mrb[0].mxu0
    %v2546 = vadd.f32 %v2353, %v2545
    %v2547 = vpop.f32.mrb[0].mxu0
    %v2548 = vadd.f32 %v2355, %v2547
    %v2549 = vpop.f32.mrb[0].mxu0
    %v2550 = vadd.f32 %v2357, %v2549
    %v2551 = vpop.f32.mrb[0].mxu0
    %v2552 = vadd.f32 %v2359, %v2551
    %2553 = vmatprep.mubr.bf16.mxu0 %v1793
    %2554 = vmatmul.mubr.bf16.gmra.mrb[0].mxu0 %v1792
    %v2555 = vpop.f32.mrb[0].mxu0
    %v2556 = vadd.f32 %v2363, %v2555
    %v2557 = vpop.f32.mrb[0].mxu0
    %v2558 = vadd.f32 %v2365, %v2557
    %v2559 = vpop.f32.mrb[0].mxu0
    %v2560 = vadd.f32 %v2367, %v2559
    %v2561 = vpop.f32.mrb[0].mxu0
    %v2562 = vadd.f32 %v2369, %v2561
    %2563 = vdwg.mxu0
    %v2564 = vadd.f32 %v1666, %v2406
    %v2565 = vadd.f32 %v1667, %v2408
    %v2566 = vadd.f32 %v1668, %v2410
    %v2567 = vadd.f32 %v1669, %v2412
    %v2568 = vadd.f32 %v1670, %v2416
    %v2569 = vadd.f32 %v1671, %v2418
    %v2570 = vadd.f32 %v1672, %v2420
    %v2571 = vadd.f32 %v1673, %v2422
    %v2572 = vadd.f32 %v1674, %v2426
    %v2573 = vadd.f32 %v1675, %v2428
    %v2574 = vadd.f32 %v1676, %v2430
    %v2575 = vadd.f32 %v1677, %v2432
    %v2576 = vadd.f32 %v1678, %v2436
    %v2577 = vadd.f32 %v1679, %v2438
    %v2578 = vadd.f32 %v1680, %v2440
    %v2579 = vadd.f32 %v1681, %v2442
    %v2580 = vadd.f32 %v1682, %v2446
    %v2581 = vadd.f32 %v1683, %v2448
    %v2582 = vadd.f32 %v1684, %v2450
    %v2583 = vadd.f32 %v1685, %v2452
    %v2584 = vadd.f32 %v1686, %v2456
    %v2585 = vadd.f32 %v1687, %v2458
    %v2586 = vadd.f32 %v1688, %v2460
    %v2587 = vadd.f32 %v1689, %v2462
    %v2588 = vadd.f32 %v1690, %v2466
    %v2589 = vadd.f32 %v1691, %v2468
    %v2590 = vadd.f32 %v1692, %v2470
    %v2591 = vadd.f32 %v1693, %v2472
    %v2592 = vadd.f32 %v1694, %v2476
    %v2593 = vadd.f32 %v1695, %v2478
    %v2594 = vadd.f32 %v1696, %v2480
    %v2595 = vadd.f32 %v1697, %v2482
    %v2596 = vadd.f32 %v1698, %v2486
    %v2597 = vadd.f32 %v1699, %v2488
    %v2598 = vadd.f32 %v1700, %v2490
    %v2599 = vadd.f32 %v1701, %v2492
    %v2600 = vadd.f32 %v1702, %v2496
    %v2601 = vadd.f32 %v1703, %v2498
    %v2602 = vadd.f32 %v1704, %v2500
    %v2603 = vadd.f32 %v1705, %v2502
    %v2604 = vadd.f32 %v1706, %v2506
    %v2605 = vadd.f32 %v1707, %v2508
    %v2606 = vadd.f32 %v1708, %v2510
    %v2607 = vadd.f32 %v1709, %v2512
    %v2608 = vadd.f32 %v1710, %v2516
    %v2609 = vadd.f32 %v1711, %v2518
    %v2610 = vadd.f32 %v1712, %v2520
    %v2611 = vadd.f32 %v1713, %v2522
    %v2612 = vadd.f32 %v1714, %v2526
    %v2613 = vadd.f32 %v1715, %v2528
    %v2614 = vadd.f32 %v1716, %v2530
    %v2615 = vadd.f32 %v1717, %v2532
    %v2616 = vadd.f32 %v1718, %v2536
    %v2617 = vadd.f32 %v1719, %v2538
    %v2618 = vadd.f32 %v1720, %v2540
    %v2619 = vadd.f32 %v1721, %v2542
    %v2620 = vadd.f32 %v1722, %v2546
    %v2621 = vadd.f32 %v1723, %v2548
    %v2622 = vadd.f32 %v1724, %v2550
    %v2623 = vadd.f32 %v1725, %v2552
    %v2624 = vadd.f32 %v1726, %v2556
    %v2625 = vadd.f32 %v1727, %v2558
    %v2626 = vadd.f32 %v1728, %v2560
    %v2627 = vadd.f32 %v1729, %v2562
    %2628 = vst [vmem:[#allocation2] sm:$0xff] %v2564
    %2629 = vst [vmem:[#allocation2 + $0x8] sm:$0xff] %v2565
    %2630 = vst [vmem:[#allocation2 + $0x10] sm:$0xff] %v2566
    %2631 = vst [vmem:[#allocation2 + $0x18] sm:$0xff] %v2567
    %2632 = vst [vmem:[#allocation2 + $0x20] sm:$0xff] %v2568
    %2633 = vst [vmem:[#allocation2 + $0x28] sm:$0xff] %v2569
    %2634 = vst [vmem:[#allocation2 + $0x30] sm:$0xff] %v2570
    %2635 = vst [vmem:[#allocation2 + $0x38] sm:$0xff] %v2571
    %2636 = vst [vmem:[#allocation2 + $0x40] sm:$0xff] %v2572
    %2637 = vst [vmem:[#allocation2 + $0x48] sm:$0xff] %v2573
    %2638 = vst [vmem:[#allocation2 + $0x50] sm:$0xff] %v2574
    %2639 = vst [vmem:[#allocation2 + $0x58] sm:$0xff] %v2575
    %2640 = vst [vmem:[#allocation2 + $0x60] sm:$0xff] %v2576
    %2641 = vst [vmem:[#allocation2 + $0x68] sm:$0xff] %v2577
    %2642 = vst [vmem:[#allocation2 + $0x70] sm:$0xff] %v2578
    %2643 = vst [vmem:[#allocation2 + $0x78] sm:$0xff] %v2579
    %2644 = vst [vmem:[#allocation2 + $0x80] sm:$0xff] %v2580
    %2645 = vst [vmem:[#allocation2 + $0x88] sm:$0xff] %v2581
    %2646 = vst [vmem:[#allocation2 + $0x90] sm:$0xff] %v2582
    %2647 = vst [vmem:[#allocation2 + $0x98] sm:$0xff] %v2583
    %2648 = vst [vmem:[#allocation2 + $0xa0] sm:$0xff] %v2584
    %2649 = vst [vmem:[#allocation2 + $0xa8] sm:$0xff] %v2585
    %2650 = vst [vmem:[#allocation2 + $0xb0] sm:$0xff] %v2586
    %2651 = vst [vmem:[#allocation2 + $0xb8] sm:$0xff] %v2587
    %2652 = vst [vmem:[#allocation2 + $0xc0] sm:$0xff] %v2588
    %2653 = vst [vmem:[#allocation2 + $0xc8] sm:$0xff] %v2589
    %2654 = vst [vmem:[#allocation2 + $0xd0] sm:$0xff] %v2590
    %2655 = vst [vmem:[#allocation2 + $0xd8] sm:$0xff] %v2591
    %2656 = vst [vmem:[#allocation2 + $0xe0] sm:$0xff] %v2592
    %2657 = vst [vmem:[#allocation2 + $0xe8] sm:$0xff] %v2593
    %2658 = vst [vmem:[#allocation2 + $0xf0] sm:$0xff] %v2594
    %2659 = vst [vmem:[#allocation2 + $0xf8] sm:$0xff] %v2595
    %2660 = vst [vmem:[#allocation2 + $0x100] sm:$0xff] %v2596
    %2661 = vst [vmem:[#allocation2 + $0x108] sm:$0xff] %v2597
    %2662 = vst [vmem:[#allocation2 + $0x110] sm:$0xff] %v2598
    %2663 = vst [vmem:[#allocation2 + $0x118] sm:$0xff] %v2599
    %2664 = vst [vmem:[#allocation2 + $0x120] sm:$0xff] %v2600
    %2665 = vst [vmem:[#allocation2 + $0x128] sm:$0xff] %v2601
    %2666 = vst [vmem:[#allocation2 + $0x130] sm:$0xff] %v2602
    %2667 = vst [vmem:[#allocation2 + $0x138] sm:$0xff] %v2603
    %2668 = vst [vmem:[#allocation2 + $0x140] sm:$0xff] %v2604
    %2669 = vst [vmem:[#allocation2 + $0x148] sm:$0xff] %v2605
    %2670 = vst [vmem:[#allocation2 + $0x150] sm:$0xff] %v2606
    %2671 = vst [vmem:[#allocation2 + $0x158] sm:$0xff] %v2607
    %2672 = vst [vmem:[#allocation2 + $0x160] sm:$0xff] %v2608
    %2673 = vst [vmem:[#allocation2 + $0x168] sm:$0xff] %v2609
    %2674 = vst [vmem:[#allocation2 + $0x170] sm:$0xff] %v2610
    %2675 = vst [vmem:[#allocation2 + $0x178] sm:$0xff] %v2611
    %2676 = vst [vmem:[#allocation2 + $0x180] sm:$0xff] %v2612
    %2677 = vst [vmem:[#allocation2 + $0x188] sm:$0xff] %v2613
    %2678 = vst [vmem:[#allocation2 + $0x190] sm:$0xff] %v2614
    %2679 = vst [vmem:[#allocation2 + $0x198] sm:$0xff] %v2615
    %2680 = vst [vmem:[#allocation2 + $0x1a0] sm:$0xff] %v2616
    %2681 = vst [vmem:[#allocation2 + $0x1a8] sm:$0xff] %v2617
    %2682 = vst [vmem:[#allocation2 + $0x1b0] sm:$0xff] %v2618
    %2683 = vst [vmem:[#allocation2 + $0x1b8] sm:$0xff] %v2619
    %2684 = vst [vmem:[#allocation2 + $0x1c0] sm:$0xff] %v2620
    %2685 = vst [vmem:[#allocation2 + $0x1c8] sm:$0xff] %v2621
    %2686 = vst [vmem:[#allocation2 + $0x1d0] sm:$0xff] %v2622
    %2687 = vst [vmem:[#allocation2 + $0x1d8] sm:$0xff] %v2623
    %2688 = vst [vmem:[#allocation2 + $0x1e0] sm:$0xff] %v2624
    %2689 = vst [vmem:[#allocation2 + $0x1e8] sm:$0xff] %v2625
    %2690 = vst [vmem:[#allocation2 + $0x1f0] sm:$0xff] %v2626
    %2691 = vst [vmem:[#allocation2 + $0x1f8] sm:$0xff] %v2627
    %v2692 = vld [vmem:[#allocation6 + $0x10] sm:$0xff]
    %v2693 = vld [vmem:[#allocation6 + $0x18] sm:$0xff]
    %v2694 = vld [vmem:[#allocation6 + $0x30] sm:$0xff]
    %v2695 = vld [vmem:[#allocation6 + $0x38] sm:$0xff]
    %v2696 = vld [vmem:[#allocation6 + $0x50] sm:$0xff]
    %v2697 = vld [vmem:[#allocation6 + $0x58] sm:$0xff]
    %v2698 = vld [vmem:[#allocation6 + $0x70] sm:$0xff]
    %v2699 = vld [vmem:[#allocation6 + $0x78] sm:$0xff]
    %v2700 = vld [vmem:[#allocation6 + $0x90] sm:$0xff]
    %v2701 = vld [vmem:[#allocation6 + $0x98] sm:$0xff]
    %v2702 = vld [vmem:[#allocation6 + $0xb0] sm:$0xff]
    %v2703 = vld [vmem:[#allocation6 + $0xb8] sm:$0xff]
    %v2704 = vld [vmem:[#allocation6 + $0xd0] sm:$0xff]
    %v2705 = vld [vmem:[#allocation6 + $0xd8] sm:$0xff]
    %v2706 = vld [vmem:[#allocation6 + $0xf0] sm:$0xff]
    %v2707 = vld [vmem:[#allocation6 + $0xf8] sm:$0xff]
    %v2708 = vld [vmem:[#allocation6 + $0x110] sm:$0xff]
    %v2709 = vld [vmem:[#allocation6 + $0x118] sm:$0xff]
    %v2710 = vld [vmem:[#allocation6 + $0x130] sm:$0xff]
    %v2711 = vld [vmem:[#allocation6 + $0x138] sm:$0xff]
    %v2712 = vld [vmem:[#allocation6 + $0x150] sm:$0xff]
    %v2713 = vld [vmem:[#allocation6 + $0x158] sm:$0xff]
    %v2714 = vld [vmem:[#allocation6 + $0x170] sm:$0xff]
    %v2715 = vld [vmem:[#allocation6 + $0x178] sm:$0xff]
    %v2716 = vld [vmem:[#allocation6 + $0x190] sm:$0xff]
    %v2717 = vld [vmem:[#allocation6 + $0x198] sm:$0xff]
    %v2718 = vld [vmem:[#allocation6 + $0x1b0] sm:$0xff]
    %v2719 = vld [vmem:[#allocation6 + $0x1b8] sm:$0xff]
    %v2720 = vld [vmem:[#allocation6 + $0x1d0] sm:$0xff]
    %v2721 = vld [vmem:[#allocation6 + $0x1d8] sm:$0xff]
    %v2722 = vld [vmem:[#allocation6 + $0x1f0] sm:$0xff]
    %v2723 = vld [vmem:[#allocation6 + $0x1f8] sm:$0xff]
    %v2724 = vld [vmem:[#allocation6 + $0x210] sm:$0xff]
    %v2725 = vld [vmem:[#allocation6 + $0x218] sm:$0xff]
    %v2726 = vld [vmem:[#allocation6 + $0x230] sm:$0xff]
    %v2727 = vld [vmem:[#allocation6 + $0x238] sm:$0xff]
    %v2728 = vld [vmem:[#allocation6 + $0x250] sm:$0xff]
    %v2729 = vld [vmem:[#allocation6 + $0x258] sm:$0xff]
    %v2730 = vld [vmem:[#allocation6 + $0x270] sm:$0xff]
    %v2731 = vld [vmem:[#allocation6 + $0x278] sm:$0xff]
    %v2732 = vld [vmem:[#allocation6 + $0x290] sm:$0xff]
    %v2733 = vld [vmem:[#allocation6 + $0x298] sm:$0xff]
    %v2734 = vld [vmem:[#allocation6 + $0x2b0] sm:$0xff]
    %v2735 = vld [vmem:[#allocation6 + $0x2b8] sm:$0xff]
    %v2736 = vld [vmem:[#allocation6 + $0x2d0] sm:$0xff]
    %v2737 = vld [vmem:[#allocation6 + $0x2d8] sm:$0xff]
    %v2738 = vld [vmem:[#allocation6 + $0x2f0] sm:$0xff]
    %v2739 = vld [vmem:[#allocation6 + $0x2f8] sm:$0xff]
    %v2740 = vld [vmem:[#allocation6 + $0x310] sm:$0xff]
    %v2741 = vld [vmem:[#allocation6 + $0x318] sm:$0xff]
    %v2742 = vld [vmem:[#allocation6 + $0x330] sm:$0xff]
    %v2743 = vld [vmem:[#allocation6 + $0x338] sm:$0xff]
    %v2744 = vld [vmem:[#allocation6 + $0x350] sm:$0xff]
    %v2745 = vld [vmem:[#allocation6 + $0x358] sm:$0xff]
    %v2746 = vld [vmem:[#allocation6 + $0x370] sm:$0xff]
    %v2747 = vld [vmem:[#allocation6 + $0x378] sm:$0xff]
    %v2748 = vld [vmem:[#allocation6 + $0x390] sm:$0xff]
    %v2749 = vld [vmem:[#allocation6 + $0x398] sm:$0xff]
    %v2750 = vld [vmem:[#allocation6 + $0x3b0] sm:$0xff]
    %v2751 = vld [vmem:[#allocation6 + $0x3b8] sm:$0xff]
    %v2752 = vld [vmem:[#allocation6 + $0x3d0] sm:$0xff]
    %v2753 = vld [vmem:[#allocation6 + $0x3d8] sm:$0xff]
    %v2754 = vld [vmem:[#allocation6 + $0x3f0] sm:$0xff]
    %v2755 = vld [vmem:[#allocation6 + $0x3f8] sm:$0xff]
    %v2756 = vld [vmem:[#allocation8 + $0x4] sm:$0xf]
    %v2758 = vlaneseq
    %v2759 = vshrl.u32 %v2758, 7
    %v2760 = vsub.s32 0, %v2759
    %v2761 = vrot.slane %v2756, %v2760
    %v2762 = vlaneseq
    %v2763 = vshrl.u32 %v2762, 7
    %v2764 = vsub.s32 1, %v2763
    %v2765 = vrot.slane %v2756, %v2764
    %v2766 = vlaneseq
    %v2767 = vshrl.u32 %v2766, 7
    %v2768 = vsub.s32 2, %v2767
    %v2769 = vrot.slane %v2756, %v2768
    %v2770 = vlaneseq
    %v2771 = vshrl.u32 %v2770, 7
    %v2772 = vsub.s32 3, %v2771
    %v2773 = vrot.slane %v2756, %v2772
    %v2842 = vunpack.c.l.b16 %v2692
    %v2843 = vunpack.c.h.b16 %v2692
    %v2844 = vunpack.c.l.b16 %v2693
    %v2845 = vunpack.c.h.b16 %v2693
    %v2846 = vunpack.c.l.b16 %v2694
    %v2847 = vunpack.c.h.b16 %v2694
    %v2848 = vunpack.c.l.b16 %v2695
    %v2849 = vunpack.c.h.b16 %v2695
    %v2850 = vunpack.c.l.b16 %v2696
    %v2851 = vunpack.c.h.b16 %v2696
    %v2852 = vunpack.c.l.b16 %v2697
    %v2853 = vunpack.c.h.b16 %v2697
    %v2854 = vunpack.c.l.b16 %v2698
    %v2855 = vunpack.c.h.b16 %v2698
    %v2856 = vunpack.c.l.b16 %v2699
    %v2857 = vunpack.c.h.b16 %v2699
    %v2858 = vunpack.c.l.b16 %v2700
    %v2859 = vunpack.c.h.b16 %v2700
    %v2860 = vunpack.c.l.b16 %v2701
    %v2861 = vunpack.c.h.b16 %v2701
    %v2862 = vunpack.c.l.b16 %v2702
    %v2863 = vunpack.c.h.b16 %v2702
    %v2864 = vunpack.c.l.b16 %v2703
    %v2865 = vunpack.c.h.b16 %v2703
    %v2866 = vunpack.c.l.b16 %v2704
    %v2867 = vunpack.c.h.b16 %v2704
    %v2868 = vunpack.c.l.b16 %v2705
    %v2869 = vunpack.c.h.b16 %v2705
    %v2870 = vunpack.c.l.b16 %v2706
    %v2871 = vunpack.c.h.b16 %v2706
    %v2872 = vunpack.c.l.b16 %v2707
    %v2873 = vunpack.c.h.b16 %v2707
    %v2874 = vunpack.c.l.b16 %v2708
    %v2875 = vunpack.c.h.b16 %v2708
    %v2876 = vunpack.c.l.b16 %v2709
    %v2877 = vunpack.c.h.b16 %v2709
    %v2878 = vunpack.c.l.b16 %v2710
    %v2879 = vunpack.c.h.b16 %v2710
    %v2880 = vunpack.c.l.b16 %v2711
    %v2881 = vunpack.c.h.b16 %v2711
    %v2882 = vunpack.c.l.b16 %v2712
    %v2883 = vunpack.c.h.b16 %v2712
    %v2884 = vunpack.c.l.b16 %v2713
    %v2885 = vunpack.c.h.b16 %v2713
    %v2886 = vunpack.c.l.b16 %v2714
    %v2887 = vunpack.c.h.b16 %v2714
    %v2888 = vunpack.c.l.b16 %v2715
    %v2889 = vunpack.c.h.b16 %v2715
    %v2890 = vunpack.c.l.b16 %v2716
    %v2891 = vunpack.c.h.b16 %v2716
    %v2892 = vunpack.c.l.b16 %v2717
    %v2893 = vunpack.c.h.b16 %v2717
    %v2894 = vunpack.c.l.b16 %v2718
    %v2895 = vunpack.c.h.b16 %v2718
    %v2896 = vunpack.c.l.b16 %v2719
    %v2897 = vunpack.c.h.b16 %v2719
    %v2898 = vunpack.c.l.b16 %v2720
    %v2899 = vunpack.c.h.b16 %v2720
    %v2900 = vunpack.c.l.b16 %v2721
    %v2901 = vunpack.c.h.b16 %v2721
    %v2902 = vunpack.c.l.b16 %v2722
    %v2903 = vunpack.c.h.b16 %v2722
    %v2904 = vunpack.c.l.b16 %v2723
    %v2905 = vunpack.c.h.b16 %v2723
    %v2906 = vunpack.c.l.b16 %v2724
    %v2907 = vunpack.c.h.b16 %v2724
    %v2908 = vunpack.c.l.b16 %v2725
    %v2909 = vunpack.c.h.b16 %v2725
    %v2910 = vunpack.c.l.b16 %v2726
    %v2911 = vunpack.c.h.b16 %v2726
    %v2912 = vunpack.c.l.b16 %v2727
    %v2913 = vunpack.c.h.b16 %v2727
    %v2914 = vunpack.c.l.b16 %v2728
    %v2915 = vunpack.c.h.b16 %v2728
    %v2916 = vunpack.c.l.b16 %v2729
    %v2917 = vunpack.c.h.b16 %v2729
    %v2918 = vunpack.c.l.b16 %v2730
    %v2919 = vunpack.c.h.b16 %v2730
    %v2920 = vunpack.c.l.b16 %v2731
    %v2921 = vunpack.c.h.b16 %v2731
    %v2922 = vunpack.c.l.b16 %v2732
    %v2923 = vunpack.c.h.b16 %v2732
    %v2924 = vunpack.c.l.b16 %v2733
    %v2925 = vunpack.c.h.b16 %v2733
    %v2926 = vunpack.c.l.b16 %v2734
    %v2927 = vunpack.c.h.b16 %v2734
    %v2928 = vunpack.c.l.b16 %v2735
    %v2929 = vunpack.c.h.b16 %v2735
    %v2930 = vunpack.c.l.b16 %v2736
    %v2931 = vunpack.c.h.b16 %v2736
    %v2932 = vunpack.c.l.b16 %v2737
    %v2933 = vunpack.c.h.b16 %v2737
    %v2934 = vunpack.c.l.b16 %v2738
    %v2935 = vunpack.c.h.b16 %v2738
    %v2936 = vunpack.c.l.b16 %v2739
    %v2937 = vunpack.c.h.b16 %v2739
    %v2938 = vunpack.c.l.b16 %v2740
    %v2939 = vunpack.c.h.b16 %v2740
    %v2940 = vunpack.c.l.b16 %v2741
    %v2941 = vunpack.c.h.b16 %v2741
    %v2942 = vunpack.c.l.b16 %v2742
    %v2943 = vunpack.c.h.b16 %v2742
    %v2944 = vunpack.c.l.b16 %v2743
    %v2945 = vunpack.c.h.b16 %v2743
    %v2946 = vunpack.c.l.b16 %v2744
    %v2947 = vunpack.c.h.b16 %v2744
    %v2948 = vunpack.c.l.b16 %v2745
    %v2949 = vunpack.c.h.b16 %v2745
    %v2950 = vunpack.c.l.b16 %v2746
    %v2951 = vunpack.c.h.b16 %v2746
    %v2952 = vunpack.c.l.b16 %v2747
    %v2953 = vunpack.c.h.b16 %v2747
    %v2954 = vunpack.c.l.b16 %v2748
    %v2955 = vunpack.c.h.b16 %v2748
    %v2956 = vunpack.c.l.b16 %v2749
    %v2957 = vunpack.c.h.b16 %v2749
    %v2958 = vunpack.c.l.b16 %v2750
    %v2959 = vunpack.c.h.b16 %v2750
    %v2960 = vunpack.c.l.b16 %v2751
    %v2961 = vunpack.c.h.b16 %v2751
    %v2962 = vunpack.c.l.b16 %v2752
    %v2963 = vunpack.c.h.b16 %v2752
    %v2964 = vunpack.c.l.b16 %v2753
    %v2965 = vunpack.c.h.b16 %v2753
    %v2966 = vunpack.c.l.b16 %v2754
    %v2967 = vunpack.c.h.b16 %v2754
    %v2968 = vunpack.c.l.b16 %v2755
    %v2969 = vunpack.c.h.b16 %v2755
    %v2970 = vpack.c.b16 %v2846, %v2842
    %v2971 = vpack.c.b16 %v2847, %v2843
    %v2972 = vpack.c.b16 %v2848, %v2844
    %v2973 = vpack.c.b16 %v2849, %v2845
    %v2974 = vpack.c.b16 %v2854, %v2850
    %v2975 = vpack.c.b16 %v2855, %v2851
    %v2976 = vpack.c.b16 %v2856, %v2852
    %v2977 = vpack.c.b16 %v2857, %v2853
    %v2978 = vpack.c.b16 %v2862, %v2858
    %v2979 = vpack.c.b16 %v2863, %v2859
    %v2980 = vpack.c.b16 %v2864, %v2860
    %v2981 = vpack.c.b16 %v2865, %v2861
    %v2982 = vpack.c.b16 %v2870, %v2866
    %v2983 = vpack.c.b16 %v2871, %v2867
    %v2984 = vpack.c.b16 %v2872, %v2868
    %v2985 = vpack.c.b16 %v2873, %v2869
    %v2986 = vpack.c.b16 %v2878, %v2874
    %v2987 = vpack.c.b16 %v2879, %v2875
    %v2988 = vpack.c.b16 %v2880, %v2876
    %v2989 = vpack.c.b16 %v2881, %v2877
    %v2990 = vpack.c.b16 %v2886, %v2882
    %v2991 = vpack.c.b16 %v2887, %v2883
    %v2992 = vpack.c.b16 %v2888, %v2884
    %v2993 = vpack.c.b16 %v2889, %v2885
    %v2994 = vpack.c.b16 %v2894, %v2890
    %v2995 = vpack.c.b16 %v2895, %v2891
    %v2996 = vpack.c.b16 %v2896, %v2892
    %v2997 = vpack.c.b16 %v2897, %v2893
    %v2998 = vpack.c.b16 %v2902, %v2898
    %v2999 = vpack.c.b16 %v2903, %v2899
    %v3000 = vpack.c.b16 %v2904, %v2900
    %v3001 = vpack.c.b16 %v2905, %v2901
    %v3002 = vpack.c.b16 %v2910, %v2906
    %v3003 = vpack.c.b16 %v2911, %v2907
    %v3004 = vpack.c.b16 %v2912, %v2908
    %v3005 = vpack.c.b16 %v2913, %v2909
    %v3006 = vpack.c.b16 %v2918, %v2914
    %v3007 = vpack.c.b16 %v2919, %v2915
    %v3008 = vpack.c.b16 %v2920, %v2916
    %v3009 = vpack.c.b16 %v2921, %v2917
    %v3010 = vpack.c.b16 %v2926, %v2922
    %v3011 = vpack.c.b16 %v2927, %v2923
    %v3012 = vpack.c.b16 %v2928, %v2924
    %v3013 = vpack.c.b16 %v2929, %v2925
    %v3014 = vpack.c.b16 %v2934, %v2930
    %v3015 = vpack.c.b16 %v2935, %v2931
    %v3016 = vpack.c.b16 %v2936, %v2932
    %v3017 = vpack.c.b16 %v2937, %v2933
    %v3018 = vpack.c.b16 %v2942, %v2938
    %v3019 = vpack.c.b16 %v2943, %v2939
    %v3020 = vpack.c.b16 %v2944, %v2940
    %v3021 = vpack.c.b16 %v2945, %v2941
    %v3022 = vpack.c.b16 %v2950, %v2946
    %v3023 = vpack.c.b16 %v2951, %v2947
    %v3024 = vpack.c.b16 %v2952, %v2948
    %v3025 = vpack.c.b16 %v2953, %v2949
    %v3026 = vpack.c.b16 %v2958, %v2954
    %v3027 = vpack.c.b16 %v2959, %v2955
    %v3028 = vpack.c.b16 %v2960, %v2956
    %v3029 = vpack.c.b16 %v2961, %v2957
    %v3030 = vpack.c.b16 %v2966, %v2962
    %v3031 = vpack.c.b16 %v2967, %v2963
    %v3032 = vpack.c.b16 %v2968, %v2964
    %v3033 = vpack.c.b16 %v2969, %v2965
    %3098 = vmatprep.subr.bf16.mxu0 %v2971
    %3099 = vmatpush1.bf16.msra.mxu0 %v2970
    %3100 = vmatprep.subr.bf16.mxu0 %v2975
    %3101 = vmatpush1.bf16.msra.mxu0 %v2974
    %3102 = vmatprep.subr.bf16.mxu0 %v2979
    %3103 = vmatpush1.bf16.msra.mxu0 %v2978
    %3104 = vmatprep.subr.bf16.mxu0 %v2983
    %3105 = vmatpush1.bf16.msra.mxu0 %v2982
    %3106 = vmatprep.subr.bf16.mxu0 %v2987
    %3107 = vmatpush1.bf16.msra.mxu0 %v2986
    %3108 = vmatprep.subr.bf16.mxu0 %v2991
    %3109 = vmatpush1.bf16.msra.mxu0 %v2990
    %3110 = vmatprep.subr.bf16.mxu0 %v2995
    %3111 = vmatpush1.bf16.msra.mxu0 %v2994
    %3112 = vmatprep.subr.bf16.mxu0 %v2999
    %3113 = vmatpush1.bf16.msra.mxu0 %v2998
    %3114 = vmatprep.subr.bf16.mxu0 %v3003
    %3115 = vmatpush1.bf16.msra.mxu0 %v3002
    %3116 = vmatprep.subr.bf16.mxu0 %v3007
    %3117 = vmatpush1.bf16.msra.mxu0 %v3006
    %3118 = vmatprep.subr.bf16.mxu0 %v3011
    %3119 = vmatpush1.bf16.msra.mxu0 %v3010
    %3120 = vmatprep.subr.bf16.mxu0 %v3015
    %3121 = vmatpush1.bf16.msra.mxu0 %v3014
    %3122 = vmatprep.subr.bf16.mxu0 %v3019
    %3123 = vmatpush1.bf16.msra.mxu0 %v3018
    %3124 = vmatprep.subr.bf16.mxu0 %v3023
    %3125 = vmatpush1.bf16.msra.mxu0 %v3022
    %3126 = vmatprep.subr.bf16.mxu0 %v3027
    %3127 = vmatpush1.bf16.msra.mxu0 %v3026
    %3128 = vmatprep.subr.bf16.mxu0 %v3031
    %3129 = vmatpush1.bf16.msra.mxu0 %v3030
    %3130 = vmatprep.mubr.bf16.mxu0 %v139
    %3131 = vmatmul.mubr.bf16.gmra.mrb[0].mxu0 %v138
    %v3132 = vpop.f32.mrb[0].mxu0
    %v3133 = vadd.f32 %v2761, %v3132
    %v3134 = vpop.f32.mrb[0].mxu0
    %v3135 = vadd.f32 %v2765, %v3134
    %v3136 = vpop.f32.mrb[0].mxu0
    %v3137 = vadd.f32 %v2761, %v3136
    %v3138 = vpop.f32.mrb[0].mxu0
    %v3139 = vadd.f32 %v2765, %v3138
    %3140 = vmatprep.mubr.bf16.mxu0 %v141
    %3141 = vmatmul.mubr.bf16.gmra.mrb[0].mxu0 %v140
    %v3142 = vpop.f32.mrb[0].mxu0
    %v3143 = vadd.f32 %v2761, %v3142
    %v3144 = vpop.f32.mrb[0].mxu0
    %v3145 = vadd.f32 %v2765, %v3144
    %v3146 = vpop.f32.mrb[0].mxu0
    %v3147 = vadd.f32 %v2761, %v3146
    %v3148 = vpop.f32.mrb[0].mxu0
    %v3149 = vadd.f32 %v2765, %v3148
    %3150 = vmatprep.mubr.bf16.mxu0 %v143
    %3151 = vmatmul.mubr.bf16.gmra.mrb[0].mxu0 %v142
    %v3152 = vpop.f32.mrb[0].mxu0
    %v3153 = vadd.f32 %v2761, %v3152
    %v3154 = vpop.f32.mrb[0].mxu0
    %v3155 = vadd.f32 %v2765, %v3154
    %v3156 = vpop.f32.mrb[0].mxu0
    %v3157 = vadd.f32 %v2761, %v3156
    %v3158 = vpop.f32.mrb[0].mxu0
    %v3159 = vadd.f32 %v2765, %v3158
    %3160 = vmatprep.mubr.bf16.mxu0 %v145
    %3161 = vmatmul.mubr.bf16.gmra.mrb[0].mxu0 %v144
    %v3162 = vpop.f32.mrb[0].mxu0
    %v3163 = vadd.f32 %v2761, %v3162
    %v3164 = vpop.f32.mrb[0].mxu0
    %v3165 = vadd.f32 %v2765, %v3164
    %v3166 = vpop.f32.mrb[0].mxu0
    %v3167 = vadd.f32 %v2761, %v3166
    %v3168 = vpop.f32.mrb[0].mxu0
    %v3169 = vadd.f32 %v2765, %v3168
    %3170 = vmatprep.mubr.bf16.mxu0 %v147
    %3171 = vmatmul.mubr.bf16.gmra.mrb[0].mxu0 %v146
    %v3172 = vpop.f32.mrb[0].mxu0
    %v3173 = vadd.f32 %v2761, %v3172
    %v3174 = vpop.f32.mrb[0].mxu0
    %v3175 = vadd.f32 %v2765, %v3174
    %v3176 = vpop.f32.mrb[0].mxu0
    %v3177 = vadd.f32 %v2761, %v3176
    %v3178 = vpop.f32.mrb[0].mxu0
    %v3179 = vadd.f32 %v2765, %v3178
    %3180 = vmatprep.mubr.bf16.mxu0 %v149
    %3181 = vmatmul.mubr.bf16.gmra.mrb[0].mxu0 %v148
    %v3182 = vpop.f32.mrb[0].mxu0
    %v3183 = vadd.f32 %v2761, %v3182
    %v3184 = vpop.f32.mrb[0].mxu0
    %v3185 = vadd.f32 %v2765, %v3184
    %v3186 = vpop.f32.mrb[0].mxu0
    %v3187 = vadd.f32 %v2761, %v3186
    %v3188 = vpop.f32.mrb[0].mxu0
    %v3189 = vadd.f32 %v2765, %v3188
    %3190 = vmatprep.mubr.bf16.mxu0 %v151
    %3191 = vmatmul.mubr.bf16.gmra.mrb[0].mxu0 %v150
    %v3192 = vpop.f32.mrb[0].mxu0
    %v3193 = vadd.f32 %v2761, %v3192
    %v3194 = vpop.f32.mrb[0].mxu0
    %v3195 = vadd.f32 %v2765, %v3194
    %v3196 = vpop.f32.mrb[0].mxu0
    %v3197 = vadd.f32 %v2761, %v3196
    %v3198 = vpop.f32.mrb[0].mxu0
    %v3199 = vadd.f32 %v2765, %v3198
    %3200 = vmatprep.mubr.bf16.mxu0 %v153
    %3201 = vmatmul.mubr.bf16.gmra.mrb[0].mxu0 %v152
    %v3202 = vpop.f32.mrb[0].mxu0
    %v3203 = vadd.f32 %v2761, %v3202
    %v3204 = vpop.f32.mrb[0].mxu0
    %v3205 = vadd.f32 %v2765, %v3204
    %v3206 = vpop.f32.mrb[0].mxu0
    %v3207 = vadd.f32 %v2761, %v3206
    %v3208 = vpop.f32.mrb[0].mxu0
    %v3209 = vadd.f32 %v2765, %v3208
    %3210 = vmatprep.mubr.bf16.mxu0 %v155
    %3211 = vmatmul.mubr.bf16.gmra.mrb[0].mxu0 %v154
    %v3212 = vpop.f32.mrb[0].mxu0
    %v3213 = vadd.f32 %v2761, %v3212
    %v3214 = vpop.f32.mrb[0].mxu0
    %v3215 = vadd.f32 %v2765, %v3214
    %v3216 = vpop.f32.mrb[0].mxu0
    %v3217 = vadd.f32 %v2761, %v3216
    %v3218 = vpop.f32.mrb[0].mxu0
    %v3219 = vadd.f32 %v2765, %v3218
    %3220 = vmatprep.mubr.bf16.mxu0 %v157
    %3221 = vmatmul.mubr.bf16.gmra.mrb[0].mxu0 %v156
    %v3222 = vpop.f32.mrb[0].mxu0
    %v3223 = vadd.f32 %v2761, %v3222
    %v3224 = vpop.f32.mrb[0].mxu0
    %v3225 = vadd.f32 %v2765, %v3224
    %v3226 = vpop.f32.mrb[0].mxu0
    %v3227 = vadd.f32 %v2761, %v3226
    %v3228 = vpop.f32.mrb[0].mxu0
    %v3229 = vadd.f32 %v2765, %v3228
    %3230 = vmatprep.mubr.bf16.mxu0 %v159
    %3231 = vmatmul.mubr.bf16.gmra.mrb[0].mxu0 %v158
    %v3232 = vpop.f32.mrb[0].mxu0
    %v3233 = vadd.f32 %v2761, %v3232
    %v3234 = vpop.f32.mrb[0].mxu0
    %v3235 = vadd.f32 %v2765, %v3234
    %v3236 = vpop.f32.mrb[0].mxu0
    %v3237 = vadd.f32 %v2761, %v3236
    %v3238 = vpop.f32.mrb[0].mxu0
    %v3239 = vadd.f32 %v2765, %v3238
    %3240 = vmatprep.mubr.bf16.mxu0 %v161
    %3241 = vmatmul.mubr.bf16.gmra.mrb[0].mxu0 %v160
    %v3242 = vpop.f32.mrb[0].mxu0
    %v3243 = vadd.f32 %v2761, %v3242
    %v3244 = vpop.f32.mrb[0].mxu0
    %v3245 = vadd.f32 %v2765, %v3244
    %v3246 = vpop.f32.mrb[0].mxu0
    %v3247 = vadd.f32 %v2761, %v3246
    %v3248 = vpop.f32.mrb[0].mxu0
    %v3249 = vadd.f32 %v2765, %v3248
    %3250 = vmatprep.mubr.bf16.mxu0 %v163
    %3251 = vmatmul.mubr.bf16.gmra.mrb[0].mxu0 %v162
    %v3252 = vpop.f32.mrb[0].mxu0
    %v3253 = vadd.f32 %v2761, %v3252
    %v3254 = vpop.f32.mrb[0].mxu0
    %v3255 = vadd.f32 %v2765, %v3254
    %v3256 = vpop.f32.mrb[0].mxu0
    %v3257 = vadd.f32 %v2761, %v3256
    %v3258 = vpop.f32.mrb[0].mxu0
    %v3259 = vadd.f32 %v2765, %v3258
    %3260 = vmatprep.mubr.bf16.mxu0 %v165
    %3261 = vmatmul.mubr.bf16.gmra.mrb[0].mxu0 %v164
    %v3262 = vpop.f32.mrb[0].mxu0
    %v3263 = vadd.f32 %v2761, %v3262
    %v3264 = vpop.f32.mrb[0].mxu0
    %v3265 = vadd.f32 %v2765, %v3264
    %v3266 = vpop.f32.mrb[0].mxu0
    %v3267 = vadd.f32 %v2761, %v3266
    %v3268 = vpop.f32.mrb[0].mxu0
    %v3269 = vadd.f32 %v2765, %v3268
    %3270 = vmatprep.mubr.bf16.mxu0 %v167
    %3271 = vmatmul.mubr.bf16.gmra.mrb[0].mxu0 %v166
    %v3272 = vpop.f32.mrb[0].mxu0
    %v3273 = vadd.f32 %v2761, %v3272
    %v3274 = vpop.f32.mrb[0].mxu0
    %v3275 = vadd.f32 %v2765, %v3274
    %v3276 = vpop.f32.mrb[0].mxu0
    %v3277 = vadd.f32 %v2761, %v3276
    %v3278 = vpop.f32.mrb[0].mxu0
    %v3279 = vadd.f32 %v2765, %v3278
    %3280 = vmatprep.mubr.bf16.mxu0 %v169
    %3281 = vmatmul.mubr.bf16.gmra.mrb[0].mxu0 %v168
    %v3282 = vpop.f32.mrb[0].mxu0
    %v3283 = vadd.f32 %v2761, %v3282
    %v3284 = vpop.f32.mrb[0].mxu0
    %v3285 = vadd.f32 %v2765, %v3284
    %v3286 = vpop.f32.mrb[0].mxu0
    %v3287 = vadd.f32 %v2761, %v3286
    %v3288 = vpop.f32.mrb[0].mxu0
    %v3289 = vadd.f32 %v2765, %v3288
    %3290 = vdwg.mxu0
    %3291 = vmatprep.subr.bf16.mxu0 %v2973
    %3292 = vmatpush1.bf16.msra.mxu0 %v2972
    %3293 = vmatprep.subr.bf16.mxu0 %v2977
    %3294 = vmatpush1.bf16.msra.mxu0 %v2976
    %3295 = vmatprep.subr.bf16.mxu0 %v2981
    %3296 = vmatpush1.bf16.msra.mxu0 %v2980
    %3297 = vmatprep.subr.bf16.mxu0 %v2985
    %3298 = vmatpush1.bf16.msra.mxu0 %v2984
    %3299 = vmatprep.subr.bf16.mxu0 %v2989
    %3300 = vmatpush1.bf16.msra.mxu0 %v2988
    %3301 = vmatprep.subr.bf16.mxu0 %v2993
    %3302 = vmatpush1.bf16.msra.mxu0 %v2992
    %3303 = vmatprep.subr.bf16.mxu0 %v2997
    %3304 = vmatpush1.bf16.msra.mxu0 %v2996
    %3305 = vmatprep.subr.bf16.mxu0 %v3001
    %3306 = vmatpush1.bf16.msra.mxu0 %v3000
    %3307 = vmatprep.subr.bf16.mxu0 %v3005
    %3308 = vmatpush1.bf16.msra.mxu0 %v3004
    %3309 = vmatprep.subr.bf16.mxu0 %v3009
    %3310 = vmatpush1.bf16.msra.mxu0 %v3008
    %3311 = vmatprep.subr.bf16.mxu0 %v3013
    %3312 = vmatpush1.bf16.msra.mxu0 %v3012
    %3313 = vmatprep.subr.bf16.mxu0 %v3017
    %3314 = vmatpush1.bf16.msra.mxu0 %v3016
    %3315 = vmatprep.subr.bf16.mxu0 %v3021
    %3316 = vmatpush1.bf16.msra.mxu0 %v3020
    %3317 = vmatprep.subr.bf16.mxu0 %v3025
    %3318 = vmatpush1.bf16.msra.mxu0 %v3024
    %3319 = vmatprep.subr.bf16.mxu0 %v3029
    %3320 = vmatpush1.bf16.msra.mxu0 %v3028
    %3321 = vmatprep.subr.bf16.mxu0 %v3033
    %3322 = vmatpush1.bf16.msra.mxu0 %v3032
    %3323 = vmatprep.mubr.bf16.mxu0 %v139
    %3324 = vmatmul.mubr.bf16.gmra.mrb[0].mxu0 %v138
    %v3325 = vpop.f32.mrb[0].mxu0
    %v3326 = vadd.f32 %v2769, %v3325
    %v3327 = vpop.f32.mrb[0].mxu0
    %v3328 = vadd.f32 %v2773, %v3327
    %v3329 = vpop.f32.mrb[0].mxu0
    %v3330 = vadd.f32 %v2769, %v3329
    %v3331 = vpop.f32.mrb[0].mxu0
    %v3332 = vadd.f32 %v2773, %v3331
    %3333 = vmatprep.mubr.bf16.mxu0 %v141
    %3334 = vmatmul.mubr.bf16.gmra.mrb[0].mxu0 %v140
    %v3335 = vpop.f32.mrb[0].mxu0
    %v3336 = vadd.f32 %v2769, %v3335
    %v3337 = vpop.f32.mrb[0].mxu0
    %v3338 = vadd.f32 %v2773, %v3337
    %v3339 = vpop.f32.mrb[0].mxu0
    %v3340 = vadd.f32 %v2769, %v3339
    %v3341 = vpop.f32.mrb[0].mxu0
    %v3342 = vadd.f32 %v2773, %v3341
    %3343 = vmatprep.mubr.bf16.mxu0 %v143
    %3344 = vmatmul.mubr.bf16.gmra.mrb[0].mxu0 %v142
    %v3345 = vpop.f32.mrb[0].mxu0
    %v3346 = vadd.f32 %v2769, %v3345
    %v3347 = vpop.f32.mrb[0].mxu0
    %v3348 = vadd.f32 %v2773, %v3347
    %v3349 = vpop.f32.mrb[0].mxu0
    %v3350 = vadd.f32 %v2769, %v3349
    %v3351 = vpop.f32.mrb[0].mxu0
    %v3352 = vadd.f32 %v2773, %v3351
    %3353 = vmatprep.mubr.bf16.mxu0 %v145
    %3354 = vmatmul.mubr.bf16.gmra.mrb[0].mxu0 %v144
    %v3355 = vpop.f32.mrb[0].mxu0
    %v3356 = vadd.f32 %v2769, %v3355
    %v3357 = vpop.f32.mrb[0].mxu0
    %v3358 = vadd.f32 %v2773, %v3357
    %v3359 = vpop.f32.mrb[0].mxu0
    %v3360 = vadd.f32 %v2769, %v3359
    %v3361 = vpop.f32.mrb[0].mxu0
    %v3362 = vadd.f32 %v2773, %v3361
    %3363 = vmatprep.mubr.bf16.mxu0 %v147
    %3364 = vmatmul.mubr.bf16.gmra.mrb[0].mxu0 %v146
    %v3365 = vpop.f32.mrb[0].mxu0
    %v3366 = vadd.f32 %v2769, %v3365
    %v3367 = vpop.f32.mrb[0].mxu0
    %v3368 = vadd.f32 %v2773, %v3367
    %v3369 = vpop.f32.mrb[0].mxu0
    %v3370 = vadd.f32 %v2769, %v3369
    %v3371 = vpop.f32.mrb[0].mxu0
    %v3372 = vadd.f32 %v2773, %v3371
    %3373 = vmatprep.mubr.bf16.mxu0 %v149
    %3374 = vmatmul.mubr.bf16.gmra.mrb[0].mxu0 %v148
    %v3375 = vpop.f32.mrb[0].mxu0
    %v3376 = vadd.f32 %v2769, %v3375
    %v3377 = vpop.f32.mrb[0].mxu0
    %v3378 = vadd.f32 %v2773, %v3377
    %v3379 = vpop.f32.mrb[0].mxu0
    %v3380 = vadd.f32 %v2769, %v3379
    %v3381 = vpop.f32.mrb[0].mxu0
    %v3382 = vadd.f32 %v2773, %v3381
    %3383 = vmatprep.mubr.bf16.mxu0 %v151
    %3384 = vmatmul.mubr.bf16.gmra.mrb[0].mxu0 %v150
    %v3385 = vpop.f32.mrb[0].mxu0
    %v3386 = vadd.f32 %v2769, %v3385
    %v3387 = vpop.f32.mrb[0].mxu0
    %v3388 = vadd.f32 %v2773, %v3387
    %v3389 = vpop.f32.mrb[0].mxu0
    %v3390 = vadd.f32 %v2769, %v3389
    %v3391 = vpop.f32.mrb[0].mxu0
    %v3392 = vadd.f32 %v2773, %v3391
    %3393 = vmatprep.mubr.bf16.mxu0 %v153
    %3394 = vmatmul.mubr.bf16.gmra.mrb[0].mxu0 %v152
    %v3395 = vpop.f32.mrb[0].mxu0
    %v3396 = vadd.f32 %v2769, %v3395
    %v3397 = vpop.f32.mrb[0].mxu0
    %v3398 = vadd.f32 %v2773, %v3397
    %v3399 = vpop.f32.mrb[0].mxu0
    %v3400 = vadd.f32 %v2769, %v3399
    %v3401 = vpop.f32.mrb[0].mxu0
    %v3402 = vadd.f32 %v2773, %v3401
    %3403 = vmatprep.mubr.bf16.mxu0 %v155
    %3404 = vmatmul.mubr.bf16.gmra.mrb[0].mxu0 %v154
    %v3405 = vpop.f32.mrb[0].mxu0
    %v3406 = vadd.f32 %v2769, %v3405
    %v3407 = vpop.f32.mrb[0].mxu0
    %v3408 = vadd.f32 %v2773, %v3407
    %v3409 = vpop.f32.mrb[0].mxu0
    %v3410 = vadd.f32 %v2769, %v3409
    %v3411 = vpop.f32.mrb[0].mxu0
    %v3412 = vadd.f32 %v2773, %v3411
    %3413 = vmatprep.mubr.bf16.mxu0 %v157
    %3414 = vmatmul.mubr.bf16.gmra.mrb[0].mxu0 %v156
    %v3415 = vpop.f32.mrb[0].mxu0
    %v3416 = vadd.f32 %v2769, %v3415
    %v3417 = vpop.f32.mrb[0].mxu0
    %v3418 = vadd.f32 %v2773, %v3417
    %v3419 = vpop.f32.mrb[0].mxu0
    %v3420 = vadd.f32 %v2769, %v3419
    %v3421 = vpop.f32.mrb[0].mxu0
    %v3422 = vadd.f32 %v2773, %v3421
    %3423 = vmatprep.mubr.bf16.mxu0 %v159
    %3424 = vmatmul.mubr.bf16.gmra.mrb[0].mxu0 %v158
    %v3425 = vpop.f32.mrb[0].mxu0
    %v3426 = vadd.f32 %v2769, %v3425
    %v3427 = vpop.f32.mrb[0].mxu0
    %v3428 = vadd.f32 %v2773, %v3427
    %v3429 = vpop.f32.mrb[0].mxu0
    %v3430 = vadd.f32 %v2769, %v3429
    %v3431 = vpop.f32.mrb[0].mxu0
    %v3432 = vadd.f32 %v2773, %v3431
    %3433 = vmatprep.mubr.bf16.mxu0 %v161
    %3434 = vmatmul.mubr.bf16.gmra.mrb[0].mxu0 %v160
    %v3435 = vpop.f32.mrb[0].mxu0
    %v3436 = vadd.f32 %v2769, %v3435
    %v3437 = vpop.f32.mrb[0].mxu0
    %v3438 = vadd.f32 %v2773, %v3437
    %v3439 = vpop.f32.mrb[0].mxu0
    %v3440 = vadd.f32 %v2769, %v3439
    %v3441 = vpop.f32.mrb[0].mxu0
    %v3442 = vadd.f32 %v2773, %v3441
    %3443 = vmatprep.mubr.bf16.mxu0 %v163
    %3444 = vmatmul.mubr.bf16.gmra.mrb[0].mxu0 %v162
    %v3445 = vpop.f32.mrb[0].mxu0
    %v3446 = vadd.f32 %v2769, %v3445
    %v3447 = vpop.f32.mrb[0].mxu0
    %v3448 = vadd.f32 %v2773, %v3447
    %v3449 = vpop.f32.mrb[0].mxu0
    %v3450 = vadd.f32 %v2769, %v3449
    %v3451 = vpop.f32.mrb[0].mxu0
    %v3452 = vadd.f32 %v2773, %v3451
    %3453 = vmatprep.mubr.bf16.mxu0 %v165
    %3454 = vmatmul.mubr.bf16.gmra.mrb[0].mxu0 %v164
    %v3455 = vpop.f32.mrb[0].mxu0
    %v3456 = vadd.f32 %v2769, %v3455
    %v3457 = vpop.f32.mrb[0].mxu0
    %v3458 = vadd.f32 %v2773, %v3457
    %v3459 = vpop.f32.mrb[0].mxu0
    %v3460 = vadd.f32 %v2769, %v3459
    %v3461 = vpop.f32.mrb[0].mxu0
    %v3462 = vadd.f32 %v2773, %v3461
    %3463 = vmatprep.mubr.bf16.mxu0 %v167
    %3464 = vmatmul.mubr.bf16.gmra.mrb[0].mxu0 %v166
    %v3465 = vpop.f32.mrb[0].mxu0
    %v3466 = vadd.f32 %v2769, %v3465
    %v3467 = vpop.f32.mrb[0].mxu0
    %v3468 = vadd.f32 %v2773, %v3467
    %v3469 = vpop.f32.mrb[0].mxu0
    %v3470 = vadd.f32 %v2769, %v3469
    %v3471 = vpop.f32.mrb[0].mxu0
    %v3472 = vadd.f32 %v2773, %v3471
    %3473 = vmatprep.mubr.bf16.mxu0 %v169
    %3474 = vmatmul.mubr.bf16.gmra.mrb[0].mxu0 %v168
    %v3475 = vpop.f32.mrb[0].mxu0
    %v3476 = vadd.f32 %v2769, %v3475
    %v3477 = vpop.f32.mrb[0].mxu0
    %v3478 = vadd.f32 %v2773, %v3477
    %v3479 = vpop.f32.mrb[0].mxu0
    %v3480 = vadd.f32 %v2769, %v3479
    %v3481 = vpop.f32.mrb[0].mxu0
    %v3482 = vadd.f32 %v2773, %v3481
    %3483 = vdwg.mxu0
    %v3484 = vmul.f32 %v3133, 0.5
    %v3485 = vmul.f32 %v3135, 0.5
    %v3486 = vmul.f32 %v3326, 0.5
    %v3487 = vmul.f32 %v3328, 0.5
    %v3488 = vmul.f32 %v3137, 0.5
    %v3489 = vmul.f32 %v3139, 0.5
    %v3490 = vmul.f32 %v3330, 0.5
    %v3491 = vmul.f32 %v3332, 0.5
    %v3492 = vmul.f32 %v3143, 0.5
    %v3493 = vmul.f32 %v3145, 0.5
    %v3494 = vmul.f32 %v3336, 0.5
    %v3495 = vmul.f32 %v3338, 0.5
    %v3496 = vmul.f32 %v3147, 0.5
    %v3497 = vmul.f32 %v3149, 0.5
    %v3498 = vmul.f32 %v3340, 0.5
    %v3499 = vmul.f32 %v3342, 0.5
    %v3500 = vmul.f32 %v3153, 0.5
    %v3501 = vmul.f32 %v3155, 0.5
    %v3502 = vmul.f32 %v3346, 0.5
    %v3503 = vmul.f32 %v3348, 0.5
    %v3504 = vmul.f32 %v3157, 0.5
    %v3505 = vmul.f32 %v3159, 0.5
    %v3506 = vmul.f32 %v3350, 0.5
    %v3507 = vmul.f32 %v3352, 0.5
    %v3508 = vmul.f32 %v3163, 0.5
    %v3509 = vmul.f32 %v3165, 0.5
    %v3510 = vmul.f32 %v3356, 0.5
    %v3511 = vmul.f32 %v3358, 0.5
    %v3512 = vmul.f32 %v3167, 0.5
    %v3513 = vmul.f32 %v3169, 0.5
    %v3514 = vmul.f32 %v3360, 0.5
    %v3515 = vmul.f32 %v3362, 0.5
    %v3516 = vmul.f32 %v3173, 0.5
    %v3517 = vmul.f32 %v3175, 0.5
    %v3518 = vmul.f32 %v3366, 0.5
    %v3519 = vmul.f32 %v3368, 0.5
    %v3520 = vmul.f32 %v3177, 0.5
    %v3521 = vmul.f32 %v3179, 0.5
    %v3522 = vmul.f32 %v3370, 0.5
    %v3523 = vmul.f32 %v3372, 0.5
    %v3524 = vmul.f32 %v3183, 0.5
    %v3525 = vmul.f32 %v3185, 0.5
    %v3526 = vmul.f32 %v3376, 0.5
    %v3527 = vmul.f32 %v3378, 0.5
    %v3528 = vmul.f32 %v3187, 0.5
    %v3529 = vmul.f32 %v3189, 0.5
    %v3530 = vmul.f32 %v3380, 0.5
    %v3531 = vmul.f32 %v3382, 0.5
    %v3532 = vmul.f32 %v3193, 0.5
    %v3533 = vmul.f32 %v3195, 0.5
    %v3534 = vmul.f32 %v3386, 0.5
    %v3535 = vmul.f32 %v3388, 0.5
    %v3536 = vmul.f32 %v3197, 0.5
    %v3537 = vmul.f32 %v3199, 0.5
    %v3538 = vmul.f32 %v3390, 0.5
    %v3539 = vmul.f32 %v3392, 0.5
    %v3540 = vmul.f32 %v3203, 0.5
    %v3541 = vmul.f32 %v3205, 0.5
    %v3542 = vmul.f32 %v3396, 0.5
    %v3543 = vmul.f32 %v3398, 0.5
    %v3544 = vmul.f32 %v3207, 0.5
    %v3545 = vmul.f32 %v3209, 0.5
    %v3546 = vmul.f32 %v3400, 0.5
    %v3547 = vmul.f32 %v3402, 0.5
    %v3548 = vmul.f32 %v3213, 0.5
    %v3549 = vmul.f32 %v3215, 0.5
    %v3550 = vmul.f32 %v3406, 0.5
    %v3551 = vmul.f32 %v3408, 0.5
    %v3552 = vmul.f32 %v3217, 0.5
    %v3553 = vmul.f32 %v3219, 0.5
    %v3554 = vmul.f32 %v3410, 0.5
    %v3555 = vmul.f32 %v3412, 0.5
    %v3556 = vmul.f32 %v3223, 0.5
    %v3557 = vmul.f32 %v3225, 0.5
    %v3558 = vmul.f32 %v3416, 0.5
    %v3559 = vmul.f32 %v3418, 0.5
    %v3560 = vmul.f32 %v3227, 0.5
    %v3561 = vmul.f32 %v3229, 0.5
    %v3562 = vmul.f32 %v3420, 0.5
    %v3563 = vmul.f32 %v3422, 0.5
    %v3564 = vmul.f32 %v3233, 0.5
    %v3565 = vmul.f32 %v3235, 0.5
    %v3566 = vmul.f32 %v3426, 0.5
    %v3567 = vmul.f32 %v3428, 0.5
    %v3568 = vmul.f32 %v3237, 0.5
    %v3569 = vmul.f32 %v3239, 0.5
    %v3570 = vmul.f32 %v3430, 0.5
    %v3571 = vmul.f32 %v3432, 0.5
    %v3572 = vmul.f32 %v3243, 0.5
    %v3573 = vmul.f32 %v3245, 0.5
    %v3574 = vmul.f32 %v3436, 0.5
    %v3575 = vmul.f32 %v3438, 0.5
    %v3576 = vmul.f32 %v3247, 0.5
    %v3577 = vmul.f32 %v3249, 0.5
    %v3578 = vmul.f32 %v3440, 0.5
    %v3579 = vmul.f32 %v3442, 0.5
    %v3580 = vmul.f32 %v3253, 0.5
    %v3581 = vmul.f32 %v3255, 0.5
    %v3582 = vmul.f32 %v3446, 0.5
    %v3583 = vmul.f32 %v3448, 0.5
    %v3584 = vmul.f32 %v3257, 0.5
    %v3585 = vmul.f32 %v3259, 0.5
    %v3586 = vmul.f32 %v3450, 0.5
    %v3587 = vmul.f32 %v3452, 0.5
    %v3588 = vmul.f32 %v3263, 0.5
    %v3589 = vmul.f32 %v3265, 0.5
    %v3590 = vmul.f32 %v3456, 0.5
    %v3591 = vmul.f32 %v3458, 0.5
    %v3592 = vmul.f32 %v3267, 0.5
    %v3593 = vmul.f32 %v3269, 0.5
    %v3594 = vmul.f32 %v3460, 0.5
    %v3595 = vmul.f32 %v3462, 0.5
    %v3596 = vmul.f32 %v3273, 0.5
    %v3597 = vmul.f32 %v3275, 0.5
    %v3598 = vmul.f32 %v3466, 0.5
    %v3599 = vmul.f32 %v3468, 0.5
    %v3600 = vmul.f32 %v3277, 0.5
    %v3601 = vmul.f32 %v3279, 0.5
    %v3602 = vmul.f32 %v3470, 0.5
    %v3603 = vmul.f32 %v3472, 0.5
    %v3604 = vmul.f32 %v3283, 0.5
    %v3605 = vmul.f32 %v3285, 0.5
    %v3606 = vmul.f32 %v3476, 0.5
    %v3607 = vmul.f32 %v3478, 0.5
    %v3608 = vmul.f32 %v3287, 0.5
    %v3609 = vmul.f32 %v3289, 0.5
    %v3610 = vmul.f32 %v3480, 0.5
    %v3611 = vmul.f32 %v3482, 0.5
    %v3612 = vmul.f32 %v3133, 0.70710677
    %v3613 = vmul.f32 %v3135, 0.70710677
    %v3614 = vmul.f32 %v3326, 0.70710677
    %v3615 = vmul.f32 %v3328, 0.70710677
    %v3616 = vmul.f32 %v3137, 0.70710677
    %v3617 = vmul.f32 %v3139, 0.70710677
    %v3618 = vmul.f32 %v3330, 0.70710677
    %v3619 = vmul.f32 %v3332, 0.70710677
    %v3620 = vmul.f32 %v3143, 0.70710677
    %v3621 = vmul.f32 %v3145, 0.70710677
    %v3622 = vmul.f32 %v3336, 0.70710677
    %v3623 = vmul.f32 %v3338, 0.70710677
    %v3624 = vmul.f32 %v3147, 0.70710677
    %v3625 = vmul.f32 %v3149, 0.70710677
    %v3626 = vmul.f32 %v3340, 0.70710677
    %v3627 = vmul.f32 %v3342, 0.70710677
    %v3628 = vmul.f32 %v3153, 0.70710677
    %v3629 = vmul.f32 %v3155, 0.70710677
    %v3630 = vmul.f32 %v3346, 0.70710677
    %v3631 = vmul.f32 %v3348, 0.70710677
    %v3632 = vmul.f32 %v3157, 0.70710677
    %v3633 = vmul.f32 %v3159, 0.70710677
    %v3634 = vmul.f32 %v3350, 0.70710677
    %v3635 = vmul.f32 %v3352, 0.70710677
    %v3636 = vmul.f32 %v3163, 0.70710677
    %v3637 = vmul.f32 %v3165, 0.70710677
    %v3638 = vmul.f32 %v3356, 0.70710677
    %v3639 = vmul.f32 %v3358, 0.70710677
    %v3640 = vmul.f32 %v3167, 0.70710677
    %v3641 = vmul.f32 %v3169, 0.70710677
    %v3642 = vmul.f32 %v3360, 0.70710677
    %v3643 = vmul.f32 %v3362, 0.70710677
    %v3644 = vmul.f32 %v3173, 0.70710677
    %v3645 = vmul.f32 %v3175, 0.70710677
    %v3646 = vmul.f32 %v3366, 0.70710677
    %v3647 = vmul.f32 %v3368, 0.70710677
    %v3648 = vmul.f32 %v3177, 0.70710677
    %v3649 = vmul.f32 %v3179, 0.70710677
    %v3650 = vmul.f32 %v3370, 0.70710677
    %v3651 = vmul.f32 %v3372, 0.70710677
    %v3652 = vmul.f32 %v3183, 0.70710677
    %v3653 = vmul.f32 %v3185, 0.70710677
    %v3654 = vmul.f32 %v3376, 0.70710677
    %v3655 = vmul.f32 %v3378, 0.70710677
    %v3656 = vmul.f32 %v3187, 0.70710677
    %v3657 = vmul.f32 %v3189, 0.70710677
    %v3658 = vmul.f32 %v3380, 0.70710677
    %v3659 = vmul.f32 %v3382, 0.70710677
    %v3660 = vmul.f32 %v3193, 0.70710677
    %v3661 = vmul.f32 %v3195, 0.70710677
    %v3662 = vmul.f32 %v3386, 0.70710677
    %v3663 = vmul.f32 %v3388, 0.70710677
    %v3664 = vmul.f32 %v3197, 0.70710677
    %v3665 = vmul.f32 %v3199, 0.70710677
    %v3666 = vmul.f32 %v3390, 0.70710677
    %v3667 = vmul.f32 %v3392, 0.70710677
    %v3668 = vmul.f32 %v3203, 0.70710677
    %v3669 = vmul.f32 %v3205, 0.70710677
    %v3670 = vmul.f32 %v3396, 0.70710677
    %v3671 = vmul.f32 %v3398, 0.70710677
    %v3672 = vmul.f32 %v3207, 0.70710677
    %v3673 = vmul.f32 %v3209, 0.70710677
    %v3674 = vmul.f32 %v3400, 0.70710677
    %v3675 = vmul.f32 %v3402, 0.70710677
    %v3676 = vmul.f32 %v3213, 0.70710677
    %v3677 = vmul.f32 %v3215, 0.70710677
    %v3678 = vmul.f32 %v3406, 0.70710677
    %v3679 = vmul.f32 %v3408, 0.70710677
    %v3680 = vmul.f32 %v3217, 0.70710677
    %v3681 = vmul.f32 %v3219, 0.70710677
    %v3682 = vmul.f32 %v3410, 0.70710677
    %v3683 = vmul.f32 %v3412, 0.70710677
    %v3684 = vmul.f32 %v3223, 0.70710677
    %v3685 = vmul.f32 %v3225, 0.70710677
    %v3686 = vmul.f32 %v3416, 0.70710677
    %v3687 = vmul.f32 %v3418, 0.70710677
    %v3688 = vmul.f32 %v3227, 0.70710677
    %v3689 = vmul.f32 %v3229, 0.70710677
    %v3690 = vmul.f32 %v3420, 0.70710677
    %v3691 = vmul.f32 %v3422, 0.70710677
    %v3692 = vmul.f32 %v3233, 0.70710677
    %v3693 = vmul.f32 %v3235, 0.70710677
    %v3694 = vmul.f32 %v3426, 0.70710677
    %v3695 = vmul.f32 %v3428, 0.70710677
    %v3696 = vmul.f32 %v3237, 0.70710677
    %v3697 = vmul.f32 %v3239, 0.70710677
    %v3698 = vmul.f32 %v3430, 0.70710677
    %v3699 = vmul.f32 %v3432, 0.70710677
    %v3700 = vmul.f32 %v3243, 0.70710677
    %v3701 = vmul.f32 %v3245, 0.70710677
    %v3702 = vmul.f32 %v3436, 0.70710677
    %v3703 = vmul.f32 %v3438, 0.70710677
    %v3704 = vmul.f32 %v3247, 0.70710677
    %v3705 = vmul.f32 %v3249, 0.70710677
    %v3706 = vmul.f32 %v3440, 0.70710677
    %v3707 = vmul.f32 %v3442, 0.70710677
    %v3708 = vmul.f32 %v3253, 0.70710677
    %v3709 = vmul.f32 %v3255, 0.70710677
    %v3710 = vmul.f32 %v3446, 0.70710677
    %v3711 = vmul.f32 %v3448, 0.70710677
    %v3712 = vmul.f32 %v3257, 0.70710677
    %v3713 = vmul.f32 %v3259, 0.70710677
    %v3714 = vmul.f32 %v3450, 0.70710677
    %v3715 = vmul.f32 %v3452, 0.70710677
    %v3716 = vmul.f32 %v3263, 0.70710677
    %v3717 = vmul.f32 %v3265, 0.70710677
    %v3718 = vmul.f32 %v3456, 0.70710677
    %v3719 = vmul.f32 %v3458, 0.70710677
    %v3720 = vmul.f32 %v3267, 0.70710677
    %v3721 = vmul.f32 %v3269, 0.70710677
    %v3722 = vmul.f32 %v3460, 0.70710677
    %v3723 = vmul.f32 %v3462, 0.70710677
    %v3724 = vmul.f32 %v3273, 0.70710677
    %v3725 = vmul.f32 %v3275, 0.70710677
    %v3726 = vmul.f32 %v3466, 0.70710677
    %v3727 = vmul.f32 %v3468, 0.70710677
    %v3728 = vmul.f32 %v3277, 0.70710677
    %v3729 = vmul.f32 %v3279, 0.70710677
    %v3730 = vmul.f32 %v3470, 0.70710677
    %v3731 = vmul.f32 %v3472, 0.70710677
    %v3732 = vmul.f32 %v3283, 0.70710677
    %v3733 = vmul.f32 %v3285, 0.70710677
    %v3734 = vmul.f32 %v3476, 0.70710677
    %v3735 = vmul.f32 %v3478, 0.70710677
    %v3736 = vmul.f32 %v3287, 0.70710677
    %v3737 = vmul.f32 %v3289, 0.70710677
    %v3738 = vmul.f32 %v3480, 0.70710677
    %v3739 = vmul.f32 %v3482, 0.70710677
    %v3740 = verf.f32.pop %v3612
    %v3741 = verf.f32.pop %v3613
    %v3742 = verf.f32.pop %v3614
    %v3743 = verf.f32.pop %v3615
    %v3744 = verf.f32.pop %v3616
    %v3745 = verf.f32.pop %v3617
    %v3746 = verf.f32.pop %v3618
    %v3747 = verf.f32.pop %v3619
    %v3748 = verf.f32.pop %v3620
    %v3749 = verf.f32.pop %v3621
    %v3750 = verf.f32.pop %v3622
    %v3751 = verf.f32.pop %v3623
    %v3752 = verf.f32.pop %v3624
    %v3753 = verf.f32.pop %v3625
    %v3754 = verf.f32.pop %v3626
    %v3755 = verf.f32.pop %v3627
    %v3756 = verf.f32.pop %v3628
    %v3757 = verf.f32.pop %v3629
    %v3758 = verf.f32.pop %v3630
    %v3759 = verf.f32.pop %v3631
    %v3760 = verf.f32.pop %v3632
    %v3761 = verf.f32.pop %v3633
    %v3762 = verf.f32.pop %v3634
    %v3763 = verf.f32.pop %v3635
    %v3764 = verf.f32.pop %v3636
    %v3765 = verf.f32.pop %v3637
    %v3766 = verf.f32.pop %v3638
    %v3767 = verf.f32.pop %v3639
    %v3768 = verf.f32.pop %v3640
    %v3769 = verf.f32.pop %v3641
    %v3770 = verf.f32.pop %v3642
    %v3771 = verf.f32.pop %v3643
    %v3772 = verf.f32.pop %v3644
    %v3773 = verf.f32.pop %v3645
    %v3774 = verf.f32.pop %v3646
    %v3775 = verf.f32.pop %v3647
    %v3776 = verf.f32.pop %v3648
    %v3777 = verf.f32.pop %v3649
    %v3778 = verf.f32.pop %v3650
    %v3779 = verf.f32.pop %v3651
    %v3780 = verf.f32.pop %v3652
    %v3781 = verf.f32.pop %v3653
    %v3782 = verf.f32.pop %v3654
    %v3783 = verf.f32.pop %v3655
    %v3784 = verf.f32.pop %v3656
    %v3785 = verf.f32.pop %v3657
    %v3786 = verf.f32.pop %v3658
    %v3787 = verf.f32.pop %v3659
    %v3788 = verf.f32.pop %v3660
    %v3789 = verf.f32.pop %v3661
    %v3790 = verf.f32.pop %v3662
    %v3791 = verf.f32.pop %v3663
    %v3792 = verf.f32.pop %v3664
    %v3793 = verf.f32.pop %v3665
    %v3794 = verf.f32.pop %v3666
    %v3795 = verf.f32.pop %v3667
    %v3796 = verf.f32.pop %v3668
    %v3797 = verf.f32.pop %v3669
    %v3798 = verf.f32.pop %v3670
    %v3799 = verf.f32.pop %v3671
    %v3800 = verf.f32.pop %v3672
    %v3801 = verf.f32.pop %v3673
    %v3802 = verf.f32.pop %v3674
    %v3803 = verf.f32.pop %v3675
    %v3804 = verf.f32.pop %v3676
    %v3805 = verf.f32.pop %v3677
    %v3806 = verf.f32.pop %v3678
    %v3807 = verf.f32.pop %v3679
    %v3808 = verf.f32.pop %v3680
    %v3809 = verf.f32.pop %v3681
    %v3810 = verf.f32.pop %v3682
    %v3811 = verf.f32.pop %v3683
    %v3812 = verf.f32.pop %v3684
    %v3813 = verf.f32.pop %v3685
    %v3814 = verf.f32.pop %v3686
    %v3815 = verf.f32.pop %v3687
    %v3816 = verf.f32.pop %v3688
    %v3817 = verf.f32.pop %v3689
    %v3818 = verf.f32.pop %v3690
    %v3819 = verf.f32.pop %v3691
    %v3820 = verf.f32.pop %v3692
    %v3821 = verf.f32.pop %v3693
    %v3822 = verf.f32.pop %v3694
    %v3823 = verf.f32.pop %v3695
    %v3824 = verf.f32.pop %v3696
    %v3825 = verf.f32.pop %v3697
    %v3826 = verf.f32.pop %v3698
    %v3827 = verf.f32.pop %v3699
    %v3828 = verf.f32.pop %v3700
    %v3829 = verf.f32.pop %v3701
    %v3830 = verf.f32.pop %v3702
    %v3831 = verf.f32.pop %v3703
    %v3832 = verf.f32.pop %v3704
    %v3833 = verf.f32.pop %v3705
    %v3834 = verf.f32.pop %v3706
    %v3835 = verf.f32.pop %v3707
    %v3836 = verf.f32.pop %v3708
    %v3837 = verf.f32.pop %v3709
    %v3838 = verf.f32.pop %v3710
    %v3839 = verf.f32.pop %v3711
    %v3840 = verf.f32.pop %v3712
    %v3841 = verf.f32.pop %v3713
    %v3842 = verf.f32.pop %v3714
    %v3843 = verf.f32.pop %v3715
    %v3844 = verf.f32.pop %v3716
    %v3845 = verf.f32.pop %v3717
    %v3846 = verf.f32.pop %v3718
    %v3847 = verf.f32.pop %v3719
    %v3848 = verf.f32.pop %v3720
    %v3849 = verf.f32.pop %v3721
    %v3850 = verf.f32.pop %v3722
    %v3851 = verf.f32.pop %v3723
    %v3852 = verf.f32.pop %v3724
    %v3853 = verf.f32.pop %v3725
    %v3854 = verf.f32.pop %v3726
    %v3855 = verf.f32.pop %v3727
    %v3856 = verf.f32.pop %v3728
    %v3857 = verf.f32.pop %v3729
    %v3858 = verf.f32.pop %v3730
    %v3859 = verf.f32.pop %v3731
    %v3860 = verf.f32.pop %v3732
    %v3861 = verf.f32.pop %v3733
    %v3862 = verf.f32.pop %v3734
    %v3863 = verf.f32.pop %v3735
    %v3864 = verf.f32.pop %v3736
    %v3865 = verf.f32.pop %v3737
    %v3866 = verf.f32.pop %v3738
    %v3867 = verf.f32.pop %v3739
    %v3868 = vadd.f32 %v3740, 1.0
    %v3869 = vadd.f32 %v3741, 1.0
    %v3870 = vadd.f32 %v3742, 1.0
    %v3871 = vadd.f32 %v3743, 1.0
    %v3872 = vadd.f32 %v3744, 1.0
    %v3873 = vadd.f32 %v3745, 1.0
    %v3874 = vadd.f32 %v3746, 1.0
    %v3875 = vadd.f32 %v3747, 1.0
    %v3876 = vadd.f32 %v3748, 1.0
    %v3877 = vadd.f32 %v3749, 1.0
    %v3878 = vadd.f32 %v3750, 1.0
    %v3879 = vadd.f32 %v3751, 1.0
    %v3880 = vadd.f32 %v3752, 1.0
    %v3881 = vadd.f32 %v3753, 1.0
    %v3882 = vadd.f32 %v3754, 1.0
    %v3883 = vadd.f32 %v3755, 1.0
    %v3884 = vadd.f32 %v3756, 1.0
    %v3885 = vadd.f32 %v3757, 1.0
    %v3886 = vadd.f32 %v3758, 1.0
    %v3887 = vadd.f32 %v3759, 1.0
    %v3888 = vadd.f32 %v3760, 1.0
    %v3889 = vadd.f32 %v3761, 1.0
    %v3890 = vadd.f32 %v3762, 1.0
    %v3891 = vadd.f32 %v3763, 1.0
    %v3892 = vadd.f32 %v3764, 1.0
    %v3893 = vadd.f32 %v3765, 1.0
    %v3894 = vadd.f32 %v3766, 1.0
    %v3895 = vadd.f32 %v3767, 1.0
    %v3896 = vadd.f32 %v3768, 1.0
    %v3897 = vadd.f32 %v3769, 1.0
    %v3898 = vadd.f32 %v3770, 1.0
    %v3899 = vadd.f32 %v3771, 1.0
    %v3900 = vadd.f32 %v3772, 1.0
    %v3901 = vadd.f32 %v3773, 1.0
    %v3902 = vadd.f32 %v3774, 1.0
    %v3903 = vadd.f32 %v3775, 1.0
    %v3904 = vadd.f32 %v3776, 1.0
    %v3905 = vadd.f32 %v3777, 1.0
    %v3906 = vadd.f32 %v3778, 1.0
    %v3907 = vadd.f32 %v3779, 1.0
    %v3908 = vadd.f32 %v3780, 1.0
    %v3909 = vadd.f32 %v3781, 1.0
    %v3910 = vadd.f32 %v3782, 1.0
    %v3911 = vadd.f32 %v3783, 1.0
    %v3912 = vadd.f32 %v3784, 1.0
    %v3913 = vadd.f32 %v3785, 1.0
    %v3914 = vadd.f32 %v3786, 1.0
    %v3915 = vadd.f32 %v3787, 1.0
    %v3916 = vadd.f32 %v3788, 1.0
    %v3917 = vadd.f32 %v3789, 1.0
    %v3918 = vadd.f32 %v3790, 1.0
    %v3919 = vadd.f32 %v3791, 1.0
    %v3920 = vadd.f32 %v3792, 1.0
    %v3921 = vadd.f32 %v3793, 1.0
    %v3922 = vadd.f32 %v3794, 1.0
    %v3923 = vadd.f32 %v3795, 1.0
    %v3924 = vadd.f32 %v3796, 1.0
    %v3925 = vadd.f32 %v3797, 1.0
    %v3926 = vadd.f32 %v3798, 1.0
    %v3927 = vadd.f32 %v3799, 1.0
    %v3928 = vadd.f32 %v3800, 1.0
    %v3929 = vadd.f32 %v3801, 1.0
    %v3930 = vadd.f32 %v3802, 1.0
    %v3931 = vadd.f32 %v3803, 1.0
    %v3932 = vadd.f32 %v3804, 1.0
    %v3933 = vadd.f32 %v3805, 1.0
    %v3934 = vadd.f32 %v3806, 1.0
    %v3935 = vadd.f32 %v3807, 1.0
    %v3936 = vadd.f32 %v3808, 1.0
    %v3937 = vadd.f32 %v3809, 1.0
    %v3938 = vadd.f32 %v3810, 1.0
    %v3939 = vadd.f32 %v3811, 1.0
    %v3940 = vadd.f32 %v3812, 1.0
    %v3941 = vadd.f32 %v3813, 1.0
    %v3942 = vadd.f32 %v3814, 1.0
    %v3943 = vadd.f32 %v3815, 1.0
    %v3944 = vadd.f32 %v3816, 1.0
    %v3945 = vadd.f32 %v3817, 1.0
    %v3946 = vadd.f32 %v3818, 1.0
    %v3947 = vadd.f32 %v3819, 1.0
    %v3948 = vadd.f32 %v3820, 1.0
    %v3949 = vadd.f32 %v3821, 1.0
    %v3950 = vadd.f32 %v3822, 1.0
    %v3951 = vadd.f32 %v3823, 1.0
    %v3952 = vadd.f32 %v3824, 1.0
    %v3953 = vadd.f32 %v3825, 1.0
    %v3954 = vadd.f32 %v3826, 1.0
    %v3955 = vadd.f32 %v3827, 1.0
    %v3956 = vadd.f32 %v3828, 1.0
    %v3957 = vadd.f32 %v3829, 1.0
    %v3958 = vadd.f32 %v3830, 1.0
    %v3959 = vadd.f32 %v3831, 1.0
    %v3960 = vadd.f32 %v3832, 1.0
    %v3961 = vadd.f32 %v3833, 1.0
    %v3962 = vadd.f32 %v3834, 1.0
    %v3963 = vadd.f32 %v3835, 1.0
    %v3964 = vadd.f32 %v3836, 1.0
    %v3965 = vadd.f32 %v3837, 1.0
    %v3966 = vadd.f32 %v3838, 1.0
    %v3967 = vadd.f32 %v3839, 1.0
    %v3968 = vadd.f32 %v3840, 1.0
    %v3969 = vadd.f32 %v3841, 1.0
    %v3970 = vadd.f32 %v3842, 1.0
    %v3971 = vadd.f32 %v3843, 1.0
    %v3972 = vadd.f32 %v3844, 1.0
    %v3973 = vadd.f32 %v3845, 1.0
    %v3974 = vadd.f32 %v3846, 1.0
    %v3975 = vadd.f32 %v3847, 1.0
    %v3976 = vadd.f32 %v3848, 1.0
    %v3977 = vadd.f32 %v3849, 1.0
    %v3978 = vadd.f32 %v3850, 1.0
    %v3979 = vadd.f32 %v3851, 1.0
    %v3980 = vadd.f32 %v3852, 1.0
    %v3981 = vadd.f32 %v3853, 1.0
    %v3982 = vadd.f32 %v3854, 1.0
    %v3983 = vadd.f32 %v3855, 1.0
    %v3984 = vadd.f32 %v3856, 1.0
    %v3985 = vadd.f32 %v3857, 1.0
    %v3986 = vadd.f32 %v3858, 1.0
    %v3987 = vadd.f32 %v3859, 1.0
    %v3988 = vadd.f32 %v3860, 1.0
    %v3989 = vadd.f32 %v3861, 1.0
    %v3990 = vadd.f32 %v3862, 1.0
    %v3991 = vadd.f32 %v3863, 1.0
    %v3992 = vadd.f32 %v3864, 1.0
    %v3993 = vadd.f32 %v3865, 1.0
    %v3994 = vadd.f32 %v3866, 1.0
    %v3995 = vadd.f32 %v3867, 1.0
    %v3996 = vmul.f32 %v3484, %v3868
    %v3997 = vmul.f32 %v3485, %v3869
    %v3998 = vmul.f32 %v3486, %v3870
    %v3999 = vmul.f32 %v3487, %v3871
    %v4000 = vmul.f32 %v3488, %v3872
    %v4001 = vmul.f32 %v3489, %v3873
    %v4002 = vmul.f32 %v3490, %v3874
    %v4003 = vmul.f32 %v3491, %v3875
    %v4004 = vmul.f32 %v3492, %v3876
    %v4005 = vmul.f32 %v3493, %v3877
    %v4006 = vmul.f32 %v3494, %v3878
    %v4007 = vmul.f32 %v3495, %v3879
    %v4008 = vmul.f32 %v3496, %v3880
    %v4009 = vmul.f32 %v3497, %v3881
    %v4010 = vmul.f32 %v3498, %v3882
    %v4011 = vmul.f32 %v3499, %v3883
    %v4012 = vmul.f32 %v3500, %v3884
    %v4013 = vmul.f32 %v3501, %v3885
    %v4014 = vmul.f32 %v3502, %v3886
    %v4015 = vmul.f32 %v3503, %v3887
    %v4016 = vmul.f32 %v3504, %v3888
    %v4017 = vmul.f32 %v3505, %v3889
    %v4018 = vmul.f32 %v3506, %v3890
    %v4019 = vmul.f32 %v3507, %v3891
    %v4020 = vmul.f32 %v3508, %v3892
    %v4021 = vmul.f32 %v3509, %v3893
    %v4022 = vmul.f32 %v3510, %v3894
    %v4023 = vmul.f32 %v3511, %v3895
    %v4024 = vmul.f32 %v3512, %v3896
    %v4025 = vmul.f32 %v3513, %v3897
    %v4026 = vmul.f32 %v3514, %v3898
    %v4027 = vmul.f32 %v3515, %v3899
    %v4028 = vmul.f32 %v3516, %v3900
    %v4029 = vmul.f32 %v3517, %v3901
    %v4030 = vmul.f32 %v3518, %v3902
    %v4031 = vmul.f32 %v3519, %v3903
    %v4032 = vmul.f32 %v3520, %v3904
    %v4033 = vmul.f32 %v3521, %v3905
    %v4034 = vmul.f32 %v3522, %v3906
    %v4035 = vmul.f32 %v3523, %v3907
    %v4036 = vmul.f32 %v3524, %v3908
    %v4037 = vmul.f32 %v3525, %v3909
    %v4038 = vmul.f32 %v3526, %v3910
    %v4039 = vmul.f32 %v3527, %v3911
    %v4040 = vmul.f32 %v3528, %v3912
    %v4041 = vmul.f32 %v3529, %v3913
    %v4042 = vmul.f32 %v3530, %v3914
    %v4043 = vmul.f32 %v3531, %v3915
    %v4044 = vmul.f32 %v3532, %v3916
    %v4045 = vmul.f32 %v3533, %v3917
    %v4046 = vmul.f32 %v3534, %v3918
    %v4047 = vmul.f32 %v3535, %v3919
    %v4048 = vmul.f32 %v3536, %v3920
    %v4049 = vmul.f32 %v3537, %v3921
    %v4050 = vmul.f32 %v3538, %v3922
    %v4051 = vmul.f32 %v3539, %v3923
    %v4052 = vmul.f32 %v3540, %v3924
    %v4053 = vmul.f32 %v3541, %v3925
    %v4054 = vmul.f32 %v3542, %v3926
    %v4055 = vmul.f32 %v3543, %v3927
    %v4056 = vmul.f32 %v3544, %v3928
    %v4057 = vmul.f32 %v3545, %v3929
    %v4058 = vmul.f32 %v3546, %v3930
    %v4059 = vmul.f32 %v3547, %v3931
    %v4060 = vmul.f32 %v3548, %v3932
    %v4061 = vmul.f32 %v3549, %v3933
    %v4062 = vmul.f32 %v3550, %v3934
    %v4063 = vmul.f32 %v3551, %v3935
    %v4064 = vmul.f32 %v3552, %v3936
    %v4065 = vmul.f32 %v3553, %v3937
    %v4066 = vmul.f32 %v3554, %v3938
    %v4067 = vmul.f32 %v3555, %v3939
    %v4068 = vmul.f32 %v3556, %v3940
    %v4069 = vmul.f32 %v3557, %v3941
    %v4070 = vmul.f32 %v3558, %v3942
    %v4071 = vmul.f32 %v3559, %v3943
    %v4072 = vmul.f32 %v3560, %v3944
    %v4073 = vmul.f32 %v3561, %v3945
    %v4074 = vmul.f32 %v3562, %v3946
    %v4075 = vmul.f32 %v3563, %v3947
    %v4076 = vmul.f32 %v3564, %v3948
    %v4077 = vmul.f32 %v3565, %v3949
    %v4078 = vmul.f32 %v3566, %v3950
    %v4079 = vmul.f32 %v3567, %v3951
    %v4080 = vmul.f32 %v3568, %v3952
    %v4081 = vmul.f32 %v3569, %v3953
    %v4082 = vmul.f32 %v3570, %v3954
    %v4083 = vmul.f32 %v3571, %v3955
    %v4084 = vmul.f32 %v3572, %v3956
    %v4085 = vmul.f32 %v3573, %v3957
    %v4086 = vmul.f32 %v3574, %v3958
    %v4087 = vmul.f32 %v3575, %v3959
    %v4088 = vmul.f32 %v3576, %v3960
    %v4089 = vmul.f32 %v3577, %v3961
    %v4090 = vmul.f32 %v3578, %v3962
    %v4091 = vmul.f32 %v3579, %v3963
    %v4092 = vmul.f32 %v3580, %v3964
    %v4093 = vmul.f32 %v3581, %v3965
    %v4094 = vmul.f32 %v3582, %v3966
    %v4095 = vmul.f32 %v3583, %v3967
    %v4096 = vmul.f32 %v3584, %v3968
    %v4097 = vmul.f32 %v3585, %v3969
    %v4098 = vmul.f32 %v3586, %v3970
    %v4099 = vmul.f32 %v3587, %v3971
    %v4100 = vmul.f32 %v3588, %v3972
    %v4101 = vmul.f32 %v3589, %v3973
    %v4102 = vmul.f32 %v3590, %v3974
    %v4103 = vmul.f32 %v3591, %v3975
    %v4104 = vmul.f32 %v3592, %v3976
    %v4105 = vmul.f32 %v3593, %v3977
    %v4106 = vmul.f32 %v3594, %v3978
    %v4107 = vmul.f32 %v3595, %v3979
    %v4108 = vmul.f32 %v3596, %v3980
    %v4109 = vmul.f32 %v3597, %v3981
    %v4110 = vmul.f32 %v3598, %v3982
    %v4111 = vmul.f32 %v3599, %v3983
    %v4112 = vmul.f32 %v3600, %v3984
    %v4113 = vmul.f32 %v3601, %v3985
    %v4114 = vmul.f32 %v3602, %v3986
    %v4115 = vmul.f32 %v3603, %v3987
    %v4116 = vmul.f32 %v3604, %v3988
    %v4117 = vmul.f32 %v3605, %v3989
    %v4118 = vmul.f32 %v3606, %v3990
    %v4119 = vmul.f32 %v3607, %v3991
    %v4120 = vmul.f32 %v3608, %v3992
    %v4121 = vmul.f32 %v3609, %v3993
    %v4122 = vmul.f32 %v3610, %v3994
    %v4123 = vmul.f32 %v3611, %v3995
    %v4124 = vld [vmem:[#allocation2] sm:$0xff]
    %v4125 = vld [vmem:[#allocation2 + $0x8] sm:$0xff]
    %v4126 = vld [vmem:[#allocation2 + $0x10] sm:$0xff]
    %v4127 = vld [vmem:[#allocation2 + $0x18] sm:$0xff]
    %v4128 = vld [vmem:[#allocation2 + $0x20] sm:$0xff]
    %v4129 = vld [vmem:[#allocation2 + $0x28] sm:$0xff]
    %v4130 = vld [vmem:[#allocation2 + $0x30] sm:$0xff]
    %v4131 = vld [vmem:[#allocation2 + $0x38] sm:$0xff]
    %v4132 = vld [vmem:[#allocation2 + $0x40] sm:$0xff]
    %v4133 = vld [vmem:[#allocation2 + $0x48] sm:$0xff]
    %v4134 = vld [vmem:[#allocation2 + $0x50] sm:$0xff]
    %v4135 = vld [vmem:[#allocation2 + $0x58] sm:$0xff]
    %v4136 = vld [vmem:[#allocation2 + $0x60] sm:$0xff]
    %v4137 = vld [vmem:[#allocation2 + $0x68] sm:$0xff]
    %v4138 = vld [vmem:[#allocation2 + $0x70] sm:$0xff]
    %v4139 = vld [vmem:[#allocation2 + $0x78] sm:$0xff]
    %v4140 = vld [vmem:[#allocation2 + $0x80] sm:$0xff]
    %v4141 = vld [vmem:[#allocation2 + $0x88] sm:$0xff]
    %v4142 = vld [vmem:[#allocation2 + $0x90] sm:$0xff]
    %v4143 = vld [vmem:[#allocation2 + $0x98] sm:$0xff]
    %v4144 = vld [vmem:[#allocation2 + $0xa0] sm:$0xff]
    %v4145 = vld [vmem:[#allocation2 + $0xa8] sm:$0xff]
    %v4146 = vld [vmem:[#allocation2 + $0xb0] sm:$0xff]
    %v4147 = vld [vmem:[#allocation2 + $0xb8] sm:$0xff]
    %v4148 = vld [vmem:[#allocation2 + $0xc0] sm:$0xff]
    %v4149 = vld [vmem:[#allocation2 + $0xc8] sm:$0xff]
    %v4150 = vld [vmem:[#allocation2 + $0xd0] sm:$0xff]
    %v4151 = vld [vmem:[#allocation2 + $0xd8] sm:$0xff]
    %v4152 = vld [vmem:[#allocation2 + $0xe0] sm:$0xff]
    %v4153 = vld [vmem:[#allocation2 + $0xe8] sm:$0xff]
    %v4154 = vld [vmem:[#allocation2 + $0xf0] sm:$0xff]
    %v4155 = vld [vmem:[#allocation2 + $0xf8] sm:$0xff]
    %v4156 = vld [vmem:[#allocation2 + $0x100] sm:$0xff]
    %v4157 = vld [vmem:[#allocation2 + $0x108] sm:$0xff]
    %v4158 = vld [vmem:[#allocation2 + $0x110] sm:$0xff]
    %v4159 = vld [vmem:[#allocation2 + $0x118] sm:$0xff]
    %v4160 = vld [vmem:[#allocation2 + $0x120] sm:$0xff]
    %v4161 = vld [vmem:[#allocation2 + $0x128] sm:$0xff]
    %v4162 = vld [vmem:[#allocation2 + $0x130] sm:$0xff]
    %v4163 = vld [vmem:[#allocation2 + $0x138] sm:$0xff]
    %v4164 = vld [vmem:[#allocation2 + $0x140] sm:$0xff]
    %v4165 = vld [vmem:[#allocation2 + $0x148] sm:$0xff]
    %v4166 = vld [vmem:[#allocation2 + $0x150] sm:$0xff]
    %v4167 = vld [vmem:[#allocation2 + $0x158] sm:$0xff]
    %v4168 = vld [vmem:[#allocation2 + $0x160] sm:$0xff]
    %v4169 = vld [vmem:[#allocation2 + $0x168] sm:$0xff]
    %v4170 = vld [vmem:[#allocation2 + $0x170] sm:$0xff]
    %v4171 = vld [vmem:[#allocation2 + $0x178] sm:$0xff]
    %v4172 = vld [vmem:[#allocation2 + $0x180] sm:$0xff]
    %v4173 = vld [vmem:[#allocation2 + $0x188] sm:$0xff]
    %v4174 = vld [vmem:[#allocation2 + $0x190] sm:$0xff]
    %v4175 = vld [vmem:[#allocation2 + $0x198] sm:$0xff]
    %v4176 = vld [vmem:[#allocation2 + $0x1a0] sm:$0xff]
    %v4177 = vld [vmem:[#allocation2 + $0x1a8] sm:$0xff]
    %v4178 = vld [vmem:[#allocation2 + $0x1b0] sm:$0xff]
    %v4179 = vld [vmem:[#allocation2 + $0x1b8] sm:$0xff]
    %v4180 = vld [vmem:[#allocation2 + $0x1c0] sm:$0xff]
    %v4181 = vld [vmem:[#allocation2 + $0x1c8] sm:$0xff]
    %v4182 = vld [vmem:[#allocation2 + $0x1d0] sm:$0xff]
    %v4183 = vld [vmem:[#allocation2 + $0x1d8] sm:$0xff]
    %v4184 = vld [vmem:[#allocation2 + $0x1e0] sm:$0xff]
    %v4185 = vld [vmem:[#allocation2 + $0x1e8] sm:$0xff]
    %v4186 = vld [vmem:[#allocation2 + $0x1f0] sm:$0xff]
    %v4187 = vld [vmem:[#allocation2 + $0x1f8] sm:$0xff]
    %v4188 = vpack.c.bf16 %v4000, %v3996
    %v4189 = vpack.c.bf16 %v4001, %v3997
    %v4190 = vpack.c.bf16 %v4002, %v3998
    %v4191 = vpack.c.bf16 %v4003, %v3999
    %v4192 = vpack.c.bf16 %v4008, %v4004
    %v4193 = vpack.c.bf16 %v4009, %v4005
    %v4194 = vpack.c.bf16 %v4010, %v4006
    %v4195 = vpack.c.bf16 %v4011, %v4007
    %v4196 = vpack.c.bf16 %v4016, %v4012
    %v4197 = vpack.c.bf16 %v4017, %v4013
    %v4198 = vpack.c.bf16 %v4018, %v4014
    %v4199 = vpack.c.bf16 %v4019, %v4015
    %v4200 = vpack.c.bf16 %v4024, %v4020
    %v4201 = vpack.c.bf16 %v4025, %v4021
    %v4202 = vpack.c.bf16 %v4026, %v4022
    %v4203 = vpack.c.bf16 %v4027, %v4023
    %v4204 = vpack.c.bf16 %v4032, %v4028
    %v4205 = vpack.c.bf16 %v4033, %v4029
    %v4206 = vpack.c.bf16 %v4034, %v4030
    %v4207 = vpack.c.bf16 %v4035, %v4031
    %v4208 = vpack.c.bf16 %v4040, %v4036
    %v4209 = vpack.c.bf16 %v4041, %v4037
    %v4210 = vpack.c.bf16 %v4042, %v4038
    %v4211 = vpack.c.bf16 %v4043, %v4039
    %v4212 = vpack.c.bf16 %v4048, %v4044
    %v4213 = vpack.c.bf16 %v4049, %v4045
    %v4214 = vpack.c.bf16 %v4050, %v4046
    %v4215 = vpack.c.bf16 %v4051, %v4047
    %v4216 = vpack.c.bf16 %v4056, %v4052
    %v4217 = vpack.c.bf16 %v4057, %v4053
    %v4218 = vpack.c.bf16 %v4058, %v4054
    %v4219 = vpack.c.bf16 %v4059, %v4055
    %v4220 = vpack.c.bf16 %v4064, %v4060
    %v4221 = vpack.c.bf16 %v4065, %v4061
    %v4222 = vpack.c.bf16 %v4066, %v4062
    %v4223 = vpack.c.bf16 %v4067, %v4063
    %v4224 = vpack.c.bf16 %v4072, %v4068
    %v4225 = vpack.c.bf16 %v4073, %v4069
    %v4226 = vpack.c.bf16 %v4074, %v4070
    %v4227 = vpack.c.bf16 %v4075, %v4071
    %v4228 = vpack.c.bf16 %v4080, %v4076
    %v4229 = vpack.c.bf16 %v4081, %v4077
    %v4230 = vpack.c.bf16 %v4082, %v4078
    %v4231 = vpack.c.bf16 %v4083, %v4079
    %v4232 = vpack.c.bf16 %v4088, %v4084
    %v4233 = vpack.c.bf16 %v4089, %v4085
    %v4234 = vpack.c.bf16 %v4090, %v4086
    %v4235 = vpack.c.bf16 %v4091, %v4087
    %v4236 = vpack.c.bf16 %v4096, %v4092
    %v4237 = vpack.c.bf16 %v4097, %v4093
    %v4238 = vpack.c.bf16 %v4098, %v4094
    %v4239 = vpack.c.bf16 %v4099, %v4095
    %v4240 = vpack.c.bf16 %v4104, %v4100
    %v4241 = vpack.c.bf16 %v4105, %v4101
    %v4242 = vpack.c.bf16 %v4106, %v4102
    %v4243 = vpack.c.bf16 %v4107, %v4103
    %v4244 = vpack.c.bf16 %v4112, %v4108
    %v4245 = vpack.c.bf16 %v4113, %v4109
    %v4246 = vpack.c.bf16 %v4114, %v4110
    %v4247 = vpack.c.bf16 %v4115, %v4111
    %v4248 = vpack.c.bf16 %v4120, %v4116
    %v4249 = vpack.c.bf16 %v4121, %v4117
    %v4250 = vpack.c.bf16 %v4122, %v4118
    %v4251 = vpack.c.bf16 %v4123, %v4119
    %v4252 = vld [vmem:[#allocation9 + $0x200] sm:$0xff]
    %v4253 = vld [vmem:[#allocation9 + $0x208] sm:$0xff]
    %v4254 = vld [vmem:[#allocation9 + $0x210] sm:$0xff]
    %v4255 = vld [vmem:[#allocation9 + $0x218] sm:$0xff]
    %v4256 = vld [vmem:[#allocation9 + $0x220] sm:$0xff]
    %v4257 = vld [vmem:[#allocation9 + $0x228] sm:$0xff]
    %v4258 = vld [vmem:[#allocation9 + $0x230] sm:$0xff]
    %v4259 = vld [vmem:[#allocation9 + $0x238] sm:$0xff]
    %v4260 = vld [vmem:[#allocation9 + $0x240] sm:$0xff]
    %v4261 = vld [vmem:[#allocation9 + $0x248] sm:$0xff]
    %v4262 = vld [vmem:[#allocation9 + $0x250] sm:$0xff]
    %v4263 = vld [vmem:[#allocation9 + $0x258] sm:$0xff]
    %v4264 = vld [vmem:[#allocation9 + $0x260] sm:$0xff]
    %v4265 = vld [vmem:[#allocation9 + $0x268] sm:$0xff]
    %v4266 = vld [vmem:[#allocation9 + $0x270] sm:$0xff]
    %v4267 = vld [vmem:[#allocation9 + $0x278] sm:$0xff]
    %v4268 = vld [vmem:[#allocation9 + $0x280] sm:$0xff]
    %v4269 = vld [vmem:[#allocation9 + $0x288] sm:$0xff]
    %v4270 = vld [vmem:[#allocation9 + $0x290] sm:$0xff]
    %v4271 = vld [vmem:[#allocation9 + $0x298] sm:$0xff]
    %v4272 = vld [vmem:[#allocation9 + $0x2a0] sm:$0xff]
    %v4273 = vld [vmem:[#allocation9 + $0x2a8] sm:$0xff]
    %v4274 = vld [vmem:[#allocation9 + $0x2b0] sm:$0xff]
    %v4275 = vld [vmem:[#allocation9 + $0x2b8] sm:$0xff]
    %v4276 = vld [vmem:[#allocation9 + $0x2c0] sm:$0xff]
    %v4277 = vld [vmem:[#allocation9 + $0x2c8] sm:$0xff]
    %v4278 = vld [vmem:[#allocation9 + $0x2d0] sm:$0xff]
    %v4279 = vld [vmem:[#allocation9 + $0x2d8] sm:$0xff]
    %v4280 = vld [vmem:[#allocation9 + $0x2e0] sm:$0xff]
    %v4281 = vld [vmem:[#allocation9 + $0x2e8] sm:$0xff]
    %v4282 = vld [vmem:[#allocation9 + $0x2f0] sm:$0xff]
    %v4283 = vld [vmem:[#allocation9 + $0x2f8] sm:$0xff]
    %v4284 = vld [vmem:[#allocation9 + $0x300] sm:$0xff]
    %v4285 = vld [vmem:[#allocation9 + $0x308] sm:$0xff]
    %v4286 = vld [vmem:[#allocation9 + $0x310] sm:$0xff]
    %v4287 = vld [vmem:[#allocation9 + $0x318] sm:$0xff]
    %v4288 = vld [vmem:[#allocation9 + $0x320] sm:$0xff]
    %v4289 = vld [vmem:[#allocation9 + $0x328] sm:$0xff]
    %v4290 = vld [vmem:[#allocation9 + $0x330] sm:$0xff]
    %v4291 = vld [vmem:[#allocation9 + $0x338] sm:$0xff]
    %v4292 = vld [vmem:[#allocation9 + $0x340] sm:$0xff]
    %v4293 = vld [vmem:[#allocation9 + $0x348] sm:$0xff]
    %v4294 = vld [vmem:[#allocation9 + $0x350] sm:$0xff]
    %v4295 = vld [vmem:[#allocation9 + $0x358] sm:$0xff]
    %v4296 = vld [vmem:[#allocation9 + $0x360] sm:$0xff]
    %v4297 = vld [vmem:[#allocation9 + $0x368] sm:$0xff]
    %v4298 = vld [vmem:[#allocation9 + $0x370] sm:$0xff]
    %v4299 = vld [vmem:[#allocation9 + $0x378] sm:$0xff]
    %v4300 = vld [vmem:[#allocation9 + $0x380] sm:$0xff]
    %v4301 = vld [vmem:[#allocation9 + $0x388] sm:$0xff]
    %v4302 = vld [vmem:[#allocation9 + $0x390] sm:$0xff]
    %v4303 = vld [vmem:[#allocation9 + $0x398] sm:$0xff]
    %v4304 = vld [vmem:[#allocation9 + $0x3a0] sm:$0xff]
    %v4305 = vld [vmem:[#allocation9 + $0x3a8] sm:$0xff]
    %v4306 = vld [vmem:[#allocation9 + $0x3b0] sm:$0xff]
    %v4307 = vld [vmem:[#allocation9 + $0x3b8] sm:$0xff]
    %v4308 = vld [vmem:[#allocation9 + $0x3c0] sm:$0xff]
    %v4309 = vld [vmem:[#allocation9 + $0x3c8] sm:$0xff]
    %v4310 = vld [vmem:[#allocation9 + $0x3d0] sm:$0xff]
    %v4311 = vld [vmem:[#allocation9 + $0x3d8] sm:$0xff]
    %v4312 = vld [vmem:[#allocation9 + $0x3e0] sm:$0xff]
    %v4313 = vld [vmem:[#allocation9 + $0x3e8] sm:$0xff]
    %v4314 = vld [vmem:[#allocation9 + $0x3f0] sm:$0xff]
    %v4315 = vld [vmem:[#allocation9 + $0x3f8] sm:$0xff]
    %v4380 = vunpack.c.l.b16 %v4252
    %v4381 = vunpack.c.h.b16 %v4252
    %v4382 = vunpack.c.l.b16 %v4253
    %v4383 = vunpack.c.h.b16 %v4253
    %v4384 = vunpack.c.l.b16 %v4254
    %v4385 = vunpack.c.h.b16 %v4254
    %v4386 = vunpack.c.l.b16 %v4255
    %v4387 = vunpack.c.h.b16 %v4255
    %v4388 = vunpack.c.l.b16 %v4256
    %v4389 = vunpack.c.h.b16 %v4256
    %v4390 = vunpack.c.l.b16 %v4257
    %v4391 = vunpack.c.h.b16 %v4257
    %v4392 = vunpack.c.l.b16 %v4258
    %v4393 = vunpack.c.h.b16 %v4258
    %v4394 = vunpack.c.l.b16 %v4259
    %v4395 = vunpack.c.h.b16 %v4259
    %v4396 = vunpack.c.l.b16 %v4260
    %v4397 = vunpack.c.h.b16 %v4260
    %v4398 = vunpack.c.l.b16 %v4261
    %v4399 = vunpack.c.h.b16 %v4261
    %v4400 = vunpack.c.l.b16 %v4262
    %v4401 = vunpack.c.h.b16 %v4262
    %v4402 = vunpack.c.l.b16 %v4263
    %v4403 = vunpack.c.h.b16 %v4263
    %v4404 = vunpack.c.l.b16 %v4264
    %v4405 = vunpack.c.h.b16 %v4264
    %v4406 = vunpack.c.l.b16 %v4265
    %v4407 = vunpack.c.h.b16 %v4265
    %v4408 = vunpack.c.l.b16 %v4266
    %v4409 = vunpack.c.h.b16 %v4266
    %v4410 = vunpack.c.l.b16 %v4267
    %v4411 = vunpack.c.h.b16 %v4267
    %v4412 = vunpack.c.l.b16 %v4268
    %v4413 = vunpack.c.h.b16 %v4268
    %v4414 = vunpack.c.l.b16 %v4269
    %v4415 = vunpack.c.h.b16 %v4269
    %v4416 = vunpack.c.l.b16 %v4270
    %v4417 = vunpack.c.h.b16 %v4270
    %v4418 = vunpack.c.l.b16 %v4271
    %v4419 = vunpack.c.h.b16 %v4271
    %v4420 = vunpack.c.l.b16 %v4272
    %v4421 = vunpack.c.h.b16 %v4272
    %v4422 = vunpack.c.l.b16 %v4273
    %v4423 = vunpack.c.h.b16 %v4273
    %v4424 = vunpack.c.l.b16 %v4274
    %v4425 = vunpack.c.h.b16 %v4274
    %v4426 = vunpack.c.l.b16 %v4275
    %v4427 = vunpack.c.h.b16 %v4275
    %v4428 = vunpack.c.l.b16 %v4276
    %v4429 = vunpack.c.h.b16 %v4276
    %v4430 = vunpack.c.l.b16 %v4277
    %v4431 = vunpack.c.h.b16 %v4277
    %v4432 = vunpack.c.l.b16 %v4278
    %v4433 = vunpack.c.h.b16 %v4278
    %v4434 = vunpack.c.l.b16 %v4279
    %v4435 = vunpack.c.h.b16 %v4279
    %v4436 = vunpack.c.l.b16 %v4280
    %v4437 = vunpack.c.h.b16 %v4280
    %v4438 = vunpack.c.l.b16 %v4281
    %v4439 = vunpack.c.h.b16 %v4281
    %v4440 = vunpack.c.l.b16 %v4282
    %v4441 = vunpack.c.h.b16 %v4282
    %v4442 = vunpack.c.l.b16 %v4283
    %v4443 = vunpack.c.h.b16 %v4283
    %v4444 = vunpack.c.l.b16 %v4284
    %v4445 = vunpack.c.h.b16 %v4284
    %v4446 = vunpack.c.l.b16 %v4285
    %v4447 = vunpack.c.h.b16 %v4285
    %v4448 = vunpack.c.l.b16 %v4286
    %v4449 = vunpack.c.h.b16 %v4286
    %v4450 = vunpack.c.l.b16 %v4287
    %v4451 = vunpack.c.h.b16 %v4287
    %v4452 = vunpack.c.l.b16 %v4288
    %v4453 = vunpack.c.h.b16 %v4288
    %v4454 = vunpack.c.l.b16 %v4289
    %v4455 = vunpack.c.h.b16 %v4289
    %v4456 = vunpack.c.l.b16 %v4290
    %v4457 = vunpack.c.h.b16 %v4290
    %v4458 = vunpack.c.l.b16 %v4291
    %v4459 = vunpack.c.h.b16 %v4291
    %v4460 = vunpack.c.l.b16 %v4292
    %v4461 = vunpack.c.h.b16 %v4292
    %v4462 = vunpack.c.l.b16 %v4293
    %v4463 = vunpack.c.h.b16 %v4293
    %v4464 = vunpack.c.l.b16 %v4294
    %v4465 = vunpack.c.h.b16 %v4294
    %v4466 = vunpack.c.l.b16 %v4295
    %v4467 = vunpack.c.h.b16 %v4295
    %v4468 = vunpack.c.l.b16 %v4296
    %v4469 = vunpack.c.h.b16 %v4296
    %v4470 = vunpack.c.l.b16 %v4297
    %v4471 = vunpack.c.h.b16 %v4297
    %v4472 = vunpack.c.l.b16 %v4298
    %v4473 = vunpack.c.h.b16 %v4298
    %v4474 = vunpack.c.l.b16 %v4299
    %v4475 = vunpack.c.h.b16 %v4299
    %v4476 = vunpack.c.l.b16 %v4300
    %v4477 = vunpack.c.h.b16 %v4300
    %v4478 = vunpack.c.l.b16 %v4301
    %v4479 = vunpack.c.h.b16 %v4301
    %v4480 = vunpack.c.l.b16 %v4302
    %v4481 = vunpack.c.h.b16 %v4302
    %v4482 = vunpack.c.l.b16 %v4303
    %v4483 = vunpack.c.h.b16 %v4303
    %v4484 = vunpack.c.l.b16 %v4304
    %v4485 = vunpack.c.h.b16 %v4304
    %v4486 = vunpack.c.l.b16 %v4305
    %v4487 = vunpack.c.h.b16 %v4305
    %v4488 = vunpack.c.l.b16 %v4306
    %v4489 = vunpack.c.h.b16 %v4306
    %v4490 = vunpack.c.l.b16 %v4307
    %v4491 = vunpack.c.h.b16 %v4307
    %v4492 = vunpack.c.l.b16 %v4308
    %v4493 = vunpack.c.h.b16 %v4308
    %v4494 = vunpack.c.l.b16 %v4309
    %v4495 = vunpack.c.h.b16 %v4309
    %v4496 = vunpack.c.l.b16 %v4310
    %v4497 = vunpack.c.h.b16 %v4310
    %v4498 = vunpack.c.l.b16 %v4311
    %v4499 = vunpack.c.h.b16 %v4311
    %v4500 = vunpack.c.l.b16 %v4312
    %v4501 = vunpack.c.h.b16 %v4312
    %v4502 = vunpack.c.l.b16 %v4313
    %v4503 = vunpack.c.h.b16 %v4313
    %v4504 = vunpack.c.l.b16 %v4314
    %v4505 = vunpack.c.h.b16 %v4314
    %v4506 = vunpack.c.l.b16 %v4315
    %v4507 = vunpack.c.h.b16 %v4315
    %v4508 = vpack.c.b16 %v4382, %v4380
    %v4509 = vpack.c.b16 %v4383, %v4381
    %v4510 = vpack.c.b16 %v4386, %v4384
    %v4511 = vpack.c.b16 %v4387, %v4385
    %v4512 = vpack.c.b16 %v4390, %v4388
    %v4513 = vpack.c.b16 %v4391, %v4389
    %v4514 = vpack.c.b16 %v4394, %v4392
    %v4515 = vpack.c.b16 %v4395, %v4393
    %v4516 = vpack.c.b16 %v4398, %v4396
    %v4517 = vpack.c.b16 %v4399, %v4397
    %v4518 = vpack.c.b16 %v4402, %v4400
    %v4519 = vpack.c.b16 %v4403, %v4401
    %v4520 = vpack.c.b16 %v4406, %v4404
    %v4521 = vpack.c.b16 %v4407, %v4405
    %v4522 = vpack.c.b16 %v4410, %v4408
    %v4523 = vpack.c.b16 %v4411, %v4409
    %v4524 = vpack.c.b16 %v4414, %v4412
    %v4525 = vpack.c.b16 %v4415, %v4413
    %v4526 = vpack.c.b16 %v4418, %v4416
    %v4527 = vpack.c.b16 %v4419, %v4417
    %v4528 = vpack.c.b16 %v4422, %v4420
    %v4529 = vpack.c.b16 %v4423, %v4421
    %v4530 = vpack.c.b16 %v4426, %v4424
    %v4531 = vpack.c.b16 %v4427, %v4425
    %v4532 = vpack.c.b16 %v4430, %v4428
    %v4533 = vpack.c.b16 %v4431, %v4429
    %v4534 = vpack.c.b16 %v4434, %v4432
    %v4535 = vpack.c.b16 %v4435, %v4433
    %v4536 = vpack.c.b16 %v4438, %v4436
    %v4537 = vpack.c.b16 %v4439, %v4437
    %v4538 = vpack.c.b16 %v4442, %v4440
    %v4539 = vpack.c.b16 %v4443, %v4441
    %v4540 = vpack.c.b16 %v4446, %v4444
    %v4541 = vpack.c.b16 %v4447, %v4445
    %v4542 = vpack.c.b16 %v4450, %v4448
    %v4543 = vpack.c.b16 %v4451, %v4449
    %v4544 = vpack.c.b16 %v4454, %v4452
    %v4545 = vpack.c.b16 %v4455, %v4453
    %v4546 = vpack.c.b16 %v4458, %v4456
    %v4547 = vpack.c.b16 %v4459, %v4457
    %v4548 = vpack.c.b16 %v4462, %v4460
    %v4549 = vpack.c.b16 %v4463, %v4461
    %v4550 = vpack.c.b16 %v4466, %v4464
    %v4551 = vpack.c.b16 %v4467, %v4465
    %v4552 = vpack.c.b16 %v4470, %v4468
    %v4553 = vpack.c.b16 %v4471, %v4469
    %v4554 = vpack.c.b16 %v4474, %v4472
    %v4555 = vpack.c.b16 %v4475, %v4473
    %v4556 = vpack.c.b16 %v4478, %v4476
    %v4557 = vpack.c.b16 %v4479, %v4477
    %v4558 = vpack.c.b16 %v4482, %v4480
    %v4559 = vpack.c.b16 %v4483, %v4481
    %v4560 = vpack.c.b16 %v4486, %v4484
    %v4561 = vpack.c.b16 %v4487, %v4485
    %v4562 = vpack.c.b16 %v4490, %v4488
    %v4563 = vpack.c.b16 %v4491, %v4489
    %v4564 = vpack.c.b16 %v4494, %v4492
    %v4565 = vpack.c.b16 %v4495, %v4493
    %v4566 = vpack.c.b16 %v4498, %v4496
    %v4567 = vpack.c.b16 %v4499, %v4497
    %v4568 = vpack.c.b16 %v4502, %v4500
    %v4569 = vpack.c.b16 %v4503, %v4501
    %v4570 = vpack.c.b16 %v4506, %v4504
    %v4571 = vpack.c.b16 %v4507, %v4505
    %4636 = vmatprep.subr.bf16.mxu0 %v4509
    %4637 = vmatpush1.bf16.msra.mxu0 %v4508
    %4638 = vmatprep.subr.bf16.mxu0 %v4511
    %4639 = vmatpush1.bf16.msra.mxu0 %v4510
    %4640 = vmatprep.subr.bf16.mxu0 %v4513
    %4641 = vmatpush1.bf16.msra.mxu0 %v4512
    %4642 = vmatprep.subr.bf16.mxu0 %v4515
    %4643 = vmatpush1.bf16.msra.mxu0 %v4514
    %4644 = vmatprep.subr.bf16.mxu0 %v4517
    %4645 = vmatpush1.bf16.msra.mxu0 %v4516
    %4646 = vmatprep.subr.bf16.mxu0 %v4519
    %4647 = vmatpush1.bf16.msra.mxu0 %v4518
    %4648 = vmatprep.subr.bf16.mxu0 %v4521
    %4649 = vmatpush1.bf16.msra.mxu0 %v4520
    %4650 = vmatprep.subr.bf16.mxu0 %v4523
    %4651 = vmatpush1.bf16.msra.mxu0 %v4522
    %4652 = vmatprep.subr.bf16.mxu0 %v4525
    %4653 = vmatpush1.bf16.msra.mxu0 %v4524
    %4654 = vmatprep.subr.bf16.mxu0 %v4527
    %4655 = vmatpush1.bf16.msra.mxu0 %v4526
    %4656 = vmatprep.subr.bf16.mxu0 %v4529
    %4657 = vmatpush1.bf16.msra.mxu0 %v4528
    %4658 = vmatprep.subr.bf16.mxu0 %v4531
    %4659 = vmatpush1.bf16.msra.mxu0 %v4530
    %4660 = vmatprep.subr.bf16.mxu0 %v4533
    %4661 = vmatpush1.bf16.msra.mxu0 %v4532
    %4662 = vmatprep.subr.bf16.mxu0 %v4535
    %4663 = vmatpush1.bf16.msra.mxu0 %v4534
    %4664 = vmatprep.subr.bf16.mxu0 %v4537
    %4665 = vmatpush1.bf16.msra.mxu0 %v4536
    %4666 = vmatprep.subr.bf16.mxu0 %v4539
    %4667 = vmatpush1.bf16.msra.mxu0 %v4538
    %4668 = vmatprep.mubr.bf16.mxu0 %v4189
    %4669 = vmatmul.mubr.bf16.gmra.mrb[0].mxu0 %v4188
    %v4670 = vpop.f32.mrb[0].mxu0
    %v4671 = vadd.f32 0.0, %v4670
    %v4672 = vpop.f32.mrb[0].mxu0
    %v4673 = vadd.f32 0.0, %v4672
    %v4674 = vpop.f32.mrb[0].mxu0
    %v4675 = vadd.f32 0.0, %v4674
    %v4676 = vpop.f32.mrb[0].mxu0
    %v4677 = vadd.f32 0.0, %v4676
    %4678 = vmatprep.mubr.bf16.mxu0 %v4193
    %4679 = vmatmul.mubr.bf16.gmra.mrb[0].mxu0 %v4192
    %v4680 = vpop.f32.mrb[0].mxu0
    %v4681 = vadd.f32 0.0, %v4680
    %v4682 = vpop.f32.mrb[0].mxu0
    %v4683 = vadd.f32 0.0, %v4682
    %v4684 = vpop.f32.mrb[0].mxu0
    %v4685 = vadd.f32 0.0, %v4684
    %v4686 = vpop.f32.mrb[0].mxu0
    %v4687 = vadd.f32 0.0, %v4686
    %4688 = vmatprep.mubr.bf16.mxu0 %v4197
    %4689 = vmatmul.mubr.bf16.gmra.mrb[0].mxu0 %v4196
    %v4690 = vpop.f32.mrb[0].mxu0
    %v4691 = vadd.f32 0.0, %v4690
    %v4692 = vpop.f32.mrb[0].mxu0
    %v4693 = vadd.f32 0.0, %v4692
    %v4694 = vpop.f32.mrb[0].mxu0
    %v4695 = vadd.f32 0.0, %v4694
    %v4696 = vpop.f32.mrb[0].mxu0
    %v4697 = vadd.f32 0.0, %v4696
    %4698 = vmatprep.mubr.bf16.mxu0 %v4201
    %4699 = vmatmul.mubr.bf16.gmra.mrb[0].mxu0 %v4200
    %v4700 = vpop.f32.mrb[0].mxu0
    %v4701 = vadd.f32 0.0, %v4700
    %v4702 = vpop.f32.mrb[0].mxu0
    %v4703 = vadd.f32 0.0, %v4702
    %v4704 = vpop.f32.mrb[0].mxu0
    %v4705 = vadd.f32 0.0, %v4704
    %v4706 = vpop.f32.mrb[0].mxu0
    %v4707 = vadd.f32 0.0, %v4706
    %4708 = vmatprep.mubr.bf16.mxu0 %v4205
    %4709 = vmatmul.mubr.bf16.gmra.mrb[0].mxu0 %v4204
    %v4710 = vpop.f32.mrb[0].mxu0
    %v4711 = vadd.f32 0.0, %v4710
    %v4712 = vpop.f32.mrb[0].mxu0
    %v4713 = vadd.f32 0.0, %v4712
    %v4714 = vpop.f32.mrb[0].mxu0
    %v4715 = vadd.f32 0.0, %v4714
    %v4716 = vpop.f32.mrb[0].mxu0
    %v4717 = vadd.f32 0.0, %v4716
    %4718 = vmatprep.mubr.bf16.mxu0 %v4209
    %4719 = vmatmul.mubr.bf16.gmra.mrb[0].mxu0 %v4208
    %v4720 = vpop.f32.mrb[0].mxu0
    %v4721 = vadd.f32 0.0, %v4720
    %v4722 = vpop.f32.mrb[0].mxu0
    %v4723 = vadd.f32 0.0, %v4722
    %v4724 = vpop.f32.mrb[0].mxu0
    %v4725 = vadd.f32 0.0, %v4724
    %v4726 = vpop.f32.mrb[0].mxu0
    %v4727 = vadd.f32 0.0, %v4726
    %4728 = vmatprep.mubr.bf16.mxu0 %v4213
    %4729 = vmatmul.mubr.bf16.gmra.mrb[0].mxu0 %v4212
    %v4730 = vpop.f32.mrb[0].mxu0
    %v4731 = vadd.f32 0.0, %v4730
    %v4732 = vpop.f32.mrb[0].mxu0
    %v4733 = vadd.f32 0.0, %v4732
    %v4734 = vpop.f32.mrb[0].mxu0
    %v4735 = vadd.f32 0.0, %v4734
    %v4736 = vpop.f32.mrb[0].mxu0
    %v4737 = vadd.f32 0.0, %v4736
    %4738 = vmatprep.mubr.bf16.mxu0 %v4217
    %4739 = vmatmul.mubr.bf16.gmra.mrb[0].mxu0 %v4216
    %v4740 = vpop.f32.mrb[0].mxu0
    %v4741 = vadd.f32 0.0, %v4740
    %v4742 = vpop.f32.mrb[0].mxu0
    %v4743 = vadd.f32 0.0, %v4742
    %v4744 = vpop.f32.mrb[0].mxu0
    %v4745 = vadd.f32 0.0, %v4744
    %v4746 = vpop.f32.mrb[0].mxu0
    %v4747 = vadd.f32 0.0, %v4746
    %4748 = vmatprep.mubr.bf16.mxu0 %v4221
    %4749 = vmatmul.mubr.bf16.gmra.mrb[0].mxu0 %v4220
    %v4750 = vpop.f32.mrb[0].mxu0
    %v4751 = vadd.f32 0.0, %v4750
    %v4752 = vpop.f32.mrb[0].mxu0
    %v4753 = vadd.f32 0.0, %v4752
    %v4754 = vpop.f32.mrb[0].mxu0
    %v4755 = vadd.f32 0.0, %v4754
    %v4756 = vpop.f32.mrb[0].mxu0
    %v4757 = vadd.f32 0.0, %v4756
    %4758 = vmatprep.mubr.bf16.mxu0 %v4225
    %4759 = vmatmul.mubr.bf16.gmra.mrb[0].mxu0 %v4224
    %v4760 = vpop.f32.mrb[0].mxu0
    %v4761 = vadd.f32 0.0, %v4760
    %v4762 = vpop.f32.mrb[0].mxu0
    %v4763 = vadd.f32 0.0, %v4762
    %v4764 = vpop.f32.mrb[0].mxu0
    %v4765 = vadd.f32 0.0, %v4764
    %v4766 = vpop.f32.mrb[0].mxu0
    %v4767 = vadd.f32 0.0, %v4766
    %4768 = vmatprep.mubr.bf16.mxu0 %v4229
    %4769 = vmatmul.mubr.bf16.gmra.mrb[0].mxu0 %v4228
    %v4770 = vpop.f32.mrb[0].mxu0
    %v4771 = vadd.f32 0.0, %v4770
    %v4772 = vpop.f32.mrb[0].mxu0
    %v4773 = vadd.f32 0.0, %v4772
    %v4774 = vpop.f32.mrb[0].mxu0
    %v4775 = vadd.f32 0.0, %v4774
    %v4776 = vpop.f32.mrb[0].mxu0
    %v4777 = vadd.f32 0.0, %v4776
    %4778 = vmatprep.mubr.bf16.mxu0 %v4233
    %4779 = vmatmul.mubr.bf16.gmra.mrb[0].mxu0 %v4232
    %v4780 = vpop.f32.mrb[0].mxu0
    %v4781 = vadd.f32 0.0, %v4780
    %v4782 = vpop.f32.mrb[0].mxu0
    %v4783 = vadd.f32 0.0, %v4782
    %v4784 = vpop.f32.mrb[0].mxu0
    %v4785 = vadd.f32 0.0, %v4784
    %v4786 = vpop.f32.mrb[0].mxu0
    %v4787 = vadd.f32 0.0, %v4786
    %4788 = vmatprep.mubr.bf16.mxu0 %v4237
    %4789 = vmatmul.mubr.bf16.gmra.mrb[0].mxu0 %v4236
    %v4790 = vpop.f32.mrb[0].mxu0
    %v4791 = vadd.f32 0.0, %v4790
    %v4792 = vpop.f32.mrb[0].mxu0
    %v4793 = vadd.f32 0.0, %v4792
    %v4794 = vpop.f32.mrb[0].mxu0
    %v4795 = vadd.f32 0.0, %v4794
    %v4796 = vpop.f32.mrb[0].mxu0
    %v4797 = vadd.f32 0.0, %v4796
    %4798 = vmatprep.mubr.bf16.mxu0 %v4241
    %4799 = vmatmul.mubr.bf16.gmra.mrb[0].mxu0 %v4240
    %v4800 = vpop.f32.mrb[0].mxu0
    %v4801 = vadd.f32 0.0, %v4800
    %v4802 = vpop.f32.mrb[0].mxu0
    %v4803 = vadd.f32 0.0, %v4802
    %v4804 = vpop.f32.mrb[0].mxu0
    %v4805 = vadd.f32 0.0, %v4804
    %v4806 = vpop.f32.mrb[0].mxu0
    %v4807 = vadd.f32 0.0, %v4806
    %4808 = vmatprep.mubr.bf16.mxu0 %v4245
    %4809 = vmatmul.mubr.bf16.gmra.mrb[0].mxu0 %v4244
    %v4810 = vpop.f32.mrb[0].mxu0
    %v4811 = vadd.f32 0.0, %v4810
    %v4812 = vpop.f32.mrb[0].mxu0
    %v4813 = vadd.f32 0.0, %v4812
    %v4814 = vpop.f32.mrb[0].mxu0
    %v4815 = vadd.f32 0.0, %v4814
    %v4816 = vpop.f32.mrb[0].mxu0
    %v4817 = vadd.f32 0.0, %v4816
    %4818 = vmatprep.mubr.bf16.mxu0 %v4249
    %4819 = vmatmul.mubr.bf16.gmra.mrb[0].mxu0 %v4248
    %v4820 = vpop.f32.mrb[0].mxu0
    %v4821 = vadd.f32 0.0, %v4820
    %v4822 = vpop.f32.mrb[0].mxu0
    %v4823 = vadd.f32 0.0, %v4822
    %v4824 = vpop.f32.mrb[0].mxu0
    %v4825 = vadd.f32 0.0, %v4824
    %v4826 = vpop.f32.mrb[0].mxu0
    %v4827 = vadd.f32 0.0, %v4826
    %4828 = vdwg.mxu0
    %4829 = vmatprep.subr.bf16.mxu0 %v4541
    %4830 = vmatpush1.bf16.msra.mxu0 %v4540
    %4831 = vmatprep.subr.bf16.mxu0 %v4543
    %4832 = vmatpush1.bf16.msra.mxu0 %v4542
    %4833 = vmatprep.subr.bf16.mxu0 %v4545
    %4834 = vmatpush1.bf16.msra.mxu0 %v4544
    %4835 = vmatprep.subr.bf16.mxu0 %v4547
    %4836 = vmatpush1.bf16.msra.mxu0 %v4546
    %4837 = vmatprep.subr.bf16.mxu0 %v4549
    %4838 = vmatpush1.bf16.msra.mxu0 %v4548
    %4839 = vmatprep.subr.bf16.mxu0 %v4551
    %4840 = vmatpush1.bf16.msra.mxu0 %v4550
    %4841 = vmatprep.subr.bf16.mxu0 %v4553
    %4842 = vmatpush1.bf16.msra.mxu0 %v4552
    %4843 = vmatprep.subr.bf16.mxu0 %v4555
    %4844 = vmatpush1.bf16.msra.mxu0 %v4554
    %4845 = vmatprep.subr.bf16.mxu0 %v4557
    %4846 = vmatpush1.bf16.msra.mxu0 %v4556
    %4847 = vmatprep.subr.bf16.mxu0 %v4559
    %4848 = vmatpush1.bf16.msra.mxu0 %v4558
    %4849 = vmatprep.subr.bf16.mxu0 %v4561
    %4850 = vmatpush1.bf16.msra.mxu0 %v4560
    %4851 = vmatprep.subr.bf16.mxu0 %v4563
    %4852 = vmatpush1.bf16.msra.mxu0 %v4562
    %4853 = vmatprep.subr.bf16.mxu0 %v4565
    %4854 = vmatpush1.bf16.msra.mxu0 %v4564
    %4855 = vmatprep.subr.bf16.mxu0 %v4567
    %4856 = vmatpush1.bf16.msra.mxu0 %v4566
    %4857 = vmatprep.subr.bf16.mxu0 %v4569
    %4858 = vmatpush1.bf16.msra.mxu0 %v4568
    %4859 = vmatprep.subr.bf16.mxu0 %v4571
    %4860 = vmatpush1.bf16.msra.mxu0 %v4570
    %4861 = vmatprep.mubr.bf16.mxu0 %v4191
    %4862 = vmatmul.mubr.bf16.gmra.mrb[0].mxu0 %v4190
    %v4863 = vpop.f32.mrb[0].mxu0
    %v4864 = vadd.f32 %v4671, %v4863
    %v4865 = vpop.f32.mrb[0].mxu0
    %v4866 = vadd.f32 %v4673, %v4865
    %v4867 = vpop.f32.mrb[0].mxu0
    %v4868 = vadd.f32 %v4675, %v4867
    %v4869 = vpop.f32.mrb[0].mxu0
    %v4870 = vadd.f32 %v4677, %v4869
    %4871 = vmatprep.mubr.bf16.mxu0 %v4195
    %4872 = vmatmul.mubr.bf16.gmra.mrb[0].mxu0 %v4194
    %v4873 = vpop.f32.mrb[0].mxu0
    %v4874 = vadd.f32 %v4681, %v4873
    %v4875 = vpop.f32.mrb[0].mxu0
    %v4876 = vadd.f32 %v4683, %v4875
    %v4877 = vpop.f32.mrb[0].mxu0
    %v4878 = vadd.f32 %v4685, %v4877
    %v4879 = vpop.f32.mrb[0].mxu0
    %v4880 = vadd.f32 %v4687, %v4879
    %4881 = vmatprep.mubr.bf16.mxu0 %v4199
    %4882 = vmatmul.mubr.bf16.gmra.mrb[0].mxu0 %v4198
    %v4883 = vpop.f32.mrb[0].mxu0
    %v4884 = vadd.f32 %v4691, %v4883
    %v4885 = vpop.f32.mrb[0].mxu0
    %v4886 = vadd.f32 %v4693, %v4885
    %v4887 = vpop.f32.mrb[0].mxu0
    %v4888 = vadd.f32 %v4695, %v4887
    %v4889 = vpop.f32.mrb[0].mxu0
    %v4890 = vadd.f32 %v4697, %v4889
    %4891 = vmatprep.mubr.bf16.mxu0 %v4203
    %4892 = vmatmul.mubr.bf16.gmra.mrb[0].mxu0 %v4202
    %v4893 = vpop.f32.mrb[0].mxu0
    %v4894 = vadd.f32 %v4701, %v4893
    %v4895 = vpop.f32.mrb[0].mxu0
    %v4896 = vadd.f32 %v4703, %v4895
    %v4897 = vpop.f32.mrb[0].mxu0
    %v4898 = vadd.f32 %v4705, %v4897
    %v4899 = vpop.f32.mrb[0].mxu0
    %v4900 = vadd.f32 %v4707, %v4899
    %4901 = vmatprep.mubr.bf16.mxu0 %v4207
    %4902 = vmatmul.mubr.bf16.gmra.mrb[0].mxu0 %v4206
    %v4903 = vpop.f32.mrb[0].mxu0
    %v4904 = vadd.f32 %v4711, %v4903
    %v4905 = vpop.f32.mrb[0].mxu0
    %v4906 = vadd.f32 %v4713, %v4905
    %v4907 = vpop.f32.mrb[0].mxu0
    %v4908 = vadd.f32 %v4715, %v4907
    %v4909 = vpop.f32.mrb[0].mxu0
    %v4910 = vadd.f32 %v4717, %v4909
    %4911 = vmatprep.mubr.bf16.mxu0 %v4211
    %4912 = vmatmul.mubr.bf16.gmra.mrb[0].mxu0 %v4210
    %v4913 = vpop.f32.mrb[0].mxu0
    %v4914 = vadd.f32 %v4721, %v4913
    %v4915 = vpop.f32.mrb[0].mxu0
    %v4916 = vadd.f32 %v4723, %v4915
    %v4917 = vpop.f32.mrb[0].mxu0
    %v4918 = vadd.f32 %v4725, %v4917
    %v4919 = vpop.f32.mrb[0].mxu0
    %v4920 = vadd.f32 %v4727, %v4919
    %4921 = vmatprep.mubr.bf16.mxu0 %v4215
    %4922 = vmatmul.mubr.bf16.gmra.mrb[0].mxu0 %v4214
    %v4923 = vpop.f32.mrb[0].mxu0
    %v4924 = vadd.f32 %v4731, %v4923
    %v4925 = vpop.f32.mrb[0].mxu0
    %v4926 = vadd.f32 %v4733, %v4925
    %v4927 = vpop.f32.mrb[0].mxu0
    %v4928 = vadd.f32 %v4735, %v4927
    %v4929 = vpop.f32.mrb[0].mxu0
    %v4930 = vadd.f32 %v4737, %v4929
    %4931 = vmatprep.mubr.bf16.mxu0 %v4219
    %4932 = vmatmul.mubr.bf16.gmra.mrb[0].mxu0 %v4218
    %v4933 = vpop.f32.mrb[0].mxu0
    %v4934 = vadd.f32 %v4741, %v4933
    %v4935 = vpop.f32.mrb[0].mxu0
    %v4936 = vadd.f32 %v4743, %v4935
    %v4937 = vpop.f32.mrb[0].mxu0
    %v4938 = vadd.f32 %v4745, %v4937
    %v4939 = vpop.f32.mrb[0].mxu0
    %v4940 = vadd.f32 %v4747, %v4939
    %4941 = vmatprep.mubr.bf16.mxu0 %v4223
    %4942 = vmatmul.mubr.bf16.gmra.mrb[0].mxu0 %v4222
    %v4943 = vpop.f32.mrb[0].mxu0
    %v4944 = vadd.f32 %v4751, %v4943
    %v4945 = vpop.f32.mrb[0].mxu0
    %v4946 = vadd.f32 %v4753, %v4945
    %v4947 = vpop.f32.mrb[0].mxu0
    %v4948 = vadd.f32 %v4755, %v4947
    %v4949 = vpop.f32.mrb[0].mxu0
    %v4950 = vadd.f32 %v4757, %v4949
    %4951 = vmatprep.mubr.bf16.mxu0 %v4227
    %4952 = vmatmul.mubr.bf16.gmra.mrb[0].mxu0 %v4226
    %v4953 = vpop.f32.mrb[0].mxu0
    %v4954 = vadd.f32 %v4761, %v4953
    %v4955 = vpop.f32.mrb[0].mxu0
    %v4956 = vadd.f32 %v4763, %v4955
    %v4957 = vpop.f32.mrb[0].mxu0
    %v4958 = vadd.f32 %v4765, %v4957
    %v4959 = vpop.f32.mrb[0].mxu0
    %v4960 = vadd.f32 %v4767, %v4959
    %4961 = vmatprep.mubr.bf16.mxu0 %v4231
    %4962 = vmatmul.mubr.bf16.gmra.mrb[0].mxu0 %v4230
    %v4963 = vpop.f32.mrb[0].mxu0
    %v4964 = vadd.f32 %v4771, %v4963
    %v4965 = vpop.f32.mrb[0].mxu0
    %v4966 = vadd.f32 %v4773, %v4965
    %v4967 = vpop.f32.mrb[0].mxu0
    %v4968 = vadd.f32 %v4775, %v4967
    %v4969 = vpop.f32.mrb[0].mxu0
    %v4970 = vadd.f32 %v4777, %v4969
    %4971 = vmatprep.mubr.bf16.mxu0 %v4235
    %4972 = vmatmul.mubr.bf16.gmra.mrb[0].mxu0 %v4234
    %v4973 = vpop.f32.mrb[0].mxu0
    %v4974 = vadd.f32 %v4781, %v4973
    %v4975 = vpop.f32.mrb[0].mxu0
    %v4976 = vadd.f32 %v4783, %v4975
    %v4977 = vpop.f32.mrb[0].mxu0
    %v4978 = vadd.f32 %v4785, %v4977
    %v4979 = vpop.f32.mrb[0].mxu0
    %v4980 = vadd.f32 %v4787, %v4979
    %4981 = vmatprep.mubr.bf16.mxu0 %v4239
    %4982 = vmatmul.mubr.bf16.gmra.mrb[0].mxu0 %v4238
    %v4983 = vpop.f32.mrb[0].mxu0
    %v4984 = vadd.f32 %v4791, %v4983
    %v4985 = vpop.f32.mrb[0].mxu0
    %v4986 = vadd.f32 %v4793, %v4985
    %v4987 = vpop.f32.mrb[0].mxu0
    %v4988 = vadd.f32 %v4795, %v4987
    %v4989 = vpop.f32.mrb[0].mxu0
    %v4990 = vadd.f32 %v4797, %v4989
    %4991 = vmatprep.mubr.bf16.mxu0 %v4243
    %4992 = vmatmul.mubr.bf16.gmra.mrb[0].mxu0 %v4242
    %v4993 = vpop.f32.mrb[0].mxu0
    %v4994 = vadd.f32 %v4801, %v4993
    %v4995 = vpop.f32.mrb[0].mxu0
    %v4996 = vadd.f32 %v4803, %v4995
    %v4997 = vpop.f32.mrb[0].mxu0
    %v4998 = vadd.f32 %v4805, %v4997
    %v4999 = vpop.f32.mrb[0].mxu0
    %v5000 = vadd.f32 %v4807, %v4999
    %5001 = vmatprep.mubr.bf16.mxu0 %v4247
    %5002 = vmatmul.mubr.bf16.gmra.mrb[0].mxu0 %v4246
    %v5003 = vpop.f32.mrb[0].mxu0
    %v5004 = vadd.f32 %v4811, %v5003
    %v5005 = vpop.f32.mrb[0].mxu0
    %v5006 = vadd.f32 %v4813, %v5005
    %v5007 = vpop.f32.mrb[0].mxu0
    %v5008 = vadd.f32 %v4815, %v5007
    %v5009 = vpop.f32.mrb[0].mxu0
    %v5010 = vadd.f32 %v4817, %v5009
    %5011 = vmatprep.mubr.bf16.mxu0 %v4251
    %5012 = vmatmul.mubr.bf16.gmra.mrb[0].mxu0 %v4250
    %v5013 = vpop.f32.mrb[0].mxu0
    %v5014 = vadd.f32 %v4821, %v5013
    %v5015 = vpop.f32.mrb[0].mxu0
    %v5016 = vadd.f32 %v4823, %v5015
    %v5017 = vpop.f32.mrb[0].mxu0
    %v5018 = vadd.f32 %v4825, %v5017
    %v5019 = vpop.f32.mrb[0].mxu0
    %v5020 = vadd.f32 %v4827, %v5019
    %5021 = vdwg.mxu0
    %v5022 = vadd.f32 %v4124, %v4864
    %v5023 = vadd.f32 %v4125, %v4866
    %v5024 = vadd.f32 %v4126, %v4868
    %v5025 = vadd.f32 %v4127, %v4870
    %v5026 = vadd.f32 %v4128, %v4874
    %v5027 = vadd.f32 %v4129, %v4876
    %v5028 = vadd.f32 %v4130, %v4878
    %v5029 = vadd.f32 %v4131, %v4880
    %v5030 = vadd.f32 %v4132, %v4884
    %v5031 = vadd.f32 %v4133, %v4886
    %v5032 = vadd.f32 %v4134, %v4888
    %v5033 = vadd.f32 %v4135, %v4890
    %v5034 = vadd.f32 %v4136, %v4894
    %v5035 = vadd.f32 %v4137, %v4896
    %v5036 = vadd.f32 %v4138, %v4898
    %v5037 = vadd.f32 %v4139, %v4900
    %v5038 = vadd.f32 %v4140, %v4904
    %v5039 = vadd.f32 %v4141, %v4906
    %v5040 = vadd.f32 %v4142, %v4908
    %v5041 = vadd.f32 %v4143, %v4910
    %v5042 = vadd.f32 %v4144, %v4914
    %v5043 = vadd.f32 %v4145, %v4916
    %v5044 = vadd.f32 %v4146, %v4918
    %v5045 = vadd.f32 %v4147, %v4920
    %v5046 = vadd.f32 %v4148, %v4924
    %v5047 = vadd.f32 %v4149, %v4926
    %v5048 = vadd.f32 %v4150, %v4928
    %v5049 = vadd.f32 %v4151, %v4930
    %v5050 = vadd.f32 %v4152, %v4934
    %v5051 = vadd.f32 %v4153, %v4936
    %v5052 = vadd.f32 %v4154, %v4938
    %v5053 = vadd.f32 %v4155, %v4940
    %v5054 = vadd.f32 %v4156, %v4944
    %v5055 = vadd.f32 %v4157, %v4946
    %v5056 = vadd.f32 %v4158, %v4948
    %v5057 = vadd.f32 %v4159, %v4950
    %v5058 = vadd.f32 %v4160, %v4954
    %v5059 = vadd.f32 %v4161, %v4956
    %v5060 = vadd.f32 %v4162, %v4958
    %v5061 = vadd.f32 %v4163, %v4960
    %v5062 = vadd.f32 %v4164, %v4964
    %v5063 = vadd.f32 %v4165, %v4966
    %v5064 = vadd.f32 %v4166, %v4968
    %v5065 = vadd.f32 %v4167, %v4970
    %v5066 = vadd.f32 %v4168, %v4974
    %v5067 = vadd.f32 %v4169, %v4976
    %v5068 = vadd.f32 %v4170, %v4978
    %v5069 = vadd.f32 %v4171, %v4980
    %v5070 = vadd.f32 %v4172, %v4984
    %v5071 = vadd.f32 %v4173, %v4986
    %v5072 = vadd.f32 %v4174, %v4988
    %v5073 = vadd.f32 %v4175, %v4990
    %v5074 = vadd.f32 %v4176, %v4994
    %v5075 = vadd.f32 %v4177, %v4996
    %v5076 = vadd.f32 %v4178, %v4998
    %v5077 = vadd.f32 %v4179, %v5000
    %v5078 = vadd.f32 %v4180, %v5004
    %v5079 = vadd.f32 %v4181, %v5006
    %v5080 = vadd.f32 %v4182, %v5008
    %v5081 = vadd.f32 %v4183, %v5010
    %v5082 = vadd.f32 %v4184, %v5014
    %v5083 = vadd.f32 %v4185, %v5016
    %v5084 = vadd.f32 %v4186, %v5018
    %v5085 = vadd.f32 %v4187, %v5020
    %5086 = vst [vmem:[#allocation2] sm:$0xff] %v5022
    %5087 = vst [vmem:[#allocation2 + $0x8] sm:$0xff] %v5023
    %5088 = vst [vmem:[#allocation2 + $0x10] sm:$0xff] %v5024
    %5089 = vst [vmem:[#allocation2 + $0x18] sm:$0xff] %v5025
    %5090 = vst [vmem:[#allocation2 + $0x20] sm:$0xff] %v5026
    %5091 = vst [vmem:[#allocation2 + $0x28] sm:$0xff] %v5027
    %5092 = vst [vmem:[#allocation2 + $0x30] sm:$0xff] %v5028
    %5093 = vst [vmem:[#allocation2 + $0x38] sm:$0xff] %v5029
    %5094 = vst [vmem:[#allocation2 + $0x40] sm:$0xff] %v5030
    %5095 = vst [vmem:[#allocation2 + $0x48] sm:$0xff] %v5031
    %5096 = vst [vmem:[#allocation2 + $0x50] sm:$0xff] %v5032
    %5097 = vst [vmem:[#allocation2 + $0x58] sm:$0xff] %v5033
    %5098 = vst [vmem:[#allocation2 + $0x60] sm:$0xff] %v5034
    %5099 = vst [vmem:[#allocation2 + $0x68] sm:$0xff] %v5035
    %5100 = vst [vmem:[#allocation2 + $0x70] sm:$0xff] %v5036
    %5101 = vst [vmem:[#allocation2 + $0x78] sm:$0xff] %v5037
    %5102 = vst [vmem:[#allocation2 + $0x80] sm:$0xff] %v5038
    %5103 = vst [vmem:[#allocation2 + $0x88] sm:$0xff] %v5039
    %5104 = vst [vmem:[#allocation2 + $0x90] sm:$0xff] %v5040
    %5105 = vst [vmem:[#allocation2 + $0x98] sm:$0xff] %v5041
    %5106 = vst [vmem:[#allocation2 + $0xa0] sm:$0xff] %v5042
    %5107 = vst [vmem:[#allocation2 + $0xa8] sm:$0xff] %v5043
    %5108 = vst [vmem:[#allocation2 + $0xb0] sm:$0xff] %v5044
    %5109 = vst [vmem:[#allocation2 + $0xb8] sm:$0xff] %v5045
    %5110 = vst [vmem:[#allocation2 + $0xc0] sm:$0xff] %v5046
    %5111 = vst [vmem:[#allocation2 + $0xc8] sm:$0xff] %v5047
    %5112 = vst [vmem:[#allocation2 + $0xd0] sm:$0xff] %v5048
    %5113 = vst [vmem:[#allocation2 + $0xd8] sm:$0xff] %v5049
    %5114 = vst [vmem:[#allocation2 + $0xe0] sm:$0xff] %v5050
    %5115 = vst [vmem:[#allocation2 + $0xe8] sm:$0xff] %v5051
    %5116 = vst [vmem:[#allocation2 + $0xf0] sm:$0xff] %v5052
    %5117 = vst [vmem:[#allocation2 + $0xf8] sm:$0xff] %v5053
    %5118 = vst [vmem:[#allocation2 + $0x100] sm:$0xff] %v5054
    %5119 = vst [vmem:[#allocation2 + $0x108] sm:$0xff] %v5055
    %5120 = vst [vmem:[#allocation2 + $0x110] sm:$0xff] %v5056
    %5121 = vst [vmem:[#allocation2 + $0x118] sm:$0xff] %v5057
    %5122 = vst [vmem:[#allocation2 + $0x120] sm:$0xff] %v5058
    %5123 = vst [vmem:[#allocation2 + $0x128] sm:$0xff] %v5059
    %5124 = vst [vmem:[#allocation2 + $0x130] sm:$0xff] %v5060
    %5125 = vst [vmem:[#allocation2 + $0x138] sm:$0xff] %v5061
    %5126 = vst [vmem:[#allocation2 + $0x140] sm:$0xff] %v5062
    %5127 = vst [vmem:[#allocation2 + $0x148] sm:$0xff] %v5063
    %5128 = vst [vmem:[#allocation2 + $0x150] sm:$0xff] %v5064
    %5129 = vst [vmem:[#allocation2 + $0x158] sm:$0xff] %v5065
    %5130 = vst [vmem:[#allocation2 + $0x160] sm:$0xff] %v5066
    %5131 = vst [vmem:[#allocation2 + $0x168] sm:$0xff] %v5067
    %5132 = vst [vmem:[#allocation2 + $0x170] sm:$0xff] %v5068
    %5133 = vst [vmem:[#allocation2 + $0x178] sm:$0xff] %v5069
    %5134 = vst [vmem:[#allocation2 + $0x180] sm:$0xff] %v5070
    %5135 = vst [vmem:[#allocation2 + $0x188] sm:$0xff] %v5071
    %5136 = vst [vmem:[#allocation2 + $0x190] sm:$0xff] %v5072
    %5137 = vst [vmem:[#allocation2 + $0x198] sm:$0xff] %v5073
    %5138 = vst [vmem:[#allocation2 + $0x1a0] sm:$0xff] %v5074
    %5139 = vst [vmem:[#allocation2 + $0x1a8] sm:$0xff] %v5075
    %5140 = vst [vmem:[#allocation2 + $0x1b0] sm:$0xff] %v5076
    %5141 = vst [vmem:[#allocation2 + $0x1b8] sm:$0xff] %v5077
    %5142 = vst [vmem:[#allocation2 + $0x1c0] sm:$0xff] %v5078
    %5143 = vst [vmem:[#allocation2 + $0x1c8] sm:$0xff] %v5079
    %5144 = vst [vmem:[#allocation2 + $0x1d0] sm:$0xff] %v5080
    %5145 = vst [vmem:[#allocation2 + $0x1d8] sm:$0xff] %v5081
    %5146 = vst [vmem:[#allocation2 + $0x1e0] sm:$0xff] %v5082
    %5147 = vst [vmem:[#allocation2 + $0x1e8] sm:$0xff] %v5083
    %5148 = vst [vmem:[#allocation2 + $0x1f0] sm:$0xff] %v5084
    %5149 = vst [vmem:[#allocation2 + $0x1f8] sm:$0xff] %v5085
    %v5150 = vld [vmem:[#allocation2] sm:$0xff]
    %v5151 = vld [vmem:[#allocation2 + $0x8] sm:$0xff]
    %v5152 = vld [vmem:[#allocation2 + $0x10] sm:$0xff]
    %v5153 = vld [vmem:[#allocation2 + $0x18] sm:$0xff]
    %v5154 = vld [vmem:[#allocation2 + $0x20] sm:$0xff]
    %v5155 = vld [vmem:[#allocation2 + $0x28] sm:$0xff]
    %v5156 = vld [vmem:[#allocation2 + $0x30] sm:$0xff]
    %v5157 = vld [vmem:[#allocation2 + $0x38] sm:$0xff]
    %v5158 = vld [vmem:[#allocation2 + $0x40] sm:$0xff]
    %v5159 = vld [vmem:[#allocation2 + $0x48] sm:$0xff]
    %v5160 = vld [vmem:[#allocation2 + $0x50] sm:$0xff]
    %v5161 = vld [vmem:[#allocation2 + $0x58] sm:$0xff]
    %v5162 = vld [vmem:[#allocation2 + $0x60] sm:$0xff]
    %v5163 = vld [vmem:[#allocation2 + $0x68] sm:$0xff]
    %v5164 = vld [vmem:[#allocation2 + $0x70] sm:$0xff]
    %v5165 = vld [vmem:[#allocation2 + $0x78] sm:$0xff]
    %v5166 = vld [vmem:[#allocation2 + $0x80] sm:$0xff]
    %v5167 = vld [vmem:[#allocation2 + $0x88] sm:$0xff]
    %v5168 = vld [vmem:[#allocation2 + $0x90] sm:$0xff]
    %v5169 = vld [vmem:[#allocation2 + $0x98] sm:$0xff]
    %v5170 = vld [vmem:[#allocation2 + $0xa0] sm:$0xff]
    %v5171 = vld [vmem:[#allocation2 + $0xa8] sm:$0xff]
    %v5172 = vld [vmem:[#allocation2 + $0xb0] sm:$0xff]
    %v5173 = vld [vmem:[#allocation2 + $0xb8] sm:$0xff]
    %v5174 = vld [vmem:[#allocation2 + $0xc0] sm:$0xff]
    %v5175 = vld [vmem:[#allocation2 + $0xc8] sm:$0xff]
    %v5176 = vld [vmem:[#allocation2 + $0xd0] sm:$0xff]
    %v5177 = vld [vmem:[#allocation2 + $0xd8] sm:$0xff]
    %v5178 = vld [vmem:[#allocation2 + $0xe0] sm:$0xff]
    %v5179 = vld [vmem:[#allocation2 + $0xe8] sm:$0xff]
    %v5180 = vld [vmem:[#allocation2 + $0xf0] sm:$0xff]
    %v5181 = vld [vmem:[#allocation2 + $0xf8] sm:$0xff]
    %v5182 = vld [vmem:[#allocation2 + $0x100] sm:$0xff]
    %v5183 = vld [vmem:[#allocation2 + $0x108] sm:$0xff]
    %v5184 = vld [vmem:[#allocation2 + $0x110] sm:$0xff]
    %v5185 = vld [vmem:[#allocation2 + $0x118] sm:$0xff]
    %v5186 = vld [vmem:[#allocation2 + $0x120] sm:$0xff]
    %v5187 = vld [vmem:[#allocation2 + $0x128] sm:$0xff]
    %v5188 = vld [vmem:[#allocation2 + $0x130] sm:$0xff]
    %v5189 = vld [vmem:[#allocation2 + $0x138] sm:$0xff]
    %v5190 = vld [vmem:[#allocation2 + $0x140] sm:$0xff]
    %v5191 = vld [vmem:[#allocation2 + $0x148] sm:$0xff]
    %v5192 = vld [vmem:[#allocation2 + $0x150] sm:$0xff]
    %v5193 = vld [vmem:[#allocation2 + $0x158] sm:$0xff]
    %v5194 = vld [vmem:[#allocation2 + $0x160] sm:$0xff]
    %v5195 = vld [vmem:[#allocation2 + $0x168] sm:$0xff]
    %v5196 = vld [vmem:[#allocation2 + $0x170] sm:$0xff]
    %v5197 = vld [vmem:[#allocation2 + $0x178] sm:$0xff]
    %v5198 = vld [vmem:[#allocation2 + $0x180] sm:$0xff]
    %v5199 = vld [vmem:[#allocation2 + $0x188] sm:$0xff]
    %v5200 = vld [vmem:[#allocation2 + $0x190] sm:$0xff]
    %v5201 = vld [vmem:[#allocation2 + $0x198] sm:$0xff]
    %v5202 = vld [vmem:[#allocation2 + $0x1a0] sm:$0xff]
    %v5203 = vld [vmem:[#allocation2 + $0x1a8] sm:$0xff]
    %v5204 = vld [vmem:[#allocation2 + $0x1b0] sm:$0xff]
    %v5205 = vld [vmem:[#allocation2 + $0x1b8] sm:$0xff]
    %v5206 = vld [vmem:[#allocation2 + $0x1c0] sm:$0xff]
    %v5207 = vld [vmem:[#allocation2 + $0x1c8] sm:$0xff]
    %v5208 = vld [vmem:[#allocation2 + $0x1d0] sm:$0xff]
    %v5209 = vld [vmem:[#allocation2 + $0x1d8] sm:$0xff]
    %v5210 = vld [vmem:[#allocation2 + $0x1e0] sm:$0xff]
    %v5211 = vld [vmem:[#allocation2 + $0x1e8] sm:$0xff]
    %v5212 = vld [vmem:[#allocation2 + $0x1f0] sm:$0xff]
    %v5213 = vld [vmem:[#allocation2 + $0x1f8] sm:$0xff]
    %v5214 = vld [vmem:[%s4] sm:$0x3]
    %v5216 = vlaneseq
    %v5217 = vshrl.u32 %v5216, 7
    %v5218 = vsub.s32 0, %v5217
    %v5219 = vrot.slane %v5214, %v5218
    %v5220 = vlaneseq
    %v5221 = vshrl.u32 %v5220, 7
    %v5222 = vsub.s32 1, %v5221
    %v5223 = vrot.slane %v5214, %v5222
    %v5226 = vadd.f32 %v5150, %v5219
    %v5227 = vadd.f32 %v5151, %v5223
    %v5228 = vadd.f32 %v5152, %v5219
    %v5229 = vadd.f32 %v5153, %v5223
    %v5230 = vadd.f32 %v5154, %v5219
    %v5231 = vadd.f32 %v5155, %v5223
    %v5232 = vadd.f32 %v5156, %v5219
    %v5233 = vadd.f32 %v5157, %v5223
    %v5234 = vadd.f32 %v5158, %v5219
    %v5235 = vadd.f32 %v5159, %v5223
    %v5236 = vadd.f32 %v5160, %v5219
    %v5237 = vadd.f32 %v5161, %v5223
    %v5238 = vadd.f32 %v5162, %v5219
    %v5239 = vadd.f32 %v5163, %v5223
    %v5240 = vadd.f32 %v5164, %v5219
    %v5241 = vadd.f32 %v5165, %v5223
    %v5242 = vadd.f32 %v5166, %v5219
    %v5243 = vadd.f32 %v5167, %v5223
    %v5244 = vadd.f32 %v5168, %v5219
    %v5245 = vadd.f32 %v5169, %v5223
    %v5246 = vadd.f32 %v5170, %v5219
    %v5247 = vadd.f32 %v5171, %v5223
    %v5248 = vadd.f32 %v5172, %v5219
    %v5249 = vadd.f32 %v5173, %v5223
    %v5250 = vadd.f32 %v5174, %v5219
    %v5251 = vadd.f32 %v5175, %v5223
    %v5252 = vadd.f32 %v5176, %v5219
    %v5253 = vadd.f32 %v5177, %v5223
    %v5254 = vadd.f32 %v5178, %v5219
    %v5255 = vadd.f32 %v5179, %v5223
    %v5256 = vadd.f32 %v5180, %v5219
    %v5257 = vadd.f32 %v5181, %v5223
    %v5258 = vadd.f32 %v5182, %v5219
    %v5259 = vadd.f32 %v5183, %v5223
    %v5260 = vadd.f32 %v5184, %v5219
    %v5261 = vadd.f32 %v5185, %v5223
    %v5262 = vadd.f32 %v5186, %v5219
    %v5263 = vadd.f32 %v5187, %v5223
    %v5264 = vadd.f32 %v5188, %v5219
    %v5265 = vadd.f32 %v5189, %v5223
    %v5266 = vadd.f32 %v5190, %v5219
    %v5267 = vadd.f32 %v5191, %v5223
    %v5268 = vadd.f32 %v5192, %v5219
    %v5269 = vadd.f32 %v5193, %v5223
    %v5270 = vadd.f32 %v5194, %v5219
    %v5271 = vadd.f32 %v5195, %v5223
    %v5272 = vadd.f32 %v5196, %v5219
    %v5273 = vadd.f32 %v5197, %v5223
    %v5274 = vadd.f32 %v5198, %v5219
    %v5275 = vadd.f32 %v5199, %v5223
    %v5276 = vadd.f32 %v5200, %v5219
    %v5277 = vadd.f32 %v5201, %v5223
    %v5278 = vadd.f32 %v5202, %v5219
    %v5279 = vadd.f32 %v5203, %v5223
    %v5280 = vadd.f32 %v5204, %v5219
    %v5281 = vadd.f32 %v5205, %v5223
    %v5282 = vadd.f32 %v5206, %v5219
    %v5283 = vadd.f32 %v5207, %v5223
    %v5284 = vadd.f32 %v5208, %v5219
    %v5285 = vadd.f32 %v5209, %v5223
    %v5286 = vadd.f32 %v5210, %v5219
    %v5287 = vadd.f32 %v5211, %v5223
    %v5288 = vadd.f32 %v5212, %v5219
    %v5289 = vadd.f32 %v5213, %v5223
    %5290 = vst [vmem:[#allocation11] sm:$0xff] %v5226
    %5291 = vst [vmem:[#allocation11 + $0x8] sm:$0xff] %v5227
    %5292 = vst [vmem:[#allocation11 + $0x10] sm:$0xff] %v5228
    %5293 = vst [vmem:[#allocation11 + $0x18] sm:$0xff] %v5229
    %5294 = vst [vmem:[#allocation11 + $0x20] sm:$0xff] %v5230
    %5295 = vst [vmem:[#allocation11 + $0x28] sm:$0xff] %v5231
    %5296 = vst [vmem:[#allocation11 + $0x30] sm:$0xff] %v5232
    %5297 = vst [vmem:[#allocation11 + $0x38] sm:$0xff] %v5233
    %5298 = vst [vmem:[#allocation11 + $0x40] sm:$0xff] %v5234
    %5299 = vst [vmem:[#allocation11 + $0x48] sm:$0xff] %v5235
    %5300 = vst [vmem:[#allocation11 + $0x50] sm:$0xff] %v5236
    %5301 = vst [vmem:[#allocation11 + $0x58] sm:$0xff] %v5237
    %5302 = vst [vmem:[#allocation11 + $0x60] sm:$0xff] %v5238
    %5303 = vst [vmem:[#allocation11 + $0x68] sm:$0xff] %v5239
    %5304 = vst [vmem:[#allocation11 + $0x70] sm:$0xff] %v5240
    %5305 = vst [vmem:[#allocation11 + $0x78] sm:$0xff] %v5241
    %5306 = vst [vmem:[#allocation11 + $0x80] sm:$0xff] %v5242
    %5307 = vst [vmem:[#allocation11 + $0x88] sm:$0xff] %v5243
    %5308 = vst [vmem:[#allocation11 + $0x90] sm:$0xff] %v5244
    %5309 = vst [vmem:[#allocation11 + $0x98] sm:$0xff] %v5245
    %5310 = vst [vmem:[#allocation11 + $0xa0] sm:$0xff] %v5246
    %5311 = vst [vmem:[#allocation11 + $0xa8] sm:$0xff] %v5247
    %5312 = vst [vmem:[#allocation11 + $0xb0] sm:$0xff] %v5248
    %5313 = vst [vmem:[#allocation11 + $0xb8] sm:$0xff] %v5249
    %5314 = vst [vmem:[#allocation11 + $0xc0] sm:$0xff] %v5250
    %5315 = vst [vmem:[#allocation11 + $0xc8] sm:$0xff] %v5251
    %5316 = vst [vmem:[#allocation11 + $0xd0] sm:$0xff] %v5252
    %5317 = vst [vmem:[#allocation11 + $0xd8] sm:$0xff] %v5253
    %5318 = vst [vmem:[#allocation11 + $0xe0] sm:$0xff] %v5254
    %5319 = vst [vmem:[#allocation11 + $0xe8] sm:$0xff] %v5255
    %5320 = vst [vmem:[#allocation11 + $0xf0] sm:$0xff] %v5256
    %5321 = vst [vmem:[#allocation11 + $0xf8] sm:$0xff] %v5257
    %5322 = vst [vmem:[#allocation11 + $0x100] sm:$0xff] %v5258
    %5323 = vst [vmem:[#allocation11 + $0x108] sm:$0xff] %v5259
    %5324 = vst [vmem:[#allocation11 + $0x110] sm:$0xff] %v5260
    %5325 = vst [vmem:[#allocation11 + $0x118] sm:$0xff] %v5261
    %5326 = vst [vmem:[#allocation11 + $0x120] sm:$0xff] %v5262
    %5327 = vst [vmem:[#allocation11 + $0x128] sm:$0xff] %v5263
    %5328 = vst [vmem:[#allocation11 + $0x130] sm:$0xff] %v5264
    %5329 = vst [vmem:[#allocation11 + $0x138] sm:$0xff] %v5265
    %5330 = vst [vmem:[#allocation11 + $0x140] sm:$0xff] %v5266
    %5331 = vst [vmem:[#allocation11 + $0x148] sm:$0xff] %v5267
    %5332 = vst [vmem:[#allocation11 + $0x150] sm:$0xff] %v5268
    %5333 = vst [vmem:[#allocation11 + $0x158] sm:$0xff] %v5269
    %5334 = vst [vmem:[#allocation11 + $0x160] sm:$0xff] %v5270
    %5335 = vst [vmem:[#allocation11 + $0x168] sm:$0xff] %v5271
    %5336 = vst [vmem:[#allocation11 + $0x170] sm:$0xff] %v5272
    %5337 = vst [vmem:[#allocation11 + $0x178] sm:$0xff] %v5273
    %5338 = vst [vmem:[#allocation11 + $0x180] sm:$0xff] %v5274
    %5339 = vst [vmem:[#allocation11 + $0x188] sm:$0xff] %v5275
    %5340 = vst [vmem:[#allocation11 + $0x190] sm:$0xff] %v5276
    %5341 = vst [vmem:[#allocation11 + $0x198] sm:$0xff] %v5277
    %5342 = vst [vmem:[#allocation11 + $0x1a0] sm:$0xff] %v5278
    %5343 = vst [vmem:[#allocation11 + $0x1a8] sm:$0xff] %v5279
    %5344 = vst [vmem:[#allocation11 + $0x1b0] sm:$0xff] %v5280
    %5345 = vst [vmem:[#allocation11 + $0x1b8] sm:$0xff] %v5281
    %5346 = vst [vmem:[#allocation11 + $0x1c0] sm:$0xff] %v5282
    %5347 = vst [vmem:[#allocation11 + $0x1c8] sm:$0xff] %v5283
    %5348 = vst [vmem:[#allocation11 + $0x1d0] sm:$0xff] %v5284
    %5349 = vst [vmem:[#allocation11 + $0x1d8] sm:$0xff] %v5285
    %5350 = vst [vmem:[#allocation11 + $0x1e0] sm:$0xff] %v5286
    %5351 = vst [vmem:[#allocation11 + $0x1e8] sm:$0xff] %v5287
    %5352 = vst [vmem:[#allocation11 + $0x1f0] sm:$0xff] %v5288
    %5353 = vst [vmem:[#allocation11 + $0x1f8] sm:$0xff] %v5289
    // Predicated region
    $region38: #{tpu_custom_call.1} parent=1 // pred_check
      _
    $region39: #{tpu_custom_call.1} parent=1 // pred_check_branch
      %5355 = sbr.rel (0) target = $region41
    $region40: #{tpu_custom_call.1} parent=1 // pred_region
      %s5357 = ssub.s32 8192, 8192
      %5358 = vsyncadd [#allocation5], %s5357
      %s5359 = sshll.u32 [#allocation11], 4
      %s5360 = int_to_ptr.vmem [resolvable:$true] %s5359
      %5365 = dma.vmem_to_hbm [thread:$0]  %s5360, 8192, %s5, [#allocation5], 256, 256, 16
    $region41: #{tpu_custom_call.1} parent=1 // pred_fallthru
      _
    // Predicated region
    $region42: #{tpu_custom_call.1} parent=1 // pred_check
      _
    $region43: #{tpu_custom_call.1} parent=1 // pred_check_branch
      %5367 = sbr.rel (0) target = $region45
    $region44: #{tpu_custom_call.1} parent=1 // pred_region
      %5368 = dma.done [#allocation5], 8192
    $region45: #{tpu_custom_call.1} parent=1 // pred_fallthru
      _
    %5369 = vsyncpa [#allocation4], 1
    %5370 = vsyncpa [#allocation7], 1
    %5371 = vsyncpa [#allocation10], 1
    %5372 = vsyncpa [#allocation5], 1

</llo_original>
